<compile_context>
chip_gen: v7x
topology: tpu7x:2x2x1
jax: 0.10.0
libtpu: 0.0.40
codegen_flags: <defaults>
</compile_context>

<pallas_src>
import jax
import jax.numpy as jnp
from jax import lax
from jax.experimental import pallas as pl
from jax.experimental.pallas import tpu as pltpu

KSIZE = 7
PAD = 3
T = 2                        # two interleaved planes per group: (x_c, pattn1_c)
NTAPS = T * KSIZE * KSIZE    # 98
N_ACC = 4                    # parallel accumulators for ILP in the tap loop


def _make_kernel(H, W, TR, n_tiles):
    Hp = H + 2 * PAD
    Wp = W + 2 * PAD

    def kernel(w_ref, b_ref, x_ref, p_ref, out_ref, pad_ref, sh_ref):
        # w_ref  : (C*98,)        f32 SMEM   per-channel tap weights (tap-major per channel)
        # b_ref  : (C,)           f32 SMEM
        # x_ref  : (H, W)         f32 VMEM   x plane for this (batch, channel)
        # p_ref  : (H, W)         f32 VMEM   pattn1 plane
        # out_ref: (H, W)         f32 VMEM
        # pad_ref: (Hp, Wp)       f32 VMEM scratch (reflect-padded plane; reused for both)
        # sh_ref : (2, 7, Hp, W)  f32 VMEM scratch (per-plane, per-kw lane-shifted planes)
        c = pl.program_id(1)

        # ---- reflect-pad one plane, then hoist its 7 kw-shifted (lane-aligned) copies ----
        def build_plane(src_ref, pi):
            pad_ref[PAD:PAD + H, PAD:PAD + W] = src_ref[...]
            for p in range(PAD):
                # reflect along W (lane axis): left col p <- src col (PAD - p), right mirrors
                pad_ref[PAD:PAD + H, p:p + 1] = src_ref[:, PAD - p:PAD - p + 1]
                pad_ref[PAD:PAD + H, PAD + W + p:PAD + W + p + 1] = \
                    src_ref[:, W - 2 - p:W - 1 - p]
            for p in range(PAD):
                # reflect along H (sublane axis) using already W-padded rows (corners correct)
                pad_ref[p:p + 1, :] = pad_ref[2 * PAD - p:2 * PAD - p + 1, :]
                pad_ref[PAD + H + p:PAD + H + p + 1, :] = \
                    pad_ref[PAD + H - 2 - p:PAD + H - 1 - p, :]
            # hoisted lane shifts: the 98-tap loop below only needs sublane (kh) offsets
            for kw in range(KSIZE):
                sh_ref[pi, kw, :, :] = pad_ref[:, kw:kw + W]

        build_plane(x_ref, 0)
        build_plane(p_ref, 1)

        # ---- per-channel weights / bias as SMEM scalars, hoisted out of the row loop ----
        wbase = c * NTAPS
        wvals = [w_ref[wbase + t] for t in range(NTAPS)]
        bval = b_ref[c]

        # ---- row-tile loop: accumulator stays in vregs, one store per tile ----
        def compute_tile(r0):
            accs = [jnp.zeros((TR, W), jnp.float32) for _ in range(N_ACC)]
            t = 0
            for pi in range(T):
                for kh in range(KSIZE):
                    for kw in range(KSIZE):
                        slab = sh_ref[pi, kw, pl.ds(r0 + kh, TR), :]   # (TR, W)
                        accs[t % N_ACC] = accs[t % N_ACC] + slab * wvals[t]
                        t += 1
            acc = (accs[0] + accs[1]) + (accs[2] + accs[3])
            z = acc + bval
            # sigmoid spelled out (exp on the EUP + one exact divide; keeps 1e-5 accuracy)
            y = 1.0 / (1.0 + jnp.exp(-z))
            out_ref[pl.ds(r0, TR), :] = y.astype(out_ref.dtype)

        if n_tiles == 1:
            compute_tile(0)
        else:
            def body(rt, carry):
                r0 = jnp.minimum(rt * TR, H - TR)   # clamp last tile (overlap recompute ok)
                compute_tile(r0)
                return carry
            lax.fori_loop(0, n_tiles, body, 0)

    return kernel


def pixel_attention(x, pattn1, weight, bias):
    """x, pattn1: (B, C, H, W); weight: (C, 2, 7, 7); bias: (C,). Returns (B, C, H, W) f32."""
    B, C, H, W = x.shape
    assert pattn1.shape == (B, C, H, W)
    assert weight.shape == (C, T, KSIZE, KSIZE)
    assert bias.shape == (C,)
    assert H >= 4 and W >= 4, "reflect padding of 3 requires H, W >= 4"

    x_f = x.astype(jnp.float32)
    p_f = pattn1.astype(jnp.float32)
    w_flat = weight.astype(jnp.float32).reshape(C * NTAPS)   # tap index = pi*49 + kh*7 + kw
    b_f = bias.astype(jnp.float32)

    # Row-tile size: big enough to hide the 98 scalar weight reads, small enough that the
    # per-tile accumulator (~TR/8 * ceil(W/128) vregs) stays register-resident.
    ncol = (W + 127) // 128
    if H <= 8:
        TR = H
    else:
        TR = 8
        while TR * 2 <= 32 and (TR * 2 // 8) * ncol <= 8 and TR * 2 <= H:
            TR *= 2
    n_tiles = (H + TR - 1) // TR

    Hp, Wp = H + 2 * PAD, W + 2 * PAD

    # VMEM sizing: double-buffered in/out blocks + padded/shifted scratch + acc headroom.
    def rup(a, m):
        return (a + m - 1) // m * m

    blk = rup(H, 8) * rup(W, 128) * 4
    est = 6 * blk                                       # 2 inputs + 1 output, double-buffered
    est += rup(Hp, 8) * rup(Wp, 128) * 4                # reflect-padded plane scratch
    est += T * KSIZE * rup(Hp, 8) * rup(W, 128) * 4     # 14 kw-shifted planes
    est += 4 * blk                                      # headroom: acc / elementwise temps
    try:
        cap = int(getattr(pltpu.get_tpu_info(), "vmem_capacity_bytes", 0)) or 64 * 1024 * 1024
    except Exception:
        cap = 64 * 1024 * 1024                          # conservative (v7x per-core VMEM)
    vmem_limit = max(2 * est, 32 * 1024 * 1024)
    vmem_limit = min(vmem_limit, max(cap - (8 << 20), 32 * 1024 * 1024))

    kernel = _make_kernel(H, W, TR, n_tiles)

    def plane_spec():
        return pl.BlockSpec((None, None, H, W), lambda b, c: (b, c, 0, 0))

    out = pl.pallas_call(
        kernel,
        out_shape=jax.ShapeDtypeStruct((B, C, H, W), jnp.float32),
        grid=(B, C),
        in_specs=[
            pl.BlockSpec(memory_space=pltpu.MemorySpace.SMEM),   # weights (C*98,)
            pl.BlockSpec(memory_space=pltpu.MemorySpace.SMEM),   # bias    (C,)
            plane_spec(),                                        # x plane
            plane_spec(),                                        # pattn1 plane
        ],
        out_specs=plane_spec(),
        scratch_shapes=[
            pltpu.VMEM((Hp, Wp), jnp.float32),
            pltpu.VMEM((T, KSIZE, Hp, W), jnp.float32),
        ],
        compiler_params=pltpu.CompilerParams(
            dimension_semantics=("parallel", "parallel"),
            vmem_limit_bytes=int(vmem_limit),
        ),
    )(w_flat, b_f, x_f, p_f)
    return out


def pixel_attention_reference(x, pattn1, weight, bias):
    """Plain-JAX reference matching the PyTorch module (grouped conv, reflect pad, sigmoid)."""
    B, C, H, W = x.shape
    x2 = jnp.stack([x, pattn1], axis=2).reshape(B, 2 * C, H, W)
    xp = jnp.pad(x2, ((0, 0), (0, 0), (PAD, PAD), (PAD, PAD)), mode="reflect")
    out = jax.lax.conv_general_dilated(
        xp.astype(jnp.float32), weight.astype(jnp.float32),
        window_strides=(1, 1), padding="VALID",
        dimension_numbers=("NCHW", "OIHW", "NCHW"),
        feature_group_count=C)
    out = out + bias[None, :, None, None]
    return jax.nn.sigmoid(out)


if __name__ == "__main__":
    B, C, H, W = 2, 4, 16, 16

    key = jax.random.PRNGKey(0)
    kx, kp, kw_key, kb = jax.random.split(key, 4)
    x = jax.random.normal(kx, (B, C, H, W), dtype=jnp.float32)
    pattn1 = jax.random.normal(kp, (B, C, H, W), dtype=jnp.float32)

    # nn.Conv2d(2*dim, dim, 7, groups=dim, bias=True): weight (dim, 2, 7, 7), bias (dim,)
    weight = jax.random.normal(kw_key, (C, T, KSIZE, KSIZE), dtype=jnp.float32) * 0.1
    bias = jax.random.normal(kb, (C,), dtype=jnp.float32) * 0.1

    out = jax.block_until_ready(jax.jit(pixel_attention)(x, pattn1, weight, bias))
    ref = pixel_attention_reference(x, pattn1, weight, bias)
    assert out.shape == (B, C, H, W)
    assert jnp.allclose(out, ref, atol=1e-5, rtol=1e-5), "mismatch vs reference"

    print("KERNEL_OK")
</pallas_src>

<mosaic_0001>
module attributes {stable_mosaic.version = 11 : i64} {
  func.func @kernel(%arg0: i32, %arg1: i32, %arg2: memref<392xf32, #tpu.memory_space<smem>>, %arg3: memref<4xf32, #tpu.memory_space<smem>>, %arg4: memref<1x1x16x16xf32, #tpu.memory_space<vmem>>, %arg5: memref<1x1x16x16xf32, #tpu.memory_space<vmem>>, %arg6: memref<1x1x16x16xf32, #tpu.memory_space<vmem>>, %arg7: memref<22x22xf32, #tpu.memory_space<vmem>>, %arg8: memref<2x7x22x16xf32, #tpu.memory_space<vmem>>) attributes {dimension_semantics = [#tpu.dimension_semantics<parallel>, #tpu.dimension_semantics<parallel>], iteration_bounds = array<i64: 2, 4>, scalar_prefetch = 0 : i64, scratch_operands = 2 : i64, tpu.core_type = #tpu.core_type<tc>, window_params = [{transform_indices = @transform_0, window_bounds = array<i64: 392>}, {transform_indices = @transform_1, window_bounds = array<i64: 4>}, {transform_indices = @transform_2, window_bounds = array<i64: 1, 1, 16, 16>}, {transform_indices = @transform_3, window_bounds = array<i64: 1, 1, 16, 16>}, {transform_indices = @transform_4, window_bounds = array<i64: 1, 1, 16, 16>}]} {
    %c0 = arith.constant 0 : index
    %c0_0 = arith.constant 0 : index
    %c0_1 = arith.constant 0 : index
    %c0_2 = arith.constant 0 : index
    %0 = vector.load %arg4[%c0, %c0_0, %c0_1, %c0_2] : memref<1x1x16x16xf32, #tpu.memory_space<vmem>>, vector<1x1x16x16xf32>
    %1 = vector.shape_cast %0 : vector<1x1x16x16xf32> to vector<16x16xf32>
    %c3 = arith.constant 3 : index
    %c3_3 = arith.constant 3 : index
    %2 = vector.load %arg7[%c3, %c3_3] : memref<22x22xf32, #tpu.memory_space<vmem>>, vector<16x16xf32>
    tpu.vector_store %arg7[%c3, %c3_3], %1 {strides = array<i32>} : memref<22x22xf32, #tpu.memory_space<vmem>>, vector<16x16xf32>,
    %c0_4 = arith.constant 0 : index
    %c0_5 = arith.constant 0 : index
    %c0_6 = arith.constant 0 : index
    %c3_7 = arith.constant 3 : index
    %3 = vector.load %arg4[%c0_4, %c0_5, %c0_6, %c3_7] : memref<1x1x16x16xf32, #tpu.memory_space<vmem>>, vector<1x1x16x1xf32>
    %4 = vector.shape_cast %3 : vector<1x1x16x1xf32> to vector<16x1xf32>
    %c3_8 = arith.constant 3 : index
    %c0_9 = arith.constant 0 : index
    %5 = vector.load %arg7[%c3_8, %c0_9] : memref<22x22xf32, #tpu.memory_space<vmem>>, vector<16x1xf32>
    tpu.vector_store %arg7[%c3_8, %c0_9], %4 {strides = array<i32>} : memref<22x22xf32, #tpu.memory_space<vmem>>, vector<16x1xf32>,
    %c0_10 = arith.constant 0 : index
    %c0_11 = arith.constant 0 : index
    %c0_12 = arith.constant 0 : index
    %c14 = arith.constant 14 : index
    %6 = vector.load %arg4[%c0_10, %c0_11, %c0_12, %c14] : memref<1x1x16x16xf32, #tpu.memory_space<vmem>>, vector<1x1x16x1xf32>
    %7 = vector.shape_cast %6 : vector<1x1x16x1xf32> to vector<16x1xf32>
    %c3_13 = arith.constant 3 : index
    %c19 = arith.constant 19 : index
    %8 = vector.load %arg7[%c3_13, %c19] : memref<22x22xf32, #tpu.memory_space<vmem>>, vector<16x1xf32>
    tpu.vector_store %arg7[%c3_13, %c19], %7 {strides = array<i32>} : memref<22x22xf32, #tpu.memory_space<vmem>>, vector<16x1xf32>,
    %c0_14 = arith.constant 0 : index
    %c0_15 = arith.constant 0 : index
    %c0_16 = arith.constant 0 : index
    %c2 = arith.constant 2 : index
    %9 = vector.load %arg4[%c0_14, %c0_15, %c0_16, %c2] : memref<1x1x16x16xf32, #tpu.memory_space<vmem>>, vector<1x1x16x1xf32>
    %10 = vector.shape_cast %9 : vector<1x1x16x1xf32> to vector<16x1xf32>
    %c3_17 = arith.constant 3 : index
    %c1 = arith.constant 1 : index
    %11 = vector.load %arg7[%c3_17, %c1] : memref<22x22xf32, #tpu.memory_space<vmem>>, vector<16x1xf32>
    tpu.vector_store %arg7[%c3_17, %c1], %10 {strides = array<i32>} : memref<22x22xf32, #tpu.memory_space<vmem>>, vector<16x1xf32>,
    %c0_18 = arith.constant 0 : index
    %c0_19 = arith.constant 0 : index
    %c0_20 = arith.constant 0 : index
    %c13 = arith.constant 13 : index
    %12 = vector.load %arg4[%c0_18, %c0_19, %c0_20, %c13] : memref<1x1x16x16xf32, #tpu.memory_space<vmem>>, vector<1x1x16x1xf32>
    %13 = vector.shape_cast %12 : vector<1x1x16x1xf32> to vector<16x1xf32>
    %c3_21 = arith.constant 3 : index
    %c20 = arith.constant 20 : index
    %14 = vector.load %arg7[%c3_21, %c20] : memref<22x22xf32, #tpu.memory_space<vmem>>, vector<16x1xf32>
    tpu.vector_store %arg7[%c3_21, %c20], %13 {strides = array<i32>} : memref<22x22xf32, #tpu.memory_space<vmem>>, vector<16x1xf32>,
    %c0_22 = arith.constant 0 : index
    %c0_23 = arith.constant 0 : index
    %c0_24 = arith.constant 0 : index
    %c1_25 = arith.constant 1 : index
    %15 = vector.load %arg4[%c0_22, %c0_23, %c0_24, %c1_25] : memref<1x1x16x16xf32, #tpu.memory_space<vmem>>, vector<1x1x16x1xf32>
    %16 = vector.shape_cast %15 : vector<1x1x16x1xf32> to vector<16x1xf32>
    %c3_26 = arith.constant 3 : index
    %c2_27 = arith.constant 2 : index
    %17 = vector.load %arg7[%c3_26, %c2_27] : memref<22x22xf32, #tpu.memory_space<vmem>>, vector<16x1xf32>
    tpu.vector_store %arg7[%c3_26, %c2_27], %16 {strides = array<i32>} : memref<22x22xf32, #tpu.memory_space<vmem>>, vector<16x1xf32>,
    %c0_28 = arith.constant 0 : index
    %c0_29 = arith.constant 0 : index
    %c0_30 = arith.constant 0 : index
    %c12 = arith.constant 12 : index
    %18 = vector.load %arg4[%c0_28, %c0_29, %c0_30, %c12] : memref<1x1x16x16xf32, #tpu.memory_space<vmem>>, vector<1x1x16x1xf32>
    %19 = vector.shape_cast %18 : vector<1x1x16x1xf32> to vector<16x1xf32>
    %c3_31 = arith.constant 3 : index
    %c21 = arith.constant 21 : index
    %20 = vector.load %arg7[%c3_31, %c21] : memref<22x22xf32, #tpu.memory_space<vmem>>, vector<16x1xf32>
    tpu.vector_store %arg7[%c3_31, %c21], %19 {strides = array<i32>} : memref<22x22xf32, #tpu.memory_space<vmem>>, vector<16x1xf32>,
    %c6 = arith.constant 6 : index
    %c0_32 = arith.constant 0 : index
    %21 = vector.load %arg7[%c6, %c0_32] : memref<22x22xf32, #tpu.memory_space<vmem>>, vector<1x22xf32>
    %c0_33 = arith.constant 0 : index
    %c0_34 = arith.constant 0 : index
    %22 = vector.load %arg7[%c0_33, %c0_34] : memref<22x22xf32, #tpu.memory_space<vmem>>, vector<1x22xf32>
    tpu.vector_store %arg7[%c0_33, %c0_34], %21 {strides = array<i32>} : memref<22x22xf32, #tpu.memory_space<vmem>>, vector<1x22xf32>,
    %c17 = arith.constant 17 : index
    %c0_35 = arith.constant 0 : index
    %23 = vector.load %arg7[%c17, %c0_35] : memref<22x22xf32, #tpu.memory_space<vmem>>, vector<1x22xf32>
    %c19_36 = arith.constant 19 : index
    %c0_37 = arith.constant 0 : index
    %24 = vector.load %arg7[%c19_36, %c0_37] : memref<22x22xf32, #tpu.memory_space<vmem>>, vector<1x22xf32>
    tpu.vector_store %arg7[%c19_36, %c0_37], %23 {strides = array<i32>} : memref<22x22xf32, #tpu.memory_space<vmem>>, vector<1x22xf32>,
    %c5 = arith.constant 5 : index
    %c0_38 = arith.constant 0 : index
    %25 = vector.load %arg7[%c5, %c0_38] : memref<22x22xf32, #tpu.memory_space<vmem>>, vector<1x22xf32>
    %c1_39 = arith.constant 1 : index
    %c0_40 = arith.constant 0 : index
    %26 = vector.load %arg7[%c1_39, %c0_40] : memref<22x22xf32, #tpu.memory_space<vmem>>, vector<1x22xf32>
    tpu.vector_store %arg7[%c1_39, %c0_40], %25 {strides = array<i32>} : memref<22x22xf32, #tpu.memory_space<vmem>>, vector<1x22xf32>,
    %c16 = arith.constant 16 : index
    %c0_41 = arith.constant 0 : index
    %27 = vector.load %arg7[%c16, %c0_41] : memref<22x22xf32, #tpu.memory_space<vmem>>, vector<1x22xf32>
    %c20_42 = arith.constant 20 : index
    %c0_43 = arith.constant 0 : index
    %28 = vector.load %arg7[%c20_42, %c0_43] : memref<22x22xf32, #tpu.memory_space<vmem>>, vector<1x22xf32>
    tpu.vector_store %arg7[%c20_42, %c0_43], %27 {strides = array<i32>} : memref<22x22xf32, #tpu.memory_space<vmem>>, vector<1x22xf32>,
    %c4 = arith.constant 4 : index
    %c0_44 = arith.constant 0 : index
    %29 = vector.load %arg7[%c4, %c0_44] : memref<22x22xf32, #tpu.memory_space<vmem>>, vector<1x22xf32>
    %c2_45 = arith.constant 2 : index
    %c0_46 = arith.constant 0 : index
    %30 = vector.load %arg7[%c2_45, %c0_46] : memref<22x22xf32, #tpu.memory_space<vmem>>, vector<1x22xf32>
    tpu.vector_store %arg7[%c2_45, %c0_46], %29 {strides = array<i32>} : memref<22x22xf32, #tpu.memory_space<vmem>>, vector<1x22xf32>,
    %c15 = arith.constant 15 : index
    %c0_47 = arith.constant 0 : index
    %31 = vector.load %arg7[%c15, %c0_47] : memref<22x22xf32, #tpu.memory_space<vmem>>, vector<1x22xf32>
    %c21_48 = arith.constant 21 : index
    %c0_49 = arith.constant 0 : index
    %32 = vector.load %arg7[%c21_48, %c0_49] : memref<22x22xf32, #tpu.memory_space<vmem>>, vector<1x22xf32>
    tpu.vector_store %arg7[%c21_48, %c0_49], %31 {strides = array<i32>} : memref<22x22xf32, #tpu.memory_space<vmem>>, vector<1x22xf32>,
    %c0_50 = arith.constant 0 : index
    %c0_51 = arith.constant 0 : index
    %33 = vector.load %arg7[%c0_50, %c0_51] : memref<22x22xf32, #tpu.memory_space<vmem>>, vector<22x16xf32>
    %c0_52 = arith.constant 0 : index
    %c0_53 = arith.constant 0 : index
    %c0_54 = arith.constant 0 : index
    %c0_55 = arith.constant 0 : index
    %34 = vector.load %arg8[%c0_52, %c0_53, %c0_54, %c0_55] : memref<2x7x22x16xf32, #tpu.memory_space<vmem>>, vector<1x1x22x16xf32>
    %35 = vector.shape_cast %34 : vector<1x1x22x16xf32> to vector<22x16xf32>
    %36 = vector.shape_cast %33 : vector<22x16xf32> to vector<1x1x22x16xf32>
    tpu.vector_store %arg8[%c0_52, %c0_53, %c0_54, %c0_55], %36 {strides = array<i32>} : memref<2x7x22x16xf32, #tpu.memory_space<vmem>>, vector<1x1x22x16xf32>,
    %c0_56 = arith.constant 0 : index
    %c1_57 = arith.constant 1 : index
    %37 = vector.load %arg7[%c0_56, %c1_57] : memref<22x22xf32, #tpu.memory_space<vmem>>, vector<22x16xf32>
    %c0_58 = arith.constant 0 : index
    %c1_59 = arith.constant 1 : index
    %c0_60 = arith.constant 0 : index
    %c0_61 = arith.constant 0 : index
    %38 = vector.load %arg8[%c0_58, %c1_59, %c0_60, %c0_61] : memref<2x7x22x16xf32, #tpu.memory_space<vmem>>, vector<1x1x22x16xf32>
    %39 = vector.shape_cast %38 : vector<1x1x22x16xf32> to vector<22x16xf32>
    %40 = vector.shape_cast %37 : vector<22x16xf32> to vector<1x1x22x16xf32>
    tpu.vector_store %arg8[%c0_58, %c1_59, %c0_60, %c0_61], %40 {strides = array<i32>} : memref<2x7x22x16xf32, #tpu.memory_space<vmem>>, vector<1x1x22x16xf32>,
    %c0_62 = arith.constant 0 : index
    %c2_63 = arith.constant 2 : index
    %41 = vector.load %arg7[%c0_62, %c2_63] : memref<22x22xf32, #tpu.memory_space<vmem>>, vector<22x16xf32>
    %c0_64 = arith.constant 0 : index
    %c2_65 = arith.constant 2 : index
    %c0_66 = arith.constant 0 : index
    %c0_67 = arith.constant 0 : index
    %42 = vector.load %arg8[%c0_64, %c2_65, %c0_66, %c0_67] : memref<2x7x22x16xf32, #tpu.memory_space<vmem>>, vector<1x1x22x16xf32>
    %43 = vector.shape_cast %42 : vector<1x1x22x16xf32> to vector<22x16xf32>
    %44 = vector.shape_cast %41 : vector<22x16xf32> to vector<1x1x22x16xf32>
    tpu.vector_store %arg8[%c0_64, %c2_65, %c0_66, %c0_67], %44 {strides = array<i32>} : memref<2x7x22x16xf32, #tpu.memory_space<vmem>>, vector<1x1x22x16xf32>,
    %c0_68 = arith.constant 0 : index
    %c3_69 = arith.constant 3 : index
    %45 = vector.load %arg7[%c0_68, %c3_69] : memref<22x22xf32, #tpu.memory_space<vmem>>, vector<22x16xf32>
    %c0_70 = arith.constant 0 : index
    %c3_71 = arith.constant 3 : index
    %c0_72 = arith.constant 0 : index
    %c0_73 = arith.constant 0 : index
    %46 = vector.load %arg8[%c0_70, %c3_71, %c0_72, %c0_73] : memref<2x7x22x16xf32, #tpu.memory_space<vmem>>, vector<1x1x22x16xf32>
    %47 = vector.shape_cast %46 : vector<1x1x22x16xf32> to vector<22x16xf32>
    %48 = vector.shape_cast %45 : vector<22x16xf32> to vector<1x1x22x16xf32>
    tpu.vector_store %arg8[%c0_70, %c3_71, %c0_72, %c0_73], %48 {strides = array<i32>} : memref<2x7x22x16xf32, #tpu.memory_space<vmem>>, vector<1x1x22x16xf32>,
    %c0_74 = arith.constant 0 : index
    %c4_75 = arith.constant 4 : index
    %49 = vector.load %arg7[%c0_74, %c4_75] : memref<22x22xf32, #tpu.memory_space<vmem>>, vector<22x16xf32>
    %c0_76 = arith.constant 0 : index
    %c4_77 = arith.constant 4 : index
    %c0_78 = arith.constant 0 : index
    %c0_79 = arith.constant 0 : index
    %50 = vector.load %arg8[%c0_76, %c4_77, %c0_78, %c0_79] : memref<2x7x22x16xf32, #tpu.memory_space<vmem>>, vector<1x1x22x16xf32>
    %51 = vector.shape_cast %50 : vector<1x1x22x16xf32> to vector<22x16xf32>
    %52 = vector.shape_cast %49 : vector<22x16xf32> to vector<1x1x22x16xf32>
    tpu.vector_store %arg8[%c0_76, %c4_77, %c0_78, %c0_79], %52 {strides = array<i32>} : memref<2x7x22x16xf32, #tpu.memory_space<vmem>>, vector<1x1x22x16xf32>,
    %c0_80 = arith.constant 0 : index
    %c5_81 = arith.constant 5 : index
    %53 = vector.load %arg7[%c0_80, %c5_81] : memref<22x22xf32, #tpu.memory_space<vmem>>, vector<22x16xf32>
    %c0_82 = arith.constant 0 : index
    %c5_83 = arith.constant 5 : index
    %c0_84 = arith.constant 0 : index
    %c0_85 = arith.constant 0 : index
    %54 = vector.load %arg8[%c0_82, %c5_83, %c0_84, %c0_85] : memref<2x7x22x16xf32, #tpu.memory_space<vmem>>, vector<1x1x22x16xf32>
    %55 = vector.shape_cast %54 : vector<1x1x22x16xf32> to vector<22x16xf32>
    %56 = vector.shape_cast %53 : vector<22x16xf32> to vector<1x1x22x16xf32>
    tpu.vector_store %arg8[%c0_82, %c5_83, %c0_84, %c0_85], %56 {strides = array<i32>} : memref<2x7x22x16xf32, #tpu.memory_space<vmem>>, vector<1x1x22x16xf32>,
    %c0_86 = arith.constant 0 : index
    %c6_87 = arith.constant 6 : index
    %57 = vector.load %arg7[%c0_86, %c6_87] : memref<22x22xf32, #tpu.memory_space<vmem>>, vector<22x16xf32>
    %c0_88 = arith.constant 0 : index
    %c6_89 = arith.constant 6 : index
    %c0_90 = arith.constant 0 : index
    %c0_91 = arith.constant 0 : index
    %58 = vector.load %arg8[%c0_88, %c6_89, %c0_90, %c0_91] : memref<2x7x22x16xf32, #tpu.memory_space<vmem>>, vector<1x1x22x16xf32>
    %59 = vector.shape_cast %58 : vector<1x1x22x16xf32> to vector<22x16xf32>
    %60 = vector.shape_cast %57 : vector<22x16xf32> to vector<1x1x22x16xf32>
    tpu.vector_store %arg8[%c0_88, %c6_89, %c0_90, %c0_91], %60 {strides = array<i32>} : memref<2x7x22x16xf32, #tpu.memory_space<vmem>>, vector<1x1x22x16xf32>,
    %c0_92 = arith.constant 0 : index
    %c0_93 = arith.constant 0 : index
    %c0_94 = arith.constant 0 : index
    %c0_95 = arith.constant 0 : index
    %61 = vector.load %arg5[%c0_92, %c0_93, %c0_94, %c0_95] : memref<1x1x16x16xf32, #tpu.memory_space<vmem>>, vector<1x1x16x16xf32>
    %62 = vector.shape_cast %61 : vector<1x1x16x16xf32> to vector<16x16xf32>
    %c3_96 = arith.constant 3 : index
    %c3_97 = arith.constant 3 : index
    %63 = vector.load %arg7[%c3_96, %c3_97] : memref<22x22xf32, #tpu.memory_space<vmem>>, vector<16x16xf32>
    tpu.vector_store %arg7[%c3_96, %c3_97], %62 {strides = array<i32>} : memref<22x22xf32, #tpu.memory_space<vmem>>, vector<16x16xf32>,
    %c0_98 = arith.constant 0 : index
    %c0_99 = arith.constant 0 : index
    %c0_100 = arith.constant 0 : index
    %c3_101 = arith.constant 3 : index
    %64 = vector.load %arg5[%c0_98, %c0_99, %c0_100, %c3_101] : memref<1x1x16x16xf32, #tpu.memory_space<vmem>>, vector<1x1x16x1xf32>
    %65 = vector.shape_cast %64 : vector<1x1x16x1xf32> to vector<16x1xf32>
    %c3_102 = arith.constant 3 : index
    %c0_103 = arith.constant 0 : index
    %66 = vector.load %arg7[%c3_102, %c0_103] : memref<22x22xf32, #tpu.memory_space<vmem>>, vector<16x1xf32>
    tpu.vector_store %arg7[%c3_102, %c0_103], %65 {strides = array<i32>} : memref<22x22xf32, #tpu.memory_space<vmem>>, vector<16x1xf32>,
    %c0_104 = arith.constant 0 : index
    %c0_105 = arith.constant 0 : index
    %c0_106 = arith.constant 0 : index
    %c14_107 = arith.constant 14 : index
    %67 = vector.load %arg5[%c0_104, %c0_105, %c0_106, %c14_107] : memref<1x1x16x16xf32, #tpu.memory_space<vmem>>, vector<1x1x16x1xf32>
    %68 = vector.shape_cast %67 : vector<1x1x16x1xf32> to vector<16x1xf32>
    %c3_108 = arith.constant 3 : index
    %c19_109 = arith.constant 19 : index
    %69 = vector.load %arg7[%c3_108, %c19_109] : memref<22x22xf32, #tpu.memory_space<vmem>>, vector<16x1xf32>
    tpu.vector_store %arg7[%c3_108, %c19_109], %68 {strides = array<i32>} : memref<22x22xf32, #tpu.memory_space<vmem>>, vector<16x1xf32>,
    %c0_110 = arith.constant 0 : index
    %c0_111 = arith.constant 0 : index
    %c0_112 = arith.constant 0 : index
    %c2_113 = arith.constant 2 : index
    %70 = vector.load %arg5[%c0_110, %c0_111, %c0_112, %c2_113] : memref<1x1x16x16xf32, #tpu.memory_space<vmem>>, vector<1x1x16x1xf32>
    %71 = vector.shape_cast %70 : vector<1x1x16x1xf32> to vector<16x1xf32>
    %c3_114 = arith.constant 3 : index
    %c1_115 = arith.constant 1 : index
    %72 = vector.load %arg7[%c3_114, %c1_115] : memref<22x22xf32, #tpu.memory_space<vmem>>, vector<16x1xf32>
    tpu.vector_store %arg7[%c3_114, %c1_115], %71 {strides = array<i32>} : memref<22x22xf32, #tpu.memory_space<vmem>>, vector<16x1xf32>,
    %c0_116 = arith.constant 0 : index
    %c0_117 = arith.constant 0 : index
    %c0_118 = arith.constant 0 : index
    %c13_119 = arith.constant 13 : index
    %73 = vector.load %arg5[%c0_116, %c0_117, %c0_118, %c13_119] : memref<1x1x16x16xf32, #tpu.memory_space<vmem>>, vector<1x1x16x1xf32>
    %74 = vector.shape_cast %73 : vector<1x1x16x1xf32> to vector<16x1xf32>
    %c3_120 = arith.constant 3 : index
    %c20_121 = arith.constant 20 : index
    %75 = vector.load %arg7[%c3_120, %c20_121] : memref<22x22xf32, #tpu.memory_space<vmem>>, vector<16x1xf32>
    tpu.vector_store %arg7[%c3_120, %c20_121], %74 {strides = array<i32>} : memref<22x22xf32, #tpu.memory_space<vmem>>, vector<16x1xf32>,
    %c0_122 = arith.constant 0 : index
    %c0_123 = arith.constant 0 : index
    %c0_124 = arith.constant 0 : index
    %c1_125 = arith.constant 1 : index
    %76 = vector.load %arg5[%c0_122, %c0_123, %c0_124, %c1_125] : memref<1x1x16x16xf32, #tpu.memory_space<vmem>>, vector<1x1x16x1xf32>
    %77 = vector.shape_cast %76 : vector<1x1x16x1xf32> to vector<16x1xf32>
    %c3_126 = arith.constant 3 : index
    %c2_127 = arith.constant 2 : index
    %78 = vector.load %arg7[%c3_126, %c2_127] : memref<22x22xf32, #tpu.memory_space<vmem>>, vector<16x1xf32>
    tpu.vector_store %arg7[%c3_126, %c2_127], %77 {strides = array<i32>} : memref<22x22xf32, #tpu.memory_space<vmem>>, vector<16x1xf32>,
    %c0_128 = arith.constant 0 : index
    %c0_129 = arith.constant 0 : index
    %c0_130 = arith.constant 0 : index
    %c12_131 = arith.constant 12 : index
    %79 = vector.load %arg5[%c0_128, %c0_129, %c0_130, %c12_131] : memref<1x1x16x16xf32, #tpu.memory_space<vmem>>, vector<1x1x16x1xf32>
    %80 = vector.shape_cast %79 : vector<1x1x16x1xf32> to vector<16x1xf32>
    %c3_132 = arith.constant 3 : index
    %c21_133 = arith.constant 21 : index
    %81 = vector.load %arg7[%c3_132, %c21_133] : memref<22x22xf32, #tpu.memory_space<vmem>>, vector<16x1xf32>
    tpu.vector_store %arg7[%c3_132, %c21_133], %80 {strides = array<i32>} : memref<22x22xf32, #tpu.memory_space<vmem>>, vector<16x1xf32>,
    %c6_134 = arith.constant 6 : index
    %c0_135 = arith.constant 0 : index
    %82 = vector.load %arg7[%c6_134, %c0_135] : memref<22x22xf32, #tpu.memory_space<vmem>>, vector<1x22xf32>
    %c0_136 = arith.constant 0 : index
    %c0_137 = arith.constant 0 : index
    %83 = vector.load %arg7[%c0_136, %c0_137] : memref<22x22xf32, #tpu.memory_space<vmem>>, vector<1x22xf32>
    tpu.vector_store %arg7[%c0_136, %c0_137], %82 {strides = array<i32>} : memref<22x22xf32, #tpu.memory_space<vmem>>, vector<1x22xf32>,
    %c17_138 = arith.constant 17 : index
    %c0_139 = arith.constant 0 : index
    %84 = vector.load %arg7[%c17_138, %c0_139] : memref<22x22xf32, #tpu.memory_space<vmem>>, vector<1x22xf32>
    %c19_140 = arith.constant 19 : index
    %c0_141 = arith.constant 0 : index
    %85 = vector.load %arg7[%c19_140, %c0_141] : memref<22x22xf32, #tpu.memory_space<vmem>>, vector<1x22xf32>
    tpu.vector_store %arg7[%c19_140, %c0_141], %84 {strides = array<i32>} : memref<22x22xf32, #tpu.memory_space<vmem>>, vector<1x22xf32>,
    %c5_142 = arith.constant 5 : index
    %c0_143 = arith.constant 0 : index
    %86 = vector.load %arg7[%c5_142, %c0_143] : memref<22x22xf32, #tpu.memory_space<vmem>>, vector<1x22xf32>
    %c1_144 = arith.constant 1 : index
    %c0_145 = arith.constant 0 : index
    %87 = vector.load %arg7[%c1_144, %c0_145] : memref<22x22xf32, #tpu.memory_space<vmem>>, vector<1x22xf32>
    tpu.vector_store %arg7[%c1_144, %c0_145], %86 {strides = array<i32>} : memref<22x22xf32, #tpu.memory_space<vmem>>, vector<1x22xf32>,
    %c16_146 = arith.constant 16 : index
    %c0_147 = arith.constant 0 : index
    %88 = vector.load %arg7[%c16_146, %c0_147] : memref<22x22xf32, #tpu.memory_space<vmem>>, vector<1x22xf32>
    %c20_148 = arith.constant 20 : index
    %c0_149 = arith.constant 0 : index
    %89 = vector.load %arg7[%c20_148, %c0_149] : memref<22x22xf32, #tpu.memory_space<vmem>>, vector<1x22xf32>
    tpu.vector_store %arg7[%c20_148, %c0_149], %88 {strides = array<i32>} : memref<22x22xf32, #tpu.memory_space<vmem>>, vector<1x22xf32>,
    %c4_150 = arith.constant 4 : index
    %c0_151 = arith.constant 0 : index
    %90 = vector.load %arg7[%c4_150, %c0_151] : memref<22x22xf32, #tpu.memory_space<vmem>>, vector<1x22xf32>
    %c2_152 = arith.constant 2 : index
    %c0_153 = arith.constant 0 : index
    %91 = vector.load %arg7[%c2_152, %c0_153] : memref<22x22xf32, #tpu.memory_space<vmem>>, vector<1x22xf32>
    tpu.vector_store %arg7[%c2_152, %c0_153], %90 {strides = array<i32>} : memref<22x22xf32, #tpu.memory_space<vmem>>, vector<1x22xf32>,
    %c15_154 = arith.constant 15 : index
    %c0_155 = arith.constant 0 : index
    %92 = vector.load %arg7[%c15_154, %c0_155] : memref<22x22xf32, #tpu.memory_space<vmem>>, vector<1x22xf32>
    %c21_156 = arith.constant 21 : index
    %c0_157 = arith.constant 0 : index
    %93 = vector.load %arg7[%c21_156, %c0_157] : memref<22x22xf32, #tpu.memory_space<vmem>>, vector<1x22xf32>
    tpu.vector_store %arg7[%c21_156, %c0_157], %92 {strides = array<i32>} : memref<22x22xf32, #tpu.memory_space<vmem>>, vector<1x22xf32>,
    %c0_158 = arith.constant 0 : index
    %c0_159 = arith.constant 0 : index
    %94 = vector.load %arg7[%c0_158, %c0_159] : memref<22x22xf32, #tpu.memory_space<vmem>>, vector<22x16xf32>
    %c1_160 = arith.constant 1 : index
    %c0_161 = arith.constant 0 : index
    %c0_162 = arith.constant 0 : index
    %c0_163 = arith.constant 0 : index
    %95 = vector.load %arg8[%c1_160, %c0_161, %c0_162, %c0_163] : memref<2x7x22x16xf32, #tpu.memory_space<vmem>>, vector<1x1x22x16xf32>
    %96 = vector.shape_cast %95 : vector<1x1x22x16xf32> to vector<22x16xf32>
    %97 = vector.shape_cast %94 : vector<22x16xf32> to vector<1x1x22x16xf32>
    tpu.vector_store %arg8[%c1_160, %c0_161, %c0_162, %c0_163], %97 {strides = array<i32>} : memref<2x7x22x16xf32, #tpu.memory_space<vmem>>, vector<1x1x22x16xf32>,
    %c0_164 = arith.constant 0 : index
    %c1_165 = arith.constant 1 : index
    %98 = vector.load %arg7[%c0_164, %c1_165] : memref<22x22xf32, #tpu.memory_space<vmem>>, vector<22x16xf32>
    %c1_166 = arith.constant 1 : index
    %c1_167 = arith.constant 1 : index
    %c0_168 = arith.constant 0 : index
    %c0_169 = arith.constant 0 : index
    %99 = vector.load %arg8[%c1_166, %c1_167, %c0_168, %c0_169] : memref<2x7x22x16xf32, #tpu.memory_space<vmem>>, vector<1x1x22x16xf32>
    %100 = vector.shape_cast %99 : vector<1x1x22x16xf32> to vector<22x16xf32>
    %101 = vector.shape_cast %98 : vector<22x16xf32> to vector<1x1x22x16xf32>
    tpu.vector_store %arg8[%c1_166, %c1_167, %c0_168, %c0_169], %101 {strides = array<i32>} : memref<2x7x22x16xf32, #tpu.memory_space<vmem>>, vector<1x1x22x16xf32>,
    %c0_170 = arith.constant 0 : index
    %c2_171 = arith.constant 2 : index
    %102 = vector.load %arg7[%c0_170, %c2_171] : memref<22x22xf32, #tpu.memory_space<vmem>>, vector<22x16xf32>
    %c1_172 = arith.constant 1 : index
    %c2_173 = arith.constant 2 : index
    %c0_174 = arith.constant 0 : index
    %c0_175 = arith.constant 0 : index
    %103 = vector.load %arg8[%c1_172, %c2_173, %c0_174, %c0_175] : memref<2x7x22x16xf32, #tpu.memory_space<vmem>>, vector<1x1x22x16xf32>
    %104 = vector.shape_cast %103 : vector<1x1x22x16xf32> to vector<22x16xf32>
    %105 = vector.shape_cast %102 : vector<22x16xf32> to vector<1x1x22x16xf32>
    tpu.vector_store %arg8[%c1_172, %c2_173, %c0_174, %c0_175], %105 {strides = array<i32>} : memref<2x7x22x16xf32, #tpu.memory_space<vmem>>, vector<1x1x22x16xf32>,
    %c0_176 = arith.constant 0 : index
    %c3_177 = arith.constant 3 : index
    %106 = vector.load %arg7[%c0_176, %c3_177] : memref<22x22xf32, #tpu.memory_space<vmem>>, vector<22x16xf32>
    %c1_178 = arith.constant 1 : index
    %c3_179 = arith.constant 3 : index
    %c0_180 = arith.constant 0 : index
    %c0_181 = arith.constant 0 : index
    %107 = vector.load %arg8[%c1_178, %c3_179, %c0_180, %c0_181] : memref<2x7x22x16xf32, #tpu.memory_space<vmem>>, vector<1x1x22x16xf32>
    %108 = vector.shape_cast %107 : vector<1x1x22x16xf32> to vector<22x16xf32>
    %109 = vector.shape_cast %106 : vector<22x16xf32> to vector<1x1x22x16xf32>
    tpu.vector_store %arg8[%c1_178, %c3_179, %c0_180, %c0_181], %109 {strides = array<i32>} : memref<2x7x22x16xf32, #tpu.memory_space<vmem>>, vector<1x1x22x16xf32>,
    %c0_182 = arith.constant 0 : index
    %c4_183 = arith.constant 4 : index
    %110 = vector.load %arg7[%c0_182, %c4_183] : memref<22x22xf32, #tpu.memory_space<vmem>>, vector<22x16xf32>
    %c1_184 = arith.constant 1 : index
    %c4_185 = arith.constant 4 : index
    %c0_186 = arith.constant 0 : index
    %c0_187 = arith.constant 0 : index
    %111 = vector.load %arg8[%c1_184, %c4_185, %c0_186, %c0_187] : memref<2x7x22x16xf32, #tpu.memory_space<vmem>>, vector<1x1x22x16xf32>
    %112 = vector.shape_cast %111 : vector<1x1x22x16xf32> to vector<22x16xf32>
    %113 = vector.shape_cast %110 : vector<22x16xf32> to vector<1x1x22x16xf32>
    tpu.vector_store %arg8[%c1_184, %c4_185, %c0_186, %c0_187], %113 {strides = array<i32>} : memref<2x7x22x16xf32, #tpu.memory_space<vmem>>, vector<1x1x22x16xf32>,
    %c0_188 = arith.constant 0 : index
    %c5_189 = arith.constant 5 : index
    %114 = vector.load %arg7[%c0_188, %c5_189] : memref<22x22xf32, #tpu.memory_space<vmem>>, vector<22x16xf32>
    %c1_190 = arith.constant 1 : index
    %c5_191 = arith.constant 5 : index
    %c0_192 = arith.constant 0 : index
    %c0_193 = arith.constant 0 : index
    %115 = vector.load %arg8[%c1_190, %c5_191, %c0_192, %c0_193] : memref<2x7x22x16xf32, #tpu.memory_space<vmem>>, vector<1x1x22x16xf32>
    %116 = vector.shape_cast %115 : vector<1x1x22x16xf32> to vector<22x16xf32>
    %117 = vector.shape_cast %114 : vector<22x16xf32> to vector<1x1x22x16xf32>
    tpu.vector_store %arg8[%c1_190, %c5_191, %c0_192, %c0_193], %117 {strides = array<i32>} : memref<2x7x22x16xf32, #tpu.memory_space<vmem>>, vector<1x1x22x16xf32>,
    %c0_194 = arith.constant 0 : index
    %c6_195 = arith.constant 6 : index
    %118 = vector.load %arg7[%c0_194, %c6_195] : memref<22x22xf32, #tpu.memory_space<vmem>>, vector<22x16xf32>
    %c1_196 = arith.constant 1 : index
    %c6_197 = arith.constant 6 : index
    %c0_198 = arith.constant 0 : index
    %c0_199 = arith.constant 0 : index
    %119 = vector.load %arg8[%c1_196, %c6_197, %c0_198, %c0_199] : memref<2x7x22x16xf32, #tpu.memory_space<vmem>>, vector<1x1x22x16xf32>
    %120 = vector.shape_cast %119 : vector<1x1x22x16xf32> to vector<22x16xf32>
    %121 = vector.shape_cast %118 : vector<22x16xf32> to vector<1x1x22x16xf32>
    tpu.vector_store %arg8[%c1_196, %c6_197, %c0_198, %c0_199], %121 {strides = array<i32>} : memref<2x7x22x16xf32, #tpu.memory_space<vmem>>, vector<1x1x22x16xf32>,
    %c98_i32 = arith.constant 98 : i32
    %122 = arith.muli %arg1, %c98_i32 : i32
    %c0_i32 = arith.constant 0 : i32
    %123 = arith.addi %122, %c0_i32 : i32
    %124 = arith.index_cast %123 : i32 to index
    %125 = memref.load %arg2[%124] : memref<392xf32, #tpu.memory_space<smem>>
    %c1_i32 = arith.constant 1 : i32
    %126 = arith.addi %122, %c1_i32 : i32
    %127 = arith.index_cast %126 : i32 to index
    %128 = memref.load %arg2[%127] : memref<392xf32, #tpu.memory_space<smem>>
    %c2_i32 = arith.constant 2 : i32
    %129 = arith.addi %122, %c2_i32 : i32
    %130 = arith.index_cast %129 : i32 to index
    %131 = memref.load %arg2[%130] : memref<392xf32, #tpu.memory_space<smem>>
    %c3_i32 = arith.constant 3 : i32
    %132 = arith.addi %122, %c3_i32 : i32
    %133 = arith.index_cast %132 : i32 to index
    %134 = memref.load %arg2[%133] : memref<392xf32, #tpu.memory_space<smem>>
    %c4_i32 = arith.constant 4 : i32
    %135 = arith.addi %122, %c4_i32 : i32
    %136 = arith.index_cast %135 : i32 to index
    %137 = memref.load %arg2[%136] : memref<392xf32, #tpu.memory_space<smem>>
    %c5_i32 = arith.constant 5 : i32
    %138 = arith.addi %122, %c5_i32 : i32
    %139 = arith.index_cast %138 : i32 to index
    %140 = memref.load %arg2[%139] : memref<392xf32, #tpu.memory_space<smem>>
    %c6_i32 = arith.constant 6 : i32
    %141 = arith.addi %122, %c6_i32 : i32
    %142 = arith.index_cast %141 : i32 to index
    %143 = memref.load %arg2[%142] : memref<392xf32, #tpu.memory_space<smem>>
    %c7_i32 = arith.constant 7 : i32
    %144 = arith.addi %122, %c7_i32 : i32
    %145 = arith.index_cast %144 : i32 to index
    %146 = memref.load %arg2[%145] : memref<392xf32, #tpu.memory_space<smem>>
    %c8_i32 = arith.constant 8 : i32
    %147 = arith.addi %122, %c8_i32 : i32
    %148 = arith.index_cast %147 : i32 to index
    %149 = memref.load %arg2[%148] : memref<392xf32, #tpu.memory_space<smem>>
    %c9_i32 = arith.constant 9 : i32
    %150 = arith.addi %122, %c9_i32 : i32
    %151 = arith.index_cast %150 : i32 to index
    %152 = memref.load %arg2[%151] : memref<392xf32, #tpu.memory_space<smem>>
    %c10_i32 = arith.constant 10 : i32
    %153 = arith.addi %122, %c10_i32 : i32
    %154 = arith.index_cast %153 : i32 to index
    %155 = memref.load %arg2[%154] : memref<392xf32, #tpu.memory_space<smem>>
    %c11_i32 = arith.constant 11 : i32
    %156 = arith.addi %122, %c11_i32 : i32
    %157 = arith.index_cast %156 : i32 to index
    %158 = memref.load %arg2[%157] : memref<392xf32, #tpu.memory_space<smem>>
    %c12_i32 = arith.constant 12 : i32
    %159 = arith.addi %122, %c12_i32 : i32
    %160 = arith.index_cast %159 : i32 to index
    %161 = memref.load %arg2[%160] : memref<392xf32, #tpu.memory_space<smem>>
    %c13_i32 = arith.constant 13 : i32
    %162 = arith.addi %122, %c13_i32 : i32
    %163 = arith.index_cast %162 : i32 to index
    %164 = memref.load %arg2[%163] : memref<392xf32, #tpu.memory_space<smem>>
    %c14_i32 = arith.constant 14 : i32
    %165 = arith.addi %122, %c14_i32 : i32
    %166 = arith.index_cast %165 : i32 to index
    %167 = memref.load %arg2[%166] : memref<392xf32, #tpu.memory_space<smem>>
    %c15_i32 = arith.constant 15 : i32
    %168 = arith.addi %122, %c15_i32 : i32
    %169 = arith.index_cast %168 : i32 to index
    %170 = memref.load %arg2[%169] : memref<392xf32, #tpu.memory_space<smem>>
    %c16_i32 = arith.constant 16 : i32
    %171 = arith.addi %122, %c16_i32 : i32
    %172 = arith.index_cast %171 : i32 to index
    %173 = memref.load %arg2[%172] : memref<392xf32, #tpu.memory_space<smem>>
    %c17_i32 = arith.constant 17 : i32
    %174 = arith.addi %122, %c17_i32 : i32
    %175 = arith.index_cast %174 : i32 to index
    %176 = memref.load %arg2[%175] : memref<392xf32, #tpu.memory_space<smem>>
    %c18_i32 = arith.constant 18 : i32
    %177 = arith.addi %122, %c18_i32 : i32
    %178 = arith.index_cast %177 : i32 to index
    %179 = memref.load %arg2[%178] : memref<392xf32, #tpu.memory_space<smem>>
    %c19_i32 = arith.constant 19 : i32
    %180 = arith.addi %122, %c19_i32 : i32
    %181 = arith.index_cast %180 : i32 to index
    %182 = memref.load %arg2[%181] : memref<392xf32, #tpu.memory_space<smem>>
    %c20_i32 = arith.constant 20 : i32
    %183 = arith.addi %122, %c20_i32 : i32
    %184 = arith.index_cast %183 : i32 to index
    %185 = memref.load %arg2[%184] : memref<392xf32, #tpu.memory_space<smem>>
    %c21_i32 = arith.constant 21 : i32
    %186 = arith.addi %122, %c21_i32 : i32
    %187 = arith.index_cast %186 : i32 to index
    %188 = memref.load %arg2[%187] : memref<392xf32, #tpu.memory_space<smem>>
    %c22_i32 = arith.constant 22 : i32
    %189 = arith.addi %122, %c22_i32 : i32
    %190 = arith.index_cast %189 : i32 to index
    %191 = memref.load %arg2[%190] : memref<392xf32, #tpu.memory_space<smem>>
    %c23_i32 = arith.constant 23 : i32
    %192 = arith.addi %122, %c23_i32 : i32
    %193 = arith.index_cast %192 : i32 to index
    %194 = memref.load %arg2[%193] : memref<392xf32, #tpu.memory_space<smem>>
    %c24_i32 = arith.constant 24 : i32
    %195 = arith.addi %122, %c24_i32 : i32
    %196 = arith.index_cast %195 : i32 to index
    %197 = memref.load %arg2[%196] : memref<392xf32, #tpu.memory_space<smem>>
    %c25_i32 = arith.constant 25 : i32
    %198 = arith.addi %122, %c25_i32 : i32
    %199 = arith.index_cast %198 : i32 to index
    %200 = memref.load %arg2[%199] : memref<392xf32, #tpu.memory_space<smem>>
    %c26_i32 = arith.constant 26 : i32
    %201 = arith.addi %122, %c26_i32 : i32
    %202 = arith.index_cast %201 : i32 to index
    %203 = memref.load %arg2[%202] : memref<392xf32, #tpu.memory_space<smem>>
    %c27_i32 = arith.constant 27 : i32
    %204 = arith.addi %122, %c27_i32 : i32
    %205 = arith.index_cast %204 : i32 to index
    %206 = memref.load %arg2[%205] : memref<392xf32, #tpu.memory_space<smem>>
    %c28_i32 = arith.constant 28 : i32
    %207 = arith.addi %122, %c28_i32 : i32
    %208 = arith.index_cast %207 : i32 to index
    %209 = memref.load %arg2[%208] : memref<392xf32, #tpu.memory_space<smem>>
    %c29_i32 = arith.constant 29 : i32
    %210 = arith.addi %122, %c29_i32 : i32
    %211 = arith.index_cast %210 : i32 to index
    %212 = memref.load %arg2[%211] : memref<392xf32, #tpu.memory_space<smem>>
    %c30_i32 = arith.constant 30 : i32
    %213 = arith.addi %122, %c30_i32 : i32
    %214 = arith.index_cast %213 : i32 to index
    %215 = memref.load %arg2[%214] : memref<392xf32, #tpu.memory_space<smem>>
    %c31_i32 = arith.constant 31 : i32
    %216 = arith.addi %122, %c31_i32 : i32
    %217 = arith.index_cast %216 : i32 to index
    %218 = memref.load %arg2[%217] : memref<392xf32, #tpu.memory_space<smem>>
    %c32_i32 = arith.constant 32 : i32
    %219 = arith.addi %122, %c32_i32 : i32
    %220 = arith.index_cast %219 : i32 to index
    %221 = memref.load %arg2[%220] : memref<392xf32, #tpu.memory_space<smem>>
    %c33_i32 = arith.constant 33 : i32
    %222 = arith.addi %122, %c33_i32 : i32
    %223 = arith.index_cast %222 : i32 to index
    %224 = memref.load %arg2[%223] : memref<392xf32, #tpu.memory_space<smem>>
    %c34_i32 = arith.constant 34 : i32
    %225 = arith.addi %122, %c34_i32 : i32
    %226 = arith.index_cast %225 : i32 to index
    %227 = memref.load %arg2[%226] : memref<392xf32, #tpu.memory_space<smem>>
    %c35_i32 = arith.constant 35 : i32
    %228 = arith.addi %122, %c35_i32 : i32
    %229 = arith.index_cast %228 : i32 to index
    %230 = memref.load %arg2[%229] : memref<392xf32, #tpu.memory_space<smem>>
    %c36_i32 = arith.constant 36 : i32
    %231 = arith.addi %122, %c36_i32 : i32
    %232 = arith.index_cast %231 : i32 to index
    %233 = memref.load %arg2[%232] : memref<392xf32, #tpu.memory_space<smem>>
    %c37_i32 = arith.constant 37 : i32
    %234 = arith.addi %122, %c37_i32 : i32
    %235 = arith.index_cast %234 : i32 to index
    %236 = memref.load %arg2[%235] : memref<392xf32, #tpu.memory_space<smem>>
    %c38_i32 = arith.constant 38 : i32
    %237 = arith.addi %122, %c38_i32 : i32
    %238 = arith.index_cast %237 : i32 to index
    %239 = memref.load %arg2[%238] : memref<392xf32, #tpu.memory_space<smem>>
    %c39_i32 = arith.constant 39 : i32
    %240 = arith.addi %122, %c39_i32 : i32
    %241 = arith.index_cast %240 : i32 to index
    %242 = memref.load %arg2[%241] : memref<392xf32, #tpu.memory_space<smem>>
    %c40_i32 = arith.constant 40 : i32
    %243 = arith.addi %122, %c40_i32 : i32
    %244 = arith.index_cast %243 : i32 to index
    %245 = memref.load %arg2[%244] : memref<392xf32, #tpu.memory_space<smem>>
    %c41_i32 = arith.constant 41 : i32
    %246 = arith.addi %122, %c41_i32 : i32
    %247 = arith.index_cast %246 : i32 to index
    %248 = memref.load %arg2[%247] : memref<392xf32, #tpu.memory_space<smem>>
    %c42_i32 = arith.constant 42 : i32
    %249 = arith.addi %122, %c42_i32 : i32
    %250 = arith.index_cast %249 : i32 to index
    %251 = memref.load %arg2[%250] : memref<392xf32, #tpu.memory_space<smem>>
    %c43_i32 = arith.constant 43 : i32
    %252 = arith.addi %122, %c43_i32 : i32
    %253 = arith.index_cast %252 : i32 to index
    %254 = memref.load %arg2[%253] : memref<392xf32, #tpu.memory_space<smem>>
    %c44_i32 = arith.constant 44 : i32
    %255 = arith.addi %122, %c44_i32 : i32
    %256 = arith.index_cast %255 : i32 to index
    %257 = memref.load %arg2[%256] : memref<392xf32, #tpu.memory_space<smem>>
    %c45_i32 = arith.constant 45 : i32
    %258 = arith.addi %122, %c45_i32 : i32
    %259 = arith.index_cast %258 : i32 to index
    %260 = memref.load %arg2[%259] : memref<392xf32, #tpu.memory_space<smem>>
    %c46_i32 = arith.constant 46 : i32
    %261 = arith.addi %122, %c46_i32 : i32
    %262 = arith.index_cast %261 : i32 to index
    %263 = memref.load %arg2[%262] : memref<392xf32, #tpu.memory_space<smem>>
    %c47_i32 = arith.constant 47 : i32
    %264 = arith.addi %122, %c47_i32 : i32
    %265 = arith.index_cast %264 : i32 to index
    %266 = memref.load %arg2[%265] : memref<392xf32, #tpu.memory_space<smem>>
    %c48_i32 = arith.constant 48 : i32
    %267 = arith.addi %122, %c48_i32 : i32
    %268 = arith.index_cast %267 : i32 to index
    %269 = memref.load %arg2[%268] : memref<392xf32, #tpu.memory_space<smem>>
    %c49_i32 = arith.constant 49 : i32
    %270 = arith.addi %122, %c49_i32 : i32
    %271 = arith.index_cast %270 : i32 to index
    %272 = memref.load %arg2[%271] : memref<392xf32, #tpu.memory_space<smem>>
    %c50_i32 = arith.constant 50 : i32
    %273 = arith.addi %122, %c50_i32 : i32
    %274 = arith.index_cast %273 : i32 to index
    %275 = memref.load %arg2[%274] : memref<392xf32, #tpu.memory_space<smem>>
    %c51_i32 = arith.constant 51 : i32
    %276 = arith.addi %122, %c51_i32 : i32
    %277 = arith.index_cast %276 : i32 to index
    %278 = memref.load %arg2[%277] : memref<392xf32, #tpu.memory_space<smem>>
    %c52_i32 = arith.constant 52 : i32
    %279 = arith.addi %122, %c52_i32 : i32
    %280 = arith.index_cast %279 : i32 to index
    %281 = memref.load %arg2[%280] : memref<392xf32, #tpu.memory_space<smem>>
    %c53_i32 = arith.constant 53 : i32
    %282 = arith.addi %122, %c53_i32 : i32
    %283 = arith.index_cast %282 : i32 to index
    %284 = memref.load %arg2[%283] : memref<392xf32, #tpu.memory_space<smem>>
    %c54_i32 = arith.constant 54 : i32
    %285 = arith.addi %122, %c54_i32 : i32
    %286 = arith.index_cast %285 : i32 to index
    %287 = memref.load %arg2[%286] : memref<392xf32, #tpu.memory_space<smem>>
    %c55_i32 = arith.constant 55 : i32
    %288 = arith.addi %122, %c55_i32 : i32
    %289 = arith.index_cast %288 : i32 to index
    %290 = memref.load %arg2[%289] : memref<392xf32, #tpu.memory_space<smem>>
    %c56_i32 = arith.constant 56 : i32
    %291 = arith.addi %122, %c56_i32 : i32
    %292 = arith.index_cast %291 : i32 to index
    %293 = memref.load %arg2[%292] : memref<392xf32, #tpu.memory_space<smem>>
    %c57_i32 = arith.constant 57 : i32
    %294 = arith.addi %122, %c57_i32 : i32
    %295 = arith.index_cast %294 : i32 to index
    %296 = memref.load %arg2[%295] : memref<392xf32, #tpu.memory_space<smem>>
    %c58_i32 = arith.constant 58 : i32
    %297 = arith.addi %122, %c58_i32 : i32
    %298 = arith.index_cast %297 : i32 to index
    %299 = memref.load %arg2[%298] : memref<392xf32, #tpu.memory_space<smem>>
    %c59_i32 = arith.constant 59 : i32
    %300 = arith.addi %122, %c59_i32 : i32
    %301 = arith.index_cast %300 : i32 to index
    %302 = memref.load %arg2[%301] : memref<392xf32, #tpu.memory_space<smem>>
    %c60_i32 = arith.constant 60 : i32
    %303 = arith.addi %122, %c60_i32 : i32
    %304 = arith.index_cast %303 : i32 to index
    %305 = memref.load %arg2[%304] : memref<392xf32, #tpu.memory_space<smem>>
    %c61_i32 = arith.constant 61 : i32
    %306 = arith.addi %122, %c61_i32 : i32
    %307 = arith.index_cast %306 : i32 to index
    %308 = memref.load %arg2[%307] : memref<392xf32, #tpu.memory_space<smem>>
    %c62_i32 = arith.constant 62 : i32
    %309 = arith.addi %122, %c62_i32 : i32
    %310 = arith.index_cast %309 : i32 to index
    %311 = memref.load %arg2[%310] : memref<392xf32, #tpu.memory_space<smem>>
    %c63_i32 = arith.constant 63 : i32
    %312 = arith.addi %122, %c63_i32 : i32
    %313 = arith.index_cast %312 : i32 to index
    %314 = memref.load %arg2[%313] : memref<392xf32, #tpu.memory_space<smem>>
    %c64_i32 = arith.constant 64 : i32
    %315 = arith.addi %122, %c64_i32 : i32
    %316 = arith.index_cast %315 : i32 to index
    %317 = memref.load %arg2[%316] : memref<392xf32, #tpu.memory_space<smem>>
    %c65_i32 = arith.constant 65 : i32
    %318 = arith.addi %122, %c65_i32 : i32
    %319 = arith.index_cast %318 : i32 to index
    %320 = memref.load %arg2[%319] : memref<392xf32, #tpu.memory_space<smem>>
    %c66_i32 = arith.constant 66 : i32
    %321 = arith.addi %122, %c66_i32 : i32
    %322 = arith.index_cast %321 : i32 to index
    %323 = memref.load %arg2[%322] : memref<392xf32, #tpu.memory_space<smem>>
    %c67_i32 = arith.constant 67 : i32
    %324 = arith.addi %122, %c67_i32 : i32
    %325 = arith.index_cast %324 : i32 to index
    %326 = memref.load %arg2[%325] : memref<392xf32, #tpu.memory_space<smem>>
    %c68_i32 = arith.constant 68 : i32
    %327 = arith.addi %122, %c68_i32 : i32
    %328 = arith.index_cast %327 : i32 to index
    %329 = memref.load %arg2[%328] : memref<392xf32, #tpu.memory_space<smem>>
    %c69_i32 = arith.constant 69 : i32
    %330 = arith.addi %122, %c69_i32 : i32
    %331 = arith.index_cast %330 : i32 to index
    %332 = memref.load %arg2[%331] : memref<392xf32, #tpu.memory_space<smem>>
    %c70_i32 = arith.constant 70 : i32
    %333 = arith.addi %122, %c70_i32 : i32
    %334 = arith.index_cast %333 : i32 to index
    %335 = memref.load %arg2[%334] : memref<392xf32, #tpu.memory_space<smem>>
    %c71_i32 = arith.constant 71 : i32
    %336 = arith.addi %122, %c71_i32 : i32
    %337 = arith.index_cast %336 : i32 to index
    %338 = memref.load %arg2[%337] : memref<392xf32, #tpu.memory_space<smem>>
    %c72_i32 = arith.constant 72 : i32
    %339 = arith.addi %122, %c72_i32 : i32
    %340 = arith.index_cast %339 : i32 to index
    %341 = memref.load %arg2[%340] : memref<392xf32, #tpu.memory_space<smem>>
    %c73_i32 = arith.constant 73 : i32
    %342 = arith.addi %122, %c73_i32 : i32
    %343 = arith.index_cast %342 : i32 to index
    %344 = memref.load %arg2[%343] : memref<392xf32, #tpu.memory_space<smem>>
    %c74_i32 = arith.constant 74 : i32
    %345 = arith.addi %122, %c74_i32 : i32
    %346 = arith.index_cast %345 : i32 to index
    %347 = memref.load %arg2[%346] : memref<392xf32, #tpu.memory_space<smem>>
    %c75_i32 = arith.constant 75 : i32
    %348 = arith.addi %122, %c75_i32 : i32
    %349 = arith.index_cast %348 : i32 to index
    %350 = memref.load %arg2[%349] : memref<392xf32, #tpu.memory_space<smem>>
    %c76_i32 = arith.constant 76 : i32
    %351 = arith.addi %122, %c76_i32 : i32
    %352 = arith.index_cast %351 : i32 to index
    %353 = memref.load %arg2[%352] : memref<392xf32, #tpu.memory_space<smem>>
    %c77_i32 = arith.constant 77 : i32
    %354 = arith.addi %122, %c77_i32 : i32
    %355 = arith.index_cast %354 : i32 to index
    %356 = memref.load %arg2[%355] : memref<392xf32, #tpu.memory_space<smem>>
    %c78_i32 = arith.constant 78 : i32
    %357 = arith.addi %122, %c78_i32 : i32
    %358 = arith.index_cast %357 : i32 to index
    %359 = memref.load %arg2[%358] : memref<392xf32, #tpu.memory_space<smem>>
    %c79_i32 = arith.constant 79 : i32
    %360 = arith.addi %122, %c79_i32 : i32
    %361 = arith.index_cast %360 : i32 to index
    %362 = memref.load %arg2[%361] : memref<392xf32, #tpu.memory_space<smem>>
    %c80_i32 = arith.constant 80 : i32
    %363 = arith.addi %122, %c80_i32 : i32
    %364 = arith.index_cast %363 : i32 to index
    %365 = memref.load %arg2[%364] : memref<392xf32, #tpu.memory_space<smem>>
    %c81_i32 = arith.constant 81 : i32
    %366 = arith.addi %122, %c81_i32 : i32
    %367 = arith.index_cast %366 : i32 to index
    %368 = memref.load %arg2[%367] : memref<392xf32, #tpu.memory_space<smem>>
    %c82_i32 = arith.constant 82 : i32
    %369 = arith.addi %122, %c82_i32 : i32
    %370 = arith.index_cast %369 : i32 to index
    %371 = memref.load %arg2[%370] : memref<392xf32, #tpu.memory_space<smem>>
    %c83_i32 = arith.constant 83 : i32
    %372 = arith.addi %122, %c83_i32 : i32
    %373 = arith.index_cast %372 : i32 to index
    %374 = memref.load %arg2[%373] : memref<392xf32, #tpu.memory_space<smem>>
    %c84_i32 = arith.constant 84 : i32
    %375 = arith.addi %122, %c84_i32 : i32
    %376 = arith.index_cast %375 : i32 to index
    %377 = memref.load %arg2[%376] : memref<392xf32, #tpu.memory_space<smem>>
    %c85_i32 = arith.constant 85 : i32
    %378 = arith.addi %122, %c85_i32 : i32
    %379 = arith.index_cast %378 : i32 to index
    %380 = memref.load %arg2[%379] : memref<392xf32, #tpu.memory_space<smem>>
    %c86_i32 = arith.constant 86 : i32
    %381 = arith.addi %122, %c86_i32 : i32
    %382 = arith.index_cast %381 : i32 to index
    %383 = memref.load %arg2[%382] : memref<392xf32, #tpu.memory_space<smem>>
    %c87_i32 = arith.constant 87 : i32
    %384 = arith.addi %122, %c87_i32 : i32
    %385 = arith.index_cast %384 : i32 to index
    %386 = memref.load %arg2[%385] : memref<392xf32, #tpu.memory_space<smem>>
    %c88_i32 = arith.constant 88 : i32
    %387 = arith.addi %122, %c88_i32 : i32
    %388 = arith.index_cast %387 : i32 to index
    %389 = memref.load %arg2[%388] : memref<392xf32, #tpu.memory_space<smem>>
    %c89_i32 = arith.constant 89 : i32
    %390 = arith.addi %122, %c89_i32 : i32
    %391 = arith.index_cast %390 : i32 to index
    %392 = memref.load %arg2[%391] : memref<392xf32, #tpu.memory_space<smem>>
    %c90_i32 = arith.constant 90 : i32
    %393 = arith.addi %122, %c90_i32 : i32
    %394 = arith.index_cast %393 : i32 to index
    %395 = memref.load %arg2[%394] : memref<392xf32, #tpu.memory_space<smem>>
    %c91_i32 = arith.constant 91 : i32
    %396 = arith.addi %122, %c91_i32 : i32
    %397 = arith.index_cast %396 : i32 to index
    %398 = memref.load %arg2[%397] : memref<392xf32, #tpu.memory_space<smem>>
    %c92_i32 = arith.constant 92 : i32
    %399 = arith.addi %122, %c92_i32 : i32
    %400 = arith.index_cast %399 : i32 to index
    %401 = memref.load %arg2[%400] : memref<392xf32, #tpu.memory_space<smem>>
    %c93_i32 = arith.constant 93 : i32
    %402 = arith.addi %122, %c93_i32 : i32
    %403 = arith.index_cast %402 : i32 to index
    %404 = memref.load %arg2[%403] : memref<392xf32, #tpu.memory_space<smem>>
    %c94_i32 = arith.constant 94 : i32
    %405 = arith.addi %122, %c94_i32 : i32
    %406 = arith.index_cast %405 : i32 to index
    %407 = memref.load %arg2[%406] : memref<392xf32, #tpu.memory_space<smem>>
    %c95_i32 = arith.constant 95 : i32
    %408 = arith.addi %122, %c95_i32 : i32
    %409 = arith.index_cast %408 : i32 to index
    %410 = memref.load %arg2[%409] : memref<392xf32, #tpu.memory_space<smem>>
    %c96_i32 = arith.constant 96 : i32
    %411 = arith.addi %122, %c96_i32 : i32
    %412 = arith.index_cast %411 : i32 to index
    %413 = memref.load %arg2[%412] : memref<392xf32, #tpu.memory_space<smem>>
    %c97_i32 = arith.constant 97 : i32
    %414 = arith.addi %122, %c97_i32 : i32
    %415 = arith.index_cast %414 : i32 to index
    %416 = memref.load %arg2[%415] : memref<392xf32, #tpu.memory_space<smem>>
    %417 = arith.index_cast %arg1 : i32 to index
    %418 = memref.load %arg3[%417] : memref<4xf32, #tpu.memory_space<smem>>
    %cst = arith.constant 0.000000e+00 : f32
    %419 = vector.broadcast %cst : f32 to vector<16x16xf32>
    %cst_200 = arith.constant 0.000000e+00 : f32
    %420 = vector.broadcast %cst_200 : f32 to vector<16x16xf32>
    %cst_201 = arith.constant 0.000000e+00 : f32
    %421 = vector.broadcast %cst_201 : f32 to vector<16x16xf32>
    %cst_202 = arith.constant 0.000000e+00 : f32
    %422 = vector.broadcast %cst_202 : f32 to vector<16x16xf32>
    %c0_203 = arith.constant 0 : index
    %c0_204 = arith.constant 0 : index
    %c0_205 = arith.constant 0 : index
    %c0_206 = arith.constant 0 : index
    %423 = vector.load %arg8[%c0_203, %c0_204, %c0_205, %c0_206] : memref<2x7x22x16xf32, #tpu.memory_space<vmem>>, vector<1x1x16x16xf32>
    %424 = vector.shape_cast %423 : vector<1x1x16x16xf32> to vector<16x16xf32>
    %425 = vector.broadcast %125 : f32 to vector<16x16xf32>
    %426 = arith.mulf %424, %425 : vector<16x16xf32>
    %427 = arith.addf %419, %426 : vector<16x16xf32>
    %c0_207 = arith.constant 0 : index
    %c1_208 = arith.constant 1 : index
    %c0_209 = arith.constant 0 : index
    %c0_210 = arith.constant 0 : index
    %428 = vector.load %arg8[%c0_207, %c1_208, %c0_209, %c0_210] : memref<2x7x22x16xf32, #tpu.memory_space<vmem>>, vector<1x1x16x16xf32>
    %429 = vector.shape_cast %428 : vector<1x1x16x16xf32> to vector<16x16xf32>
    %430 = vector.broadcast %128 : f32 to vector<16x16xf32>
    %431 = arith.mulf %429, %430 : vector<16x16xf32>
    %432 = arith.addf %420, %431 : vector<16x16xf32>
    %c0_211 = arith.constant 0 : index
    %c2_212 = arith.constant 2 : index
    %c0_213 = arith.constant 0 : index
    %c0_214 = arith.constant 0 : index
    %433 = vector.load %arg8[%c0_211, %c2_212, %c0_213, %c0_214] : memref<2x7x22x16xf32, #tpu.memory_space<vmem>>, vector<1x1x16x16xf32>
    %434 = vector.shape_cast %433 : vector<1x1x16x16xf32> to vector<16x16xf32>
    %435 = vector.broadcast %131 : f32 to vector<16x16xf32>
    %436 = arith.mulf %434, %435 : vector<16x16xf32>
    %437 = arith.addf %421, %436 : vector<16x16xf32>
    %c0_215 = arith.constant 0 : index
    %c3_216 = arith.constant 3 : index
    %c0_217 = arith.constant 0 : index
    %c0_218 = arith.constant 0 : index
    %438 = vector.load %arg8[%c0_215, %c3_216, %c0_217, %c0_218] : memref<2x7x22x16xf32, #tpu.memory_space<vmem>>, vector<1x1x16x16xf32>
    %439 = vector.shape_cast %438 : vector<1x1x16x16xf32> to vector<16x16xf32>
    %440 = vector.broadcast %134 : f32 to vector<16x16xf32>
    %441 = arith.mulf %439, %440 : vector<16x16xf32>
    %442 = arith.addf %422, %441 : vector<16x16xf32>
    %c0_219 = arith.constant 0 : index
    %c4_220 = arith.constant 4 : index
    %c0_221 = arith.constant 0 : index
    %c0_222 = arith.constant 0 : index
    %443 = vector.load %arg8[%c0_219, %c4_220, %c0_221, %c0_222] : memref<2x7x22x16xf32, #tpu.memory_space<vmem>>, vector<1x1x16x16xf32>
    %444 = vector.shape_cast %443 : vector<1x1x16x16xf32> to vector<16x16xf32>
    %445 = vector.broadcast %137 : f32 to vector<16x16xf32>
    %446 = arith.mulf %444, %445 : vector<16x16xf32>
    %447 = arith.addf %427, %446 : vector<16x16xf32>
    %c0_223 = arith.constant 0 : index
    %c5_224 = arith.constant 5 : index
    %c0_225 = arith.constant 0 : index
    %c0_226 = arith.constant 0 : index
    %448 = vector.load %arg8[%c0_223, %c5_224, %c0_225, %c0_226] : memref<2x7x22x16xf32, #tpu.memory_space<vmem>>, vector<1x1x16x16xf32>
    %449 = vector.shape_cast %448 : vector<1x1x16x16xf32> to vector<16x16xf32>
    %450 = vector.broadcast %140 : f32 to vector<16x16xf32>
    %451 = arith.mulf %449, %450 : vector<16x16xf32>
    %452 = arith.addf %432, %451 : vector<16x16xf32>
    %c0_227 = arith.constant 0 : index
    %c6_228 = arith.constant 6 : index
    %c0_229 = arith.constant 0 : index
    %c0_230 = arith.constant 0 : index
    %453 = vector.load %arg8[%c0_227, %c6_228, %c0_229, %c0_230] : memref<2x7x22x16xf32, #tpu.memory_space<vmem>>, vector<1x1x16x16xf32>
    %454 = vector.shape_cast %453 : vector<1x1x16x16xf32> to vector<16x16xf32>
    %455 = vector.broadcast %143 : f32 to vector<16x16xf32>
    %456 = arith.mulf %454, %455 : vector<16x16xf32>
    %457 = arith.addf %437, %456 : vector<16x16xf32>
    %c0_231 = arith.constant 0 : index
    %c0_232 = arith.constant 0 : index
    %c1_233 = arith.constant 1 : index
    %c0_234 = arith.constant 0 : index
    %458 = vector.load %arg8[%c0_231, %c0_232, %c1_233, %c0_234] : memref<2x7x22x16xf32, #tpu.memory_space<vmem>>, vector<1x1x16x16xf32>
    %459 = vector.shape_cast %458 : vector<1x1x16x16xf32> to vector<16x16xf32>
    %460 = vector.broadcast %146 : f32 to vector<16x16xf32>
    %461 = arith.mulf %459, %460 : vector<16x16xf32>
    %462 = arith.addf %442, %461 : vector<16x16xf32>
    %c0_235 = arith.constant 0 : index
    %c1_236 = arith.constant 1 : index
    %c1_237 = arith.constant 1 : index
    %c0_238 = arith.constant 0 : index
    %463 = vector.load %arg8[%c0_235, %c1_236, %c1_237, %c0_238] : memref<2x7x22x16xf32, #tpu.memory_space<vmem>>, vector<1x1x16x16xf32>
    %464 = vector.shape_cast %463 : vector<1x1x16x16xf32> to vector<16x16xf32>
    %465 = vector.broadcast %149 : f32 to vector<16x16xf32>
    %466 = arith.mulf %464, %465 : vector<16x16xf32>
    %467 = arith.addf %447, %466 : vector<16x16xf32>
    %c0_239 = arith.constant 0 : index
    %c2_240 = arith.constant 2 : index
    %c1_241 = arith.constant 1 : index
    %c0_242 = arith.constant 0 : index
    %468 = vector.load %arg8[%c0_239, %c2_240, %c1_241, %c0_242] : memref<2x7x22x16xf32, #tpu.memory_space<vmem>>, vector<1x1x16x16xf32>
    %469 = vector.shape_cast %468 : vector<1x1x16x16xf32> to vector<16x16xf32>
    %470 = vector.broadcast %152 : f32 to vector<16x16xf32>
    %471 = arith.mulf %469, %470 : vector<16x16xf32>
    %472 = arith.addf %452, %471 : vector<16x16xf32>
    %c0_243 = arith.constant 0 : index
    %c3_244 = arith.constant 3 : index
    %c1_245 = arith.constant 1 : index
    %c0_246 = arith.constant 0 : index
    %473 = vector.load %arg8[%c0_243, %c3_244, %c1_245, %c0_246] : memref<2x7x22x16xf32, #tpu.memory_space<vmem>>, vector<1x1x16x16xf32>
    %474 = vector.shape_cast %473 : vector<1x1x16x16xf32> to vector<16x16xf32>
    %475 = vector.broadcast %155 : f32 to vector<16x16xf32>
    %476 = arith.mulf %474, %475 : vector<16x16xf32>
    %477 = arith.addf %457, %476 : vector<16x16xf32>
    %c0_247 = arith.constant 0 : index
    %c4_248 = arith.constant 4 : index
    %c1_249 = arith.constant 1 : index
    %c0_250 = arith.constant 0 : index
    %478 = vector.load %arg8[%c0_247, %c4_248, %c1_249, %c0_250] : memref<2x7x22x16xf32, #tpu.memory_space<vmem>>, vector<1x1x16x16xf32>
    %479 = vector.shape_cast %478 : vector<1x1x16x16xf32> to vector<16x16xf32>
    %480 = vector.broadcast %158 : f32 to vector<16x16xf32>
    %481 = arith.mulf %479, %480 : vector<16x16xf32>
    %482 = arith.addf %462, %481 : vector<16x16xf32>
    %c0_251 = arith.constant 0 : index
    %c5_252 = arith.constant 5 : index
    %c1_253 = arith.constant 1 : index
    %c0_254 = arith.constant 0 : index
    %483 = vector.load %arg8[%c0_251, %c5_252, %c1_253, %c0_254] : memref<2x7x22x16xf32, #tpu.memory_space<vmem>>, vector<1x1x16x16xf32>
    %484 = vector.shape_cast %483 : vector<1x1x16x16xf32> to vector<16x16xf32>
    %485 = vector.broadcast %161 : f32 to vector<16x16xf32>
    %486 = arith.mulf %484, %485 : vector<16x16xf32>
    %487 = arith.addf %467, %486 : vector<16x16xf32>
    %c0_255 = arith.constant 0 : index
    %c6_256 = arith.constant 6 : index
    %c1_257 = arith.constant 1 : index
    %c0_258 = arith.constant 0 : index
    %488 = vector.load %arg8[%c0_255, %c6_256, %c1_257, %c0_258] : memref<2x7x22x16xf32, #tpu.memory_space<vmem>>, vector<1x1x16x16xf32>
    %489 = vector.shape_cast %488 : vector<1x1x16x16xf32> to vector<16x16xf32>
    %490 = vector.broadcast %164 : f32 to vector<16x16xf32>
    %491 = arith.mulf %489, %490 : vector<16x16xf32>
    %492 = arith.addf %472, %491 : vector<16x16xf32>
    %c0_259 = arith.constant 0 : index
    %c0_260 = arith.constant 0 : index
    %c2_261 = arith.constant 2 : index
    %c0_262 = arith.constant 0 : index
    %493 = vector.load %arg8[%c0_259, %c0_260, %c2_261, %c0_262] : memref<2x7x22x16xf32, #tpu.memory_space<vmem>>, vector<1x1x16x16xf32>
    %494 = vector.shape_cast %493 : vector<1x1x16x16xf32> to vector<16x16xf32>
    %495 = vector.broadcast %167 : f32 to vector<16x16xf32>
    %496 = arith.mulf %494, %495 : vector<16x16xf32>
    %497 = arith.addf %477, %496 : vector<16x16xf32>
    %c0_263 = arith.constant 0 : index
    %c1_264 = arith.constant 1 : index
    %c2_265 = arith.constant 2 : index
    %c0_266 = arith.constant 0 : index
    %498 = vector.load %arg8[%c0_263, %c1_264, %c2_265, %c0_266] : memref<2x7x22x16xf32, #tpu.memory_space<vmem>>, vector<1x1x16x16xf32>
    %499 = vector.shape_cast %498 : vector<1x1x16x16xf32> to vector<16x16xf32>
    %500 = vector.broadcast %170 : f32 to vector<16x16xf32>
    %501 = arith.mulf %499, %500 : vector<16x16xf32>
    %502 = arith.addf %482, %501 : vector<16x16xf32>
    %c0_267 = arith.constant 0 : index
    %c2_268 = arith.constant 2 : index
    %c2_269 = arith.constant 2 : index
    %c0_270 = arith.constant 0 : index
    %503 = vector.load %arg8[%c0_267, %c2_268, %c2_269, %c0_270] : memref<2x7x22x16xf32, #tpu.memory_space<vmem>>, vector<1x1x16x16xf32>
    %504 = vector.shape_cast %503 : vector<1x1x16x16xf32> to vector<16x16xf32>
    %505 = vector.broadcast %173 : f32 to vector<16x16xf32>
    %506 = arith.mulf %504, %505 : vector<16x16xf32>
    %507 = arith.addf %487, %506 : vector<16x16xf32>
    %c0_271 = arith.constant 0 : index
    %c3_272 = arith.constant 3 : index
    %c2_273 = arith.constant 2 : index
    %c0_274 = arith.constant 0 : index
    %508 = vector.load %arg8[%c0_271, %c3_272, %c2_273, %c0_274] : memref<2x7x22x16xf32, #tpu.memory_space<vmem>>, vector<1x1x16x16xf32>
    %509 = vector.shape_cast %508 : vector<1x1x16x16xf32> to vector<16x16xf32>
    %510 = vector.broadcast %176 : f32 to vector<16x16xf32>
    %511 = arith.mulf %509, %510 : vector<16x16xf32>
    %512 = arith.addf %492, %511 : vector<16x16xf32>
    %c0_275 = arith.constant 0 : index
    %c4_276 = arith.constant 4 : index
    %c2_277 = arith.constant 2 : index
    %c0_278 = arith.constant 0 : index
    %513 = vector.load %arg8[%c0_275, %c4_276, %c2_277, %c0_278] : memref<2x7x22x16xf32, #tpu.memory_space<vmem>>, vector<1x1x16x16xf32>
    %514 = vector.shape_cast %513 : vector<1x1x16x16xf32> to vector<16x16xf32>
    %515 = vector.broadcast %179 : f32 to vector<16x16xf32>
    %516 = arith.mulf %514, %515 : vector<16x16xf32>
    %517 = arith.addf %497, %516 : vector<16x16xf32>
    %c0_279 = arith.constant 0 : index
    %c5_280 = arith.constant 5 : index
    %c2_281 = arith.constant 2 : index
    %c0_282 = arith.constant 0 : index
    %518 = vector.load %arg8[%c0_279, %c5_280, %c2_281, %c0_282] : memref<2x7x22x16xf32, #tpu.memory_space<vmem>>, vector<1x1x16x16xf32>
    %519 = vector.shape_cast %518 : vector<1x1x16x16xf32> to vector<16x16xf32>
    %520 = vector.broadcast %182 : f32 to vector<16x16xf32>
    %521 = arith.mulf %519, %520 : vector<16x16xf32>
    %522 = arith.addf %502, %521 : vector<16x16xf32>
    %c0_283 = arith.constant 0 : index
    %c6_284 = arith.constant 6 : index
    %c2_285 = arith.constant 2 : index
    %c0_286 = arith.constant 0 : index
    %523 = vector.load %arg8[%c0_283, %c6_284, %c2_285, %c0_286] : memref<2x7x22x16xf32, #tpu.memory_space<vmem>>, vector<1x1x16x16xf32>
    %524 = vector.shape_cast %523 : vector<1x1x16x16xf32> to vector<16x16xf32>
    %525 = vector.broadcast %185 : f32 to vector<16x16xf32>
    %526 = arith.mulf %524, %525 : vector<16x16xf32>
    %527 = arith.addf %507, %526 : vector<16x16xf32>
    %c0_287 = arith.constant 0 : index
    %c0_288 = arith.constant 0 : index
    %c3_289 = arith.constant 3 : index
    %c0_290 = arith.constant 0 : index
    %528 = vector.load %arg8[%c0_287, %c0_288, %c3_289, %c0_290] : memref<2x7x22x16xf32, #tpu.memory_space<vmem>>, vector<1x1x16x16xf32>
    %529 = vector.shape_cast %528 : vector<1x1x16x16xf32> to vector<16x16xf32>
    %530 = vector.broadcast %188 : f32 to vector<16x16xf32>
    %531 = arith.mulf %529, %530 : vector<16x16xf32>
    %532 = arith.addf %512, %531 : vector<16x16xf32>
    %c0_291 = arith.constant 0 : index
    %c1_292 = arith.constant 1 : index
    %c3_293 = arith.constant 3 : index
    %c0_294 = arith.constant 0 : index
    %533 = vector.load %arg8[%c0_291, %c1_292, %c3_293, %c0_294] : memref<2x7x22x16xf32, #tpu.memory_space<vmem>>, vector<1x1x16x16xf32>
    %534 = vector.shape_cast %533 : vector<1x1x16x16xf32> to vector<16x16xf32>
    %535 = vector.broadcast %191 : f32 to vector<16x16xf32>
    %536 = arith.mulf %534, %535 : vector<16x16xf32>
    %537 = arith.addf %517, %536 : vector<16x16xf32>
    %c0_295 = arith.constant 0 : index
    %c2_296 = arith.constant 2 : index
    %c3_297 = arith.constant 3 : index
    %c0_298 = arith.constant 0 : index
    %538 = vector.load %arg8[%c0_295, %c2_296, %c3_297, %c0_298] : memref<2x7x22x16xf32, #tpu.memory_space<vmem>>, vector<1x1x16x16xf32>
    %539 = vector.shape_cast %538 : vector<1x1x16x16xf32> to vector<16x16xf32>
    %540 = vector.broadcast %194 : f32 to vector<16x16xf32>
    %541 = arith.mulf %539, %540 : vector<16x16xf32>
    %542 = arith.addf %522, %541 : vector<16x16xf32>
    %c0_299 = arith.constant 0 : index
    %c3_300 = arith.constant 3 : index
    %c3_301 = arith.constant 3 : index
    %c0_302 = arith.constant 0 : index
    %543 = vector.load %arg8[%c0_299, %c3_300, %c3_301, %c0_302] : memref<2x7x22x16xf32, #tpu.memory_space<vmem>>, vector<1x1x16x16xf32>
    %544 = vector.shape_cast %543 : vector<1x1x16x16xf32> to vector<16x16xf32>
    %545 = vector.broadcast %197 : f32 to vector<16x16xf32>
    %546 = arith.mulf %544, %545 : vector<16x16xf32>
    %547 = arith.addf %527, %546 : vector<16x16xf32>
    %c0_303 = arith.constant 0 : index
    %c4_304 = arith.constant 4 : index
    %c3_305 = arith.constant 3 : index
    %c0_306 = arith.constant 0 : index
    %548 = vector.load %arg8[%c0_303, %c4_304, %c3_305, %c0_306] : memref<2x7x22x16xf32, #tpu.memory_space<vmem>>, vector<1x1x16x16xf32>
    %549 = vector.shape_cast %548 : vector<1x1x16x16xf32> to vector<16x16xf32>
    %550 = vector.broadcast %200 : f32 to vector<16x16xf32>
    %551 = arith.mulf %549, %550 : vector<16x16xf32>
    %552 = arith.addf %532, %551 : vector<16x16xf32>
    %c0_307 = arith.constant 0 : index
    %c5_308 = arith.constant 5 : index
    %c3_309 = arith.constant 3 : index
    %c0_310 = arith.constant 0 : index
    %553 = vector.load %arg8[%c0_307, %c5_308, %c3_309, %c0_310] : memref<2x7x22x16xf32, #tpu.memory_space<vmem>>, vector<1x1x16x16xf32>
    %554 = vector.shape_cast %553 : vector<1x1x16x16xf32> to vector<16x16xf32>
    %555 = vector.broadcast %203 : f32 to vector<16x16xf32>
    %556 = arith.mulf %554, %555 : vector<16x16xf32>
    %557 = arith.addf %537, %556 : vector<16x16xf32>
    %c0_311 = arith.constant 0 : index
    %c6_312 = arith.constant 6 : index
    %c3_313 = arith.constant 3 : index
    %c0_314 = arith.constant 0 : index
    %558 = vector.load %arg8[%c0_311, %c6_312, %c3_313, %c0_314] : memref<2x7x22x16xf32, #tpu.memory_space<vmem>>, vector<1x1x16x16xf32>
    %559 = vector.shape_cast %558 : vector<1x1x16x16xf32> to vector<16x16xf32>
    %560 = vector.broadcast %206 : f32 to vector<16x16xf32>
    %561 = arith.mulf %559, %560 : vector<16x16xf32>
    %562 = arith.addf %542, %561 : vector<16x16xf32>
    %c0_315 = arith.constant 0 : index
    %c0_316 = arith.constant 0 : index
    %c4_317 = arith.constant 4 : index
    %c0_318 = arith.constant 0 : index
    %563 = vector.load %arg8[%c0_315, %c0_316, %c4_317, %c0_318] : memref<2x7x22x16xf32, #tpu.memory_space<vmem>>, vector<1x1x16x16xf32>
    %564 = vector.shape_cast %563 : vector<1x1x16x16xf32> to vector<16x16xf32>
    %565 = vector.broadcast %209 : f32 to vector<16x16xf32>
    %566 = arith.mulf %564, %565 : vector<16x16xf32>
    %567 = arith.addf %547, %566 : vector<16x16xf32>
    %c0_319 = arith.constant 0 : index
    %c1_320 = arith.constant 1 : index
    %c4_321 = arith.constant 4 : index
    %c0_322 = arith.constant 0 : index
    %568 = vector.load %arg8[%c0_319, %c1_320, %c4_321, %c0_322] : memref<2x7x22x16xf32, #tpu.memory_space<vmem>>, vector<1x1x16x16xf32>
    %569 = vector.shape_cast %568 : vector<1x1x16x16xf32> to vector<16x16xf32>
    %570 = vector.broadcast %212 : f32 to vector<16x16xf32>
    %571 = arith.mulf %569, %570 : vector<16x16xf32>
    %572 = arith.addf %552, %571 : vector<16x16xf32>
    %c0_323 = arith.constant 0 : index
    %c2_324 = arith.constant 2 : index
    %c4_325 = arith.constant 4 : index
    %c0_326 = arith.constant 0 : index
    %573 = vector.load %arg8[%c0_323, %c2_324, %c4_325, %c0_326] : memref<2x7x22x16xf32, #tpu.memory_space<vmem>>, vector<1x1x16x16xf32>
    %574 = vector.shape_cast %573 : vector<1x1x16x16xf32> to vector<16x16xf32>
    %575 = vector.broadcast %215 : f32 to vector<16x16xf32>
    %576 = arith.mulf %574, %575 : vector<16x16xf32>
    %577 = arith.addf %557, %576 : vector<16x16xf32>
    %c0_327 = arith.constant 0 : index
    %c3_328 = arith.constant 3 : index
    %c4_329 = arith.constant 4 : index
    %c0_330 = arith.constant 0 : index
    %578 = vector.load %arg8[%c0_327, %c3_328, %c4_329, %c0_330] : memref<2x7x22x16xf32, #tpu.memory_space<vmem>>, vector<1x1x16x16xf32>
    %579 = vector.shape_cast %578 : vector<1x1x16x16xf32> to vector<16x16xf32>
    %580 = vector.broadcast %218 : f32 to vector<16x16xf32>
    %581 = arith.mulf %579, %580 : vector<16x16xf32>
    %582 = arith.addf %562, %581 : vector<16x16xf32>
    %c0_331 = arith.constant 0 : index
    %c4_332 = arith.constant 4 : index
    %c4_333 = arith.constant 4 : index
    %c0_334 = arith.constant 0 : index
    %583 = vector.load %arg8[%c0_331, %c4_332, %c4_333, %c0_334] : memref<2x7x22x16xf32, #tpu.memory_space<vmem>>, vector<1x1x16x16xf32>
    %584 = vector.shape_cast %583 : vector<1x1x16x16xf32> to vector<16x16xf32>
    %585 = vector.broadcast %221 : f32 to vector<16x16xf32>
    %586 = arith.mulf %584, %585 : vector<16x16xf32>
    %587 = arith.addf %567, %586 : vector<16x16xf32>
    %c0_335 = arith.constant 0 : index
    %c5_336 = arith.constant 5 : index
    %c4_337 = arith.constant 4 : index
    %c0_338 = arith.constant 0 : index
    %588 = vector.load %arg8[%c0_335, %c5_336, %c4_337, %c0_338] : memref<2x7x22x16xf32, #tpu.memory_space<vmem>>, vector<1x1x16x16xf32>
    %589 = vector.shape_cast %588 : vector<1x1x16x16xf32> to vector<16x16xf32>
    %590 = vector.broadcast %224 : f32 to vector<16x16xf32>
    %591 = arith.mulf %589, %590 : vector<16x16xf32>
    %592 = arith.addf %572, %591 : vector<16x16xf32>
    %c0_339 = arith.constant 0 : index
    %c6_340 = arith.constant 6 : index
    %c4_341 = arith.constant 4 : index
    %c0_342 = arith.constant 0 : index
    %593 = vector.load %arg8[%c0_339, %c6_340, %c4_341, %c0_342] : memref<2x7x22x16xf32, #tpu.memory_space<vmem>>, vector<1x1x16x16xf32>
    %594 = vector.shape_cast %593 : vector<1x1x16x16xf32> to vector<16x16xf32>
    %595 = vector.broadcast %227 : f32 to vector<16x16xf32>
    %596 = arith.mulf %594, %595 : vector<16x16xf32>
    %597 = arith.addf %577, %596 : vector<16x16xf32>
    %c0_343 = arith.constant 0 : index
    %c0_344 = arith.constant 0 : index
    %c5_345 = arith.constant 5 : index
    %c0_346 = arith.constant 0 : index
    %598 = vector.load %arg8[%c0_343, %c0_344, %c5_345, %c0_346] : memref<2x7x22x16xf32, #tpu.memory_space<vmem>>, vector<1x1x16x16xf32>
    %599 = vector.shape_cast %598 : vector<1x1x16x16xf32> to vector<16x16xf32>
    %600 = vector.broadcast %230 : f32 to vector<16x16xf32>
    %601 = arith.mulf %599, %600 : vector<16x16xf32>
    %602 = arith.addf %582, %601 : vector<16x16xf32>
    %c0_347 = arith.constant 0 : index
    %c1_348 = arith.constant 1 : index
    %c5_349 = arith.constant 5 : index
    %c0_350 = arith.constant 0 : index
    %603 = vector.load %arg8[%c0_347, %c1_348, %c5_349, %c0_350] : memref<2x7x22x16xf32, #tpu.memory_space<vmem>>, vector<1x1x16x16xf32>
    %604 = vector.shape_cast %603 : vector<1x1x16x16xf32> to vector<16x16xf32>
    %605 = vector.broadcast %233 : f32 to vector<16x16xf32>
    %606 = arith.mulf %604, %605 : vector<16x16xf32>
    %607 = arith.addf %587, %606 : vector<16x16xf32>
    %c0_351 = arith.constant 0 : index
    %c2_352 = arith.constant 2 : index
    %c5_353 = arith.constant 5 : index
    %c0_354 = arith.constant 0 : index
    %608 = vector.load %arg8[%c0_351, %c2_352, %c5_353, %c0_354] : memref<2x7x22x16xf32, #tpu.memory_space<vmem>>, vector<1x1x16x16xf32>
    %609 = vector.shape_cast %608 : vector<1x1x16x16xf32> to vector<16x16xf32>
    %610 = vector.broadcast %236 : f32 to vector<16x16xf32>
    %611 = arith.mulf %609, %610 : vector<16x16xf32>
    %612 = arith.addf %592, %611 : vector<16x16xf32>
    %c0_355 = arith.constant 0 : index
    %c3_356 = arith.constant 3 : index
    %c5_357 = arith.constant 5 : index
    %c0_358 = arith.constant 0 : index
    %613 = vector.load %arg8[%c0_355, %c3_356, %c5_357, %c0_358] : memref<2x7x22x16xf32, #tpu.memory_space<vmem>>, vector<1x1x16x16xf32>
    %614 = vector.shape_cast %613 : vector<1x1x16x16xf32> to vector<16x16xf32>
    %615 = vector.broadcast %239 : f32 to vector<16x16xf32>
    %616 = arith.mulf %614, %615 : vector<16x16xf32>
    %617 = arith.addf %597, %616 : vector<16x16xf32>
    %c0_359 = arith.constant 0 : index
    %c4_360 = arith.constant 4 : index
    %c5_361 = arith.constant 5 : index
    %c0_362 = arith.constant 0 : index
    %618 = vector.load %arg8[%c0_359, %c4_360, %c5_361, %c0_362] : memref<2x7x22x16xf32, #tpu.memory_space<vmem>>, vector<1x1x16x16xf32>
    %619 = vector.shape_cast %618 : vector<1x1x16x16xf32> to vector<16x16xf32>
    %620 = vector.broadcast %242 : f32 to vector<16x16xf32>
    %621 = arith.mulf %619, %620 : vector<16x16xf32>
    %622 = arith.addf %602, %621 : vector<16x16xf32>
    %c0_363 = arith.constant 0 : index
    %c5_364 = arith.constant 5 : index
    %c5_365 = arith.constant 5 : index
    %c0_366 = arith.constant 0 : index
    %623 = vector.load %arg8[%c0_363, %c5_364, %c5_365, %c0_366] : memref<2x7x22x16xf32, #tpu.memory_space<vmem>>, vector<1x1x16x16xf32>
    %624 = vector.shape_cast %623 : vector<1x1x16x16xf32> to vector<16x16xf32>
    %625 = vector.broadcast %245 : f32 to vector<16x16xf32>
    %626 = arith.mulf %624, %625 : vector<16x16xf32>
    %627 = arith.addf %607, %626 : vector<16x16xf32>
    %c0_367 = arith.constant 0 : index
    %c6_368 = arith.constant 6 : index
    %c5_369 = arith.constant 5 : index
    %c0_370 = arith.constant 0 : index
    %628 = vector.load %arg8[%c0_367, %c6_368, %c5_369, %c0_370] : memref<2x7x22x16xf32, #tpu.memory_space<vmem>>, vector<1x1x16x16xf32>
    %629 = vector.shape_cast %628 : vector<1x1x16x16xf32> to vector<16x16xf32>
    %630 = vector.broadcast %248 : f32 to vector<16x16xf32>
    %631 = arith.mulf %629, %630 : vector<16x16xf32>
    %632 = arith.addf %612, %631 : vector<16x16xf32>
    %c0_371 = arith.constant 0 : index
    %c0_372 = arith.constant 0 : index
    %c6_373 = arith.constant 6 : index
    %c0_374 = arith.constant 0 : index
    %633 = vector.load %arg8[%c0_371, %c0_372, %c6_373, %c0_374] : memref<2x7x22x16xf32, #tpu.memory_space<vmem>>, vector<1x1x16x16xf32>
    %634 = vector.shape_cast %633 : vector<1x1x16x16xf32> to vector<16x16xf32>
    %635 = vector.broadcast %251 : f32 to vector<16x16xf32>
    %636 = arith.mulf %634, %635 : vector<16x16xf32>
    %637 = arith.addf %617, %636 : vector<16x16xf32>
    %c0_375 = arith.constant 0 : index
    %c1_376 = arith.constant 1 : index
    %c6_377 = arith.constant 6 : index
    %c0_378 = arith.constant 0 : index
    %638 = vector.load %arg8[%c0_375, %c1_376, %c6_377, %c0_378] : memref<2x7x22x16xf32, #tpu.memory_space<vmem>>, vector<1x1x16x16xf32>
    %639 = vector.shape_cast %638 : vector<1x1x16x16xf32> to vector<16x16xf32>
    %640 = vector.broadcast %254 : f32 to vector<16x16xf32>
    %641 = arith.mulf %639, %640 : vector<16x16xf32>
    %642 = arith.addf %622, %641 : vector<16x16xf32>
    %c0_379 = arith.constant 0 : index
    %c2_380 = arith.constant 2 : index
    %c6_381 = arith.constant 6 : index
    %c0_382 = arith.constant 0 : index
    %643 = vector.load %arg8[%c0_379, %c2_380, %c6_381, %c0_382] : memref<2x7x22x16xf32, #tpu.memory_space<vmem>>, vector<1x1x16x16xf32>
    %644 = vector.shape_cast %643 : vector<1x1x16x16xf32> to vector<16x16xf32>
    %645 = vector.broadcast %257 : f32 to vector<16x16xf32>
    %646 = arith.mulf %644, %645 : vector<16x16xf32>
    %647 = arith.addf %627, %646 : vector<16x16xf32>
    %c0_383 = arith.constant 0 : index
    %c3_384 = arith.constant 3 : index
    %c6_385 = arith.constant 6 : index
    %c0_386 = arith.constant 0 : index
    %648 = vector.load %arg8[%c0_383, %c3_384, %c6_385, %c0_386] : memref<2x7x22x16xf32, #tpu.memory_space<vmem>>, vector<1x1x16x16xf32>
    %649 = vector.shape_cast %648 : vector<1x1x16x16xf32> to vector<16x16xf32>
    %650 = vector.broadcast %260 : f32 to vector<16x16xf32>
    %651 = arith.mulf %649, %650 : vector<16x16xf32>
    %652 = arith.addf %632, %651 : vector<16x16xf32>
    %c0_387 = arith.constant 0 : index
    %c4_388 = arith.constant 4 : index
    %c6_389 = arith.constant 6 : index
    %c0_390 = arith.constant 0 : index
    %653 = vector.load %arg8[%c0_387, %c4_388, %c6_389, %c0_390] : memref<2x7x22x16xf32, #tpu.memory_space<vmem>>, vector<1x1x16x16xf32>
    %654 = vector.shape_cast %653 : vector<1x1x16x16xf32> to vector<16x16xf32>
    %655 = vector.broadcast %263 : f32 to vector<16x16xf32>
    %656 = arith.mulf %654, %655 : vector<16x16xf32>
    %657 = arith.addf %637, %656 : vector<16x16xf32>
    %c0_391 = arith.constant 0 : index
    %c5_392 = arith.constant 5 : index
    %c6_393 = arith.constant 6 : index
    %c0_394 = arith.constant 0 : index
    %658 = vector.load %arg8[%c0_391, %c5_392, %c6_393, %c0_394] : memref<2x7x22x16xf32, #tpu.memory_space<vmem>>, vector<1x1x16x16xf32>
    %659 = vector.shape_cast %658 : vector<1x1x16x16xf32> to vector<16x16xf32>
    %660 = vector.broadcast %266 : f32 to vector<16x16xf32>
    %661 = arith.mulf %659, %660 : vector<16x16xf32>
    %662 = arith.addf %642, %661 : vector<16x16xf32>
    %c0_395 = arith.constant 0 : index
    %c6_396 = arith.constant 6 : index
    %c6_397 = arith.constant 6 : index
    %c0_398 = arith.constant 0 : index
    %663 = vector.load %arg8[%c0_395, %c6_396, %c6_397, %c0_398] : memref<2x7x22x16xf32, #tpu.memory_space<vmem>>, vector<1x1x16x16xf32>
    %664 = vector.shape_cast %663 : vector<1x1x16x16xf32> to vector<16x16xf32>
    %665 = vector.broadcast %269 : f32 to vector<16x16xf32>
    %666 = arith.mulf %664, %665 : vector<16x16xf32>
    %667 = arith.addf %647, %666 : vector<16x16xf32>
    %c1_399 = arith.constant 1 : index
    %c0_400 = arith.constant 0 : index
    %c0_401 = arith.constant 0 : index
    %c0_402 = arith.constant 0 : index
    %668 = vector.load %arg8[%c1_399, %c0_400, %c0_401, %c0_402] : memref<2x7x22x16xf32, #tpu.memory_space<vmem>>, vector<1x1x16x16xf32>
    %669 = vector.shape_cast %668 : vector<1x1x16x16xf32> to vector<16x16xf32>
    %670 = vector.broadcast %272 : f32 to vector<16x16xf32>
    %671 = arith.mulf %669, %670 : vector<16x16xf32>
    %672 = arith.addf %652, %671 : vector<16x16xf32>
    %c1_403 = arith.constant 1 : index
    %c1_404 = arith.constant 1 : index
    %c0_405 = arith.constant 0 : index
    %c0_406 = arith.constant 0 : index
    %673 = vector.load %arg8[%c1_403, %c1_404, %c0_405, %c0_406] : memref<2x7x22x16xf32, #tpu.memory_space<vmem>>, vector<1x1x16x16xf32>
    %674 = vector.shape_cast %673 : vector<1x1x16x16xf32> to vector<16x16xf32>
    %675 = vector.broadcast %275 : f32 to vector<16x16xf32>
    %676 = arith.mulf %674, %675 : vector<16x16xf32>
    %677 = arith.addf %657, %676 : vector<16x16xf32>
    %c1_407 = arith.constant 1 : index
    %c2_408 = arith.constant 2 : index
    %c0_409 = arith.constant 0 : index
    %c0_410 = arith.constant 0 : index
    %678 = vector.load %arg8[%c1_407, %c2_408, %c0_409, %c0_410] : memref<2x7x22x16xf32, #tpu.memory_space<vmem>>, vector<1x1x16x16xf32>
    %679 = vector.shape_cast %678 : vector<1x1x16x16xf32> to vector<16x16xf32>
    %680 = vector.broadcast %278 : f32 to vector<16x16xf32>
    %681 = arith.mulf %679, %680 : vector<16x16xf32>
    %682 = arith.addf %662, %681 : vector<16x16xf32>
    %c1_411 = arith.constant 1 : index
    %c3_412 = arith.constant 3 : index
    %c0_413 = arith.constant 0 : index
    %c0_414 = arith.constant 0 : index
    %683 = vector.load %arg8[%c1_411, %c3_412, %c0_413, %c0_414] : memref<2x7x22x16xf32, #tpu.memory_space<vmem>>, vector<1x1x16x16xf32>
    %684 = vector.shape_cast %683 : vector<1x1x16x16xf32> to vector<16x16xf32>
    %685 = vector.broadcast %281 : f32 to vector<16x16xf32>
    %686 = arith.mulf %684, %685 : vector<16x16xf32>
    %687 = arith.addf %667, %686 : vector<16x16xf32>
    %c1_415 = arith.constant 1 : index
    %c4_416 = arith.constant 4 : index
    %c0_417 = arith.constant 0 : index
    %c0_418 = arith.constant 0 : index
    %688 = vector.load %arg8[%c1_415, %c4_416, %c0_417, %c0_418] : memref<2x7x22x16xf32, #tpu.memory_space<vmem>>, vector<1x1x16x16xf32>
    %689 = vector.shape_cast %688 : vector<1x1x16x16xf32> to vector<16x16xf32>
    %690 = vector.broadcast %284 : f32 to vector<16x16xf32>
    %691 = arith.mulf %689, %690 : vector<16x16xf32>
    %692 = arith.addf %672, %691 : vector<16x16xf32>
    %c1_419 = arith.constant 1 : index
    %c5_420 = arith.constant 5 : index
    %c0_421 = arith.constant 0 : index
    %c0_422 = arith.constant 0 : index
    %693 = vector.load %arg8[%c1_419, %c5_420, %c0_421, %c0_422] : memref<2x7x22x16xf32, #tpu.memory_space<vmem>>, vector<1x1x16x16xf32>
    %694 = vector.shape_cast %693 : vector<1x1x16x16xf32> to vector<16x16xf32>
    %695 = vector.broadcast %287 : f32 to vector<16x16xf32>
    %696 = arith.mulf %694, %695 : vector<16x16xf32>
    %697 = arith.addf %677, %696 : vector<16x16xf32>
    %c1_423 = arith.constant 1 : index
    %c6_424 = arith.constant 6 : index
    %c0_425 = arith.constant 0 : index
    %c0_426 = arith.constant 0 : index
    %698 = vector.load %arg8[%c1_423, %c6_424, %c0_425, %c0_426] : memref<2x7x22x16xf32, #tpu.memory_space<vmem>>, vector<1x1x16x16xf32>
    %699 = vector.shape_cast %698 : vector<1x1x16x16xf32> to vector<16x16xf32>
    %700 = vector.broadcast %290 : f32 to vector<16x16xf32>
    %701 = arith.mulf %699, %700 : vector<16x16xf32>
    %702 = arith.addf %682, %701 : vector<16x16xf32>
    %c1_427 = arith.constant 1 : index
    %c0_428 = arith.constant 0 : index
    %c1_429 = arith.constant 1 : index
    %c0_430 = arith.constant 0 : index
    %703 = vector.load %arg8[%c1_427, %c0_428, %c1_429, %c0_430] : memref<2x7x22x16xf32, #tpu.memory_space<vmem>>, vector<1x1x16x16xf32>
    %704 = vector.shape_cast %703 : vector<1x1x16x16xf32> to vector<16x16xf32>
    %705 = vector.broadcast %293 : f32 to vector<16x16xf32>
    %706 = arith.mulf %704, %705 : vector<16x16xf32>
    %707 = arith.addf %687, %706 : vector<16x16xf32>
    %c1_431 = arith.constant 1 : index
    %c1_432 = arith.constant 1 : index
    %c1_433 = arith.constant 1 : index
    %c0_434 = arith.constant 0 : index
    %708 = vector.load %arg8[%c1_431, %c1_432, %c1_433, %c0_434] : memref<2x7x22x16xf32, #tpu.memory_space<vmem>>, vector<1x1x16x16xf32>
    %709 = vector.shape_cast %708 : vector<1x1x16x16xf32> to vector<16x16xf32>
    %710 = vector.broadcast %296 : f32 to vector<16x16xf32>
    %711 = arith.mulf %709, %710 : vector<16x16xf32>
    %712 = arith.addf %692, %711 : vector<16x16xf32>
    %c1_435 = arith.constant 1 : index
    %c2_436 = arith.constant 2 : index
    %c1_437 = arith.constant 1 : index
    %c0_438 = arith.constant 0 : index
    %713 = vector.load %arg8[%c1_435, %c2_436, %c1_437, %c0_438] : memref<2x7x22x16xf32, #tpu.memory_space<vmem>>, vector<1x1x16x16xf32>
    %714 = vector.shape_cast %713 : vector<1x1x16x16xf32> to vector<16x16xf32>
    %715 = vector.broadcast %299 : f32 to vector<16x16xf32>
    %716 = arith.mulf %714, %715 : vector<16x16xf32>
    %717 = arith.addf %697, %716 : vector<16x16xf32>
    %c1_439 = arith.constant 1 : index
    %c3_440 = arith.constant 3 : index
    %c1_441 = arith.constant 1 : index
    %c0_442 = arith.constant 0 : index
    %718 = vector.load %arg8[%c1_439, %c3_440, %c1_441, %c0_442] : memref<2x7x22x16xf32, #tpu.memory_space<vmem>>, vector<1x1x16x16xf32>
    %719 = vector.shape_cast %718 : vector<1x1x16x16xf32> to vector<16x16xf32>
    %720 = vector.broadcast %302 : f32 to vector<16x16xf32>
    %721 = arith.mulf %719, %720 : vector<16x16xf32>
    %722 = arith.addf %702, %721 : vector<16x16xf32>
    %c1_443 = arith.constant 1 : index
    %c4_444 = arith.constant 4 : index
    %c1_445 = arith.constant 1 : index
    %c0_446 = arith.constant 0 : index
    %723 = vector.load %arg8[%c1_443, %c4_444, %c1_445, %c0_446] : memref<2x7x22x16xf32, #tpu.memory_space<vmem>>, vector<1x1x16x16xf32>
    %724 = vector.shape_cast %723 : vector<1x1x16x16xf32> to vector<16x16xf32>
    %725 = vector.broadcast %305 : f32 to vector<16x16xf32>
    %726 = arith.mulf %724, %725 : vector<16x16xf32>
    %727 = arith.addf %707, %726 : vector<16x16xf32>
    %c1_447 = arith.constant 1 : index
    %c5_448 = arith.constant 5 : index
    %c1_449 = arith.constant 1 : index
    %c0_450 = arith.constant 0 : index
    %728 = vector.load %arg8[%c1_447, %c5_448, %c1_449, %c0_450] : memref<2x7x22x16xf32, #tpu.memory_space<vmem>>, vector<1x1x16x16xf32>
    %729 = vector.shape_cast %728 : vector<1x1x16x16xf32> to vector<16x16xf32>
    %730 = vector.broadcast %308 : f32 to vector<16x16xf32>
    %731 = arith.mulf %729, %730 : vector<16x16xf32>
    %732 = arith.addf %712, %731 : vector<16x16xf32>
    %c1_451 = arith.constant 1 : index
    %c6_452 = arith.constant 6 : index
    %c1_453 = arith.constant 1 : index
    %c0_454 = arith.constant 0 : index
    %733 = vector.load %arg8[%c1_451, %c6_452, %c1_453, %c0_454] : memref<2x7x22x16xf32, #tpu.memory_space<vmem>>, vector<1x1x16x16xf32>
    %734 = vector.shape_cast %733 : vector<1x1x16x16xf32> to vector<16x16xf32>
    %735 = vector.broadcast %311 : f32 to vector<16x16xf32>
    %736 = arith.mulf %734, %735 : vector<16x16xf32>
    %737 = arith.addf %717, %736 : vector<16x16xf32>
    %c1_455 = arith.constant 1 : index
    %c0_456 = arith.constant 0 : index
    %c2_457 = arith.constant 2 : index
    %c0_458 = arith.constant 0 : index
    %738 = vector.load %arg8[%c1_455, %c0_456, %c2_457, %c0_458] : memref<2x7x22x16xf32, #tpu.memory_space<vmem>>, vector<1x1x16x16xf32>
    %739 = vector.shape_cast %738 : vector<1x1x16x16xf32> to vector<16x16xf32>
    %740 = vector.broadcast %314 : f32 to vector<16x16xf32>
    %741 = arith.mulf %739, %740 : vector<16x16xf32>
    %742 = arith.addf %722, %741 : vector<16x16xf32>
    %c1_459 = arith.constant 1 : index
    %c1_460 = arith.constant 1 : index
    %c2_461 = arith.constant 2 : index
    %c0_462 = arith.constant 0 : index
    %743 = vector.load %arg8[%c1_459, %c1_460, %c2_461, %c0_462] : memref<2x7x22x16xf32, #tpu.memory_space<vmem>>, vector<1x1x16x16xf32>
    %744 = vector.shape_cast %743 : vector<1x1x16x16xf32> to vector<16x16xf32>
    %745 = vector.broadcast %317 : f32 to vector<16x16xf32>
    %746 = arith.mulf %744, %745 : vector<16x16xf32>
    %747 = arith.addf %727, %746 : vector<16x16xf32>
    %c1_463 = arith.constant 1 : index
    %c2_464 = arith.constant 2 : index
    %c2_465 = arith.constant 2 : index
    %c0_466 = arith.constant 0 : index
    %748 = vector.load %arg8[%c1_463, %c2_464, %c2_465, %c0_466] : memref<2x7x22x16xf32, #tpu.memory_space<vmem>>, vector<1x1x16x16xf32>
    %749 = vector.shape_cast %748 : vector<1x1x16x16xf32> to vector<16x16xf32>
    %750 = vector.broadcast %320 : f32 to vector<16x16xf32>
    %751 = arith.mulf %749, %750 : vector<16x16xf32>
    %752 = arith.addf %732, %751 : vector<16x16xf32>
    %c1_467 = arith.constant 1 : index
    %c3_468 = arith.constant 3 : index
    %c2_469 = arith.constant 2 : index
    %c0_470 = arith.constant 0 : index
    %753 = vector.load %arg8[%c1_467, %c3_468, %c2_469, %c0_470] : memref<2x7x22x16xf32, #tpu.memory_space<vmem>>, vector<1x1x16x16xf32>
    %754 = vector.shape_cast %753 : vector<1x1x16x16xf32> to vector<16x16xf32>
    %755 = vector.broadcast %323 : f32 to vector<16x16xf32>
    %756 = arith.mulf %754, %755 : vector<16x16xf32>
    %757 = arith.addf %737, %756 : vector<16x16xf32>
    %c1_471 = arith.constant 1 : index
    %c4_472 = arith.constant 4 : index
    %c2_473 = arith.constant 2 : index
    %c0_474 = arith.constant 0 : index
    %758 = vector.load %arg8[%c1_471, %c4_472, %c2_473, %c0_474] : memref<2x7x22x16xf32, #tpu.memory_space<vmem>>, vector<1x1x16x16xf32>
    %759 = vector.shape_cast %758 : vector<1x1x16x16xf32> to vector<16x16xf32>
    %760 = vector.broadcast %326 : f32 to vector<16x16xf32>
    %761 = arith.mulf %759, %760 : vector<16x16xf32>
    %762 = arith.addf %742, %761 : vector<16x16xf32>
    %c1_475 = arith.constant 1 : index
    %c5_476 = arith.constant 5 : index
    %c2_477 = arith.constant 2 : index
    %c0_478 = arith.constant 0 : index
    %763 = vector.load %arg8[%c1_475, %c5_476, %c2_477, %c0_478] : memref<2x7x22x16xf32, #tpu.memory_space<vmem>>, vector<1x1x16x16xf32>
    %764 = vector.shape_cast %763 : vector<1x1x16x16xf32> to vector<16x16xf32>
    %765 = vector.broadcast %329 : f32 to vector<16x16xf32>
    %766 = arith.mulf %764, %765 : vector<16x16xf32>
    %767 = arith.addf %747, %766 : vector<16x16xf32>
    %c1_479 = arith.constant 1 : index
    %c6_480 = arith.constant 6 : index
    %c2_481 = arith.constant 2 : index
    %c0_482 = arith.constant 0 : index
    %768 = vector.load %arg8[%c1_479, %c6_480, %c2_481, %c0_482] : memref<2x7x22x16xf32, #tpu.memory_space<vmem>>, vector<1x1x16x16xf32>
    %769 = vector.shape_cast %768 : vector<1x1x16x16xf32> to vector<16x16xf32>
    %770 = vector.broadcast %332 : f32 to vector<16x16xf32>
    %771 = arith.mulf %769, %770 : vector<16x16xf32>
    %772 = arith.addf %752, %771 : vector<16x16xf32>
    %c1_483 = arith.constant 1 : index
    %c0_484 = arith.constant 0 : index
    %c3_485 = arith.constant 3 : index
    %c0_486 = arith.constant 0 : index
    %773 = vector.load %arg8[%c1_483, %c0_484, %c3_485, %c0_486] : memref<2x7x22x16xf32, #tpu.memory_space<vmem>>, vector<1x1x16x16xf32>
    %774 = vector.shape_cast %773 : vector<1x1x16x16xf32> to vector<16x16xf32>
    %775 = vector.broadcast %335 : f32 to vector<16x16xf32>
    %776 = arith.mulf %774, %775 : vector<16x16xf32>
    %777 = arith.addf %757, %776 : vector<16x16xf32>
    %c1_487 = arith.constant 1 : index
    %c1_488 = arith.constant 1 : index
    %c3_489 = arith.constant 3 : index
    %c0_490 = arith.constant 0 : index
    %778 = vector.load %arg8[%c1_487, %c1_488, %c3_489, %c0_490] : memref<2x7x22x16xf32, #tpu.memory_space<vmem>>, vector<1x1x16x16xf32>
    %779 = vector.shape_cast %778 : vector<1x1x16x16xf32> to vector<16x16xf32>
    %780 = vector.broadcast %338 : f32 to vector<16x16xf32>
    %781 = arith.mulf %779, %780 : vector<16x16xf32>
    %782 = arith.addf %762, %781 : vector<16x16xf32>
    %c1_491 = arith.constant 1 : index
    %c2_492 = arith.constant 2 : index
    %c3_493 = arith.constant 3 : index
    %c0_494 = arith.constant 0 : index
    %783 = vector.load %arg8[%c1_491, %c2_492, %c3_493, %c0_494] : memref<2x7x22x16xf32, #tpu.memory_space<vmem>>, vector<1x1x16x16xf32>
    %784 = vector.shape_cast %783 : vector<1x1x16x16xf32> to vector<16x16xf32>
    %785 = vector.broadcast %341 : f32 to vector<16x16xf32>
    %786 = arith.mulf %784, %785 : vector<16x16xf32>
    %787 = arith.addf %767, %786 : vector<16x16xf32>
    %c1_495 = arith.constant 1 : index
    %c3_496 = arith.constant 3 : index
    %c3_497 = arith.constant 3 : index
    %c0_498 = arith.constant 0 : index
    %788 = vector.load %arg8[%c1_495, %c3_496, %c3_497, %c0_498] : memref<2x7x22x16xf32, #tpu.memory_space<vmem>>, vector<1x1x16x16xf32>
    %789 = vector.shape_cast %788 : vector<1x1x16x16xf32> to vector<16x16xf32>
    %790 = vector.broadcast %344 : f32 to vector<16x16xf32>
    %791 = arith.mulf %789, %790 : vector<16x16xf32>
    %792 = arith.addf %772, %791 : vector<16x16xf32>
    %c1_499 = arith.constant 1 : index
    %c4_500 = arith.constant 4 : index
    %c3_501 = arith.constant 3 : index
    %c0_502 = arith.constant 0 : index
    %793 = vector.load %arg8[%c1_499, %c4_500, %c3_501, %c0_502] : memref<2x7x22x16xf32, #tpu.memory_space<vmem>>, vector<1x1x16x16xf32>
    %794 = vector.shape_cast %793 : vector<1x1x16x16xf32> to vector<16x16xf32>
    %795 = vector.broadcast %347 : f32 to vector<16x16xf32>
    %796 = arith.mulf %794, %795 : vector<16x16xf32>
    %797 = arith.addf %777, %796 : vector<16x16xf32>
    %c1_503 = arith.constant 1 : index
    %c5_504 = arith.constant 5 : index
    %c3_505 = arith.constant 3 : index
    %c0_506 = arith.constant 0 : index
    %798 = vector.load %arg8[%c1_503, %c5_504, %c3_505, %c0_506] : memref<2x7x22x16xf32, #tpu.memory_space<vmem>>, vector<1x1x16x16xf32>
    %799 = vector.shape_cast %798 : vector<1x1x16x16xf32> to vector<16x16xf32>
    %800 = vector.broadcast %350 : f32 to vector<16x16xf32>
    %801 = arith.mulf %799, %800 : vector<16x16xf32>
    %802 = arith.addf %782, %801 : vector<16x16xf32>
    %c1_507 = arith.constant 1 : index
    %c6_508 = arith.constant 6 : index
    %c3_509 = arith.constant 3 : index
    %c0_510 = arith.constant 0 : index
    %803 = vector.load %arg8[%c1_507, %c6_508, %c3_509, %c0_510] : memref<2x7x22x16xf32, #tpu.memory_space<vmem>>, vector<1x1x16x16xf32>
    %804 = vector.shape_cast %803 : vector<1x1x16x16xf32> to vector<16x16xf32>
    %805 = vector.broadcast %353 : f32 to vector<16x16xf32>
    %806 = arith.mulf %804, %805 : vector<16x16xf32>
    %807 = arith.addf %787, %806 : vector<16x16xf32>
    %c1_511 = arith.constant 1 : index
    %c0_512 = arith.constant 0 : index
    %c4_513 = arith.constant 4 : index
    %c0_514 = arith.constant 0 : index
    %808 = vector.load %arg8[%c1_511, %c0_512, %c4_513, %c0_514] : memref<2x7x22x16xf32, #tpu.memory_space<vmem>>, vector<1x1x16x16xf32>
    %809 = vector.shape_cast %808 : vector<1x1x16x16xf32> to vector<16x16xf32>
    %810 = vector.broadcast %356 : f32 to vector<16x16xf32>
    %811 = arith.mulf %809, %810 : vector<16x16xf32>
    %812 = arith.addf %792, %811 : vector<16x16xf32>
    %c1_515 = arith.constant 1 : index
    %c1_516 = arith.constant 1 : index
    %c4_517 = arith.constant 4 : index
    %c0_518 = arith.constant 0 : index
    %813 = vector.load %arg8[%c1_515, %c1_516, %c4_517, %c0_518] : memref<2x7x22x16xf32, #tpu.memory_space<vmem>>, vector<1x1x16x16xf32>
    %814 = vector.shape_cast %813 : vector<1x1x16x16xf32> to vector<16x16xf32>
    %815 = vector.broadcast %359 : f32 to vector<16x16xf32>
    %816 = arith.mulf %814, %815 : vector<16x16xf32>
    %817 = arith.addf %797, %816 : vector<16x16xf32>
    %c1_519 = arith.constant 1 : index
    %c2_520 = arith.constant 2 : index
    %c4_521 = arith.constant 4 : index
    %c0_522 = arith.constant 0 : index
    %818 = vector.load %arg8[%c1_519, %c2_520, %c4_521, %c0_522] : memref<2x7x22x16xf32, #tpu.memory_space<vmem>>, vector<1x1x16x16xf32>
    %819 = vector.shape_cast %818 : vector<1x1x16x16xf32> to vector<16x16xf32>
    %820 = vector.broadcast %362 : f32 to vector<16x16xf32>
    %821 = arith.mulf %819, %820 : vector<16x16xf32>
    %822 = arith.addf %802, %821 : vector<16x16xf32>
    %c1_523 = arith.constant 1 : index
    %c3_524 = arith.constant 3 : index
    %c4_525 = arith.constant 4 : index
    %c0_526 = arith.constant 0 : index
    %823 = vector.load %arg8[%c1_523, %c3_524, %c4_525, %c0_526] : memref<2x7x22x16xf32, #tpu.memory_space<vmem>>, vector<1x1x16x16xf32>
    %824 = vector.shape_cast %823 : vector<1x1x16x16xf32> to vector<16x16xf32>
    %825 = vector.broadcast %365 : f32 to vector<16x16xf32>
    %826 = arith.mulf %824, %825 : vector<16x16xf32>
    %827 = arith.addf %807, %826 : vector<16x16xf32>
    %c1_527 = arith.constant 1 : index
    %c4_528 = arith.constant 4 : index
    %c4_529 = arith.constant 4 : index
    %c0_530 = arith.constant 0 : index
    %828 = vector.load %arg8[%c1_527, %c4_528, %c4_529, %c0_530] : memref<2x7x22x16xf32, #tpu.memory_space<vmem>>, vector<1x1x16x16xf32>
    %829 = vector.shape_cast %828 : vector<1x1x16x16xf32> to vector<16x16xf32>
    %830 = vector.broadcast %368 : f32 to vector<16x16xf32>
    %831 = arith.mulf %829, %830 : vector<16x16xf32>
    %832 = arith.addf %812, %831 : vector<16x16xf32>
    %c1_531 = arith.constant 1 : index
    %c5_532 = arith.constant 5 : index
    %c4_533 = arith.constant 4 : index
    %c0_534 = arith.constant 0 : index
    %833 = vector.load %arg8[%c1_531, %c5_532, %c4_533, %c0_534] : memref<2x7x22x16xf32, #tpu.memory_space<vmem>>, vector<1x1x16x16xf32>
    %834 = vector.shape_cast %833 : vector<1x1x16x16xf32> to vector<16x16xf32>
    %835 = vector.broadcast %371 : f32 to vector<16x16xf32>
    %836 = arith.mulf %834, %835 : vector<16x16xf32>
    %837 = arith.addf %817, %836 : vector<16x16xf32>
    %c1_535 = arith.constant 1 : index
    %c6_536 = arith.constant 6 : index
    %c4_537 = arith.constant 4 : index
    %c0_538 = arith.constant 0 : index
    %838 = vector.load %arg8[%c1_535, %c6_536, %c4_537, %c0_538] : memref<2x7x22x16xf32, #tpu.memory_space<vmem>>, vector<1x1x16x16xf32>
    %839 = vector.shape_cast %838 : vector<1x1x16x16xf32> to vector<16x16xf32>
    %840 = vector.broadcast %374 : f32 to vector<16x16xf32>
    %841 = arith.mulf %839, %840 : vector<16x16xf32>
    %842 = arith.addf %822, %841 : vector<16x16xf32>
    %c1_539 = arith.constant 1 : index
    %c0_540 = arith.constant 0 : index
    %c5_541 = arith.constant 5 : index
    %c0_542 = arith.constant 0 : index
    %843 = vector.load %arg8[%c1_539, %c0_540, %c5_541, %c0_542] : memref<2x7x22x16xf32, #tpu.memory_space<vmem>>, vector<1x1x16x16xf32>
    %844 = vector.shape_cast %843 : vector<1x1x16x16xf32> to vector<16x16xf32>
    %845 = vector.broadcast %377 : f32 to vector<16x16xf32>
    %846 = arith.mulf %844, %845 : vector<16x16xf32>
    %847 = arith.addf %827, %846 : vector<16x16xf32>
    %c1_543 = arith.constant 1 : index
    %c1_544 = arith.constant 1 : index
    %c5_545 = arith.constant 5 : index
    %c0_546 = arith.constant 0 : index
    %848 = vector.load %arg8[%c1_543, %c1_544, %c5_545, %c0_546] : memref<2x7x22x16xf32, #tpu.memory_space<vmem>>, vector<1x1x16x16xf32>
    %849 = vector.shape_cast %848 : vector<1x1x16x16xf32> to vector<16x16xf32>
    %850 = vector.broadcast %380 : f32 to vector<16x16xf32>
    %851 = arith.mulf %849, %850 : vector<16x16xf32>
    %852 = arith.addf %832, %851 : vector<16x16xf32>
    %c1_547 = arith.constant 1 : index
    %c2_548 = arith.constant 2 : index
    %c5_549 = arith.constant 5 : index
    %c0_550 = arith.constant 0 : index
    %853 = vector.load %arg8[%c1_547, %c2_548, %c5_549, %c0_550] : memref<2x7x22x16xf32, #tpu.memory_space<vmem>>, vector<1x1x16x16xf32>
    %854 = vector.shape_cast %853 : vector<1x1x16x16xf32> to vector<16x16xf32>
    %855 = vector.broadcast %383 : f32 to vector<16x16xf32>
    %856 = arith.mulf %854, %855 : vector<16x16xf32>
    %857 = arith.addf %837, %856 : vector<16x16xf32>
    %c1_551 = arith.constant 1 : index
    %c3_552 = arith.constant 3 : index
    %c5_553 = arith.constant 5 : index
    %c0_554 = arith.constant 0 : index
    %858 = vector.load %arg8[%c1_551, %c3_552, %c5_553, %c0_554] : memref<2x7x22x16xf32, #tpu.memory_space<vmem>>, vector<1x1x16x16xf32>
    %859 = vector.shape_cast %858 : vector<1x1x16x16xf32> to vector<16x16xf32>
    %860 = vector.broadcast %386 : f32 to vector<16x16xf32>
    %861 = arith.mulf %859, %860 : vector<16x16xf32>
    %862 = arith.addf %842, %861 : vector<16x16xf32>
    %c1_555 = arith.constant 1 : index
    %c4_556 = arith.constant 4 : index
    %c5_557 = arith.constant 5 : index
    %c0_558 = arith.constant 0 : index
    %863 = vector.load %arg8[%c1_555, %c4_556, %c5_557, %c0_558] : memref<2x7x22x16xf32, #tpu.memory_space<vmem>>, vector<1x1x16x16xf32>
    %864 = vector.shape_cast %863 : vector<1x1x16x16xf32> to vector<16x16xf32>
    %865 = vector.broadcast %389 : f32 to vector<16x16xf32>
    %866 = arith.mulf %864, %865 : vector<16x16xf32>
    %867 = arith.addf %847, %866 : vector<16x16xf32>
    %c1_559 = arith.constant 1 : index
    %c5_560 = arith.constant 5 : index
    %c5_561 = arith.constant 5 : index
    %c0_562 = arith.constant 0 : index
    %868 = vector.load %arg8[%c1_559, %c5_560, %c5_561, %c0_562] : memref<2x7x22x16xf32, #tpu.memory_space<vmem>>, vector<1x1x16x16xf32>
    %869 = vector.shape_cast %868 : vector<1x1x16x16xf32> to vector<16x16xf32>
    %870 = vector.broadcast %392 : f32 to vector<16x16xf32>
    %871 = arith.mulf %869, %870 : vector<16x16xf32>
    %872 = arith.addf %852, %871 : vector<16x16xf32>
    %c1_563 = arith.constant 1 : index
    %c6_564 = arith.constant 6 : index
    %c5_565 = arith.constant 5 : index
    %c0_566 = arith.constant 0 : index
    %873 = vector.load %arg8[%c1_563, %c6_564, %c5_565, %c0_566] : memref<2x7x22x16xf32, #tpu.memory_space<vmem>>, vector<1x1x16x16xf32>
    %874 = vector.shape_cast %873 : vector<1x1x16x16xf32> to vector<16x16xf32>
    %875 = vector.broadcast %395 : f32 to vector<16x16xf32>
    %876 = arith.mulf %874, %875 : vector<16x16xf32>
    %877 = arith.addf %857, %876 : vector<16x16xf32>
    %c1_567 = arith.constant 1 : index
    %c0_568 = arith.constant 0 : index
    %c6_569 = arith.constant 6 : index
    %c0_570 = arith.constant 0 : index
    %878 = vector.load %arg8[%c1_567, %c0_568, %c6_569, %c0_570] : memref<2x7x22x16xf32, #tpu.memory_space<vmem>>, vector<1x1x16x16xf32>
    %879 = vector.shape_cast %878 : vector<1x1x16x16xf32> to vector<16x16xf32>
    %880 = vector.broadcast %398 : f32 to vector<16x16xf32>
    %881 = arith.mulf %879, %880 : vector<16x16xf32>
    %882 = arith.addf %862, %881 : vector<16x16xf32>
    %c1_571 = arith.constant 1 : index
    %c1_572 = arith.constant 1 : index
    %c6_573 = arith.constant 6 : index
    %c0_574 = arith.constant 0 : index
    %883 = vector.load %arg8[%c1_571, %c1_572, %c6_573, %c0_574] : memref<2x7x22x16xf32, #tpu.memory_space<vmem>>, vector<1x1x16x16xf32>
    %884 = vector.shape_cast %883 : vector<1x1x16x16xf32> to vector<16x16xf32>
    %885 = vector.broadcast %401 : f32 to vector<16x16xf32>
    %886 = arith.mulf %884, %885 : vector<16x16xf32>
    %887 = arith.addf %867, %886 : vector<16x16xf32>
    %c1_575 = arith.constant 1 : index
    %c2_576 = arith.constant 2 : index
    %c6_577 = arith.constant 6 : index
    %c0_578 = arith.constant 0 : index
    %888 = vector.load %arg8[%c1_575, %c2_576, %c6_577, %c0_578] : memref<2x7x22x16xf32, #tpu.memory_space<vmem>>, vector<1x1x16x16xf32>
    %889 = vector.shape_cast %888 : vector<1x1x16x16xf32> to vector<16x16xf32>
    %890 = vector.broadcast %404 : f32 to vector<16x16xf32>
    %891 = arith.mulf %889, %890 : vector<16x16xf32>
    %892 = arith.addf %872, %891 : vector<16x16xf32>
    %c1_579 = arith.constant 1 : index
    %c3_580 = arith.constant 3 : index
    %c6_581 = arith.constant 6 : index
    %c0_582 = arith.constant 0 : index
    %893 = vector.load %arg8[%c1_579, %c3_580, %c6_581, %c0_582] : memref<2x7x22x16xf32, #tpu.memory_space<vmem>>, vector<1x1x16x16xf32>
    %894 = vector.shape_cast %893 : vector<1x1x16x16xf32> to vector<16x16xf32>
    %895 = vector.broadcast %407 : f32 to vector<16x16xf32>
    %896 = arith.mulf %894, %895 : vector<16x16xf32>
    %897 = arith.addf %877, %896 : vector<16x16xf32>
    %c1_583 = arith.constant 1 : index
    %c4_584 = arith.constant 4 : index
    %c6_585 = arith.constant 6 : index
    %c0_586 = arith.constant 0 : index
    %898 = vector.load %arg8[%c1_583, %c4_584, %c6_585, %c0_586] : memref<2x7x22x16xf32, #tpu.memory_space<vmem>>, vector<1x1x16x16xf32>
    %899 = vector.shape_cast %898 : vector<1x1x16x16xf32> to vector<16x16xf32>
    %900 = vector.broadcast %410 : f32 to vector<16x16xf32>
    %901 = arith.mulf %899, %900 : vector<16x16xf32>
    %902 = arith.addf %882, %901 : vector<16x16xf32>
    %c1_587 = arith.constant 1 : index
    %c5_588 = arith.constant 5 : index
    %c6_589 = arith.constant 6 : index
    %c0_590 = arith.constant 0 : index
    %903 = vector.load %arg8[%c1_587, %c5_588, %c6_589, %c0_590] : memref<2x7x22x16xf32, #tpu.memory_space<vmem>>, vector<1x1x16x16xf32>
    %904 = vector.shape_cast %903 : vector<1x1x16x16xf32> to vector<16x16xf32>
    %905 = vector.broadcast %413 : f32 to vector<16x16xf32>
    %906 = arith.mulf %904, %905 : vector<16x16xf32>
    %907 = arith.addf %887, %906 : vector<16x16xf32>
    %c1_591 = arith.constant 1 : index
    %c6_592 = arith.constant 6 : index
    %c6_593 = arith.constant 6 : index
    %c0_594 = arith.constant 0 : index
    %908 = vector.load %arg8[%c1_591, %c6_592, %c6_593, %c0_594] : memref<2x7x22x16xf32, #tpu.memory_space<vmem>>, vector<1x1x16x16xf32>
    %909 = vector.shape_cast %908 : vector<1x1x16x16xf32> to vector<16x16xf32>
    %910 = vector.broadcast %416 : f32 to vector<16x16xf32>
    %911 = arith.mulf %909, %910 : vector<16x16xf32>
    %912 = arith.addf %892, %911 : vector<16x16xf32>
    %913 = arith.addf %907, %912 : vector<16x16xf32>
    %914 = arith.addf %897, %902 : vector<16x16xf32>
    %915 = arith.addf %913, %914 : vector<16x16xf32>
    %916 = vector.broadcast %418 : f32 to vector<16x16xf32>
    %917 = arith.addf %915, %916 : vector<16x16xf32>
    %cst_595 = arith.constant 0.000000e+00 : f32
    %918 = vector.broadcast %cst_595 : f32 to vector<16x16xf32>
    %919 = arith.subf %918, %917 : vector<16x16xf32>
    %920 = math.exp %919 : vector<16x16xf32>
    %cst_596 = arith.constant 1.000000e+00 : f32
    %921 = vector.broadcast %cst_596 : f32 to vector<16x16xf32>
    %922 = arith.addf %921, %920 : vector<16x16xf32>
    %cst_597 = arith.constant 1.000000e+00 : f32
    %923 = vector.broadcast %cst_597 : f32 to vector<16x16xf32>
    %924 = arith.divf %923, %922 : vector<16x16xf32>
    %c0_598 = arith.constant 0 : index
    %c0_599 = arith.constant 0 : index
    %c0_600 = arith.constant 0 : index
    %c0_601 = arith.constant 0 : index
    %925 = vector.load %arg6[%c0_598, %c0_599, %c0_600, %c0_601] : memref<1x1x16x16xf32, #tpu.memory_space<vmem>>, vector<1x1x16x16xf32>
    %926 = vector.shape_cast %925 : vector<1x1x16x16xf32> to vector<16x16xf32>
    %927 = vector.shape_cast %924 : vector<16x16xf32> to vector<1x1x16x16xf32>
    tpu.vector_store %arg6[%c0_598, %c0_599, %c0_600, %c0_601], %927 {strides = array<i32>} : memref<1x1x16x16xf32, #tpu.memory_space<vmem>>, vector<1x1x16x16xf32>,
    return
  }
  func.func @transform_0(%arg0: i32, %arg1: i32) -> i32 {
    %c0_i32 = arith.constant 0 : i32
    %c0_i32_0 = arith.constant 0 : i32
    return %c0_i32 : i32
  }
  func.func @transform_1(%arg0: i32, %arg1: i32) -> i32 {
    %c0_i32 = arith.constant 0 : i32
    %c0_i32_0 = arith.constant 0 : i32
    return %c0_i32 : i32
  }
  func.func @transform_2(%arg0: i32, %arg1: i32) -> (i32, i32, i32, i32) {
    %c0_i32 = arith.constant 0 : i32
    %c0_i32_0 = arith.constant 0 : i32
    %c0_i32_1 = arith.constant 0 : i32
    return %arg0, %arg1, %c0_i32, %c0_i32_0 : i32, i32, i32, i32
  }
  func.func @transform_3(%arg0: i32, %arg1: i32) -> (i32, i32, i32, i32) {
    %c0_i32 = arith.constant 0 : i32
    %c0_i32_0 = arith.constant 0 : i32
    %c0_i32_1 = arith.constant 0 : i32
    return %arg0, %arg1, %c0_i32, %c0_i32_0 : i32, i32, i32, i32
  }
  func.func @transform_4(%arg0: i32, %arg1: i32) -> (i32, i32, i32, i32) {
    %c0_i32 = arith.constant 0 : i32
    %c0_i32_0 = arith.constant 0 : i32
    %c0_i32_1 = arith.constant 0 : i32
    return %arg0, %arg1, %c0_i32, %c0_i32_0 : i32, i32, i32, i32
  }
}

</mosaic_0001>

<llo_original>
// kernel: pixel_attention.1
$region0: #{pixel_attention.1}
  #allocation0 [shape = 'u32[]', space=smem, size = 0x4, offset = 0x4, fixed_abs, tag = 'smem constant byte address 0x4 - core index']
  #allocation1 [shape = 'u32[144,128]{1,0:T(1,128)}', space=vmem, size = 0x12000, scoped, tag = 'internal scratch']
  #allocation2 [shape = 'f32[22,22]{1,0:T(8,128)}', space=vmem, size = 0x3000, scoped, tag = 'scratch operand']
  #allocation3 [shape = 'f32[2,7,22,16]{3,2,1,0:T(8,128)}', space=vmem, size = 0x2a000, scoped, tag = 'scratch operand']
  %s0 = inlined_call_operand.vmem [shape: f32[392], index: 0, kind: input, shape index: {}]
  %s1 = inlined_call_operand.vmem [shape: f32[4], index: 1, kind: input, shape index: {}]
  %s2 = inlined_call_operand.vmem [shape: f32[2,4,16,16], index: 2, kind: input, shape index: {}]
  %s3 = inlined_call_operand.hbm [shape: f32[2,4,16,16], index: 3, kind: input, shape index: {}]
  %s4 = inlined_call_operand.hbm [shape: f32[2,4,16,16], index: 4, kind: output, shape index: {}]
  %s5 = sld [smem:[#allocation0]]
  $region61: #{pixel_attention.1} parent=0
    _
  %s7 = ssub.s32 1, %s5
  %s8 = scalar_select 0, %s7, %s5
  $region1: #{pixel_attention.1} parent=0
    #allocation4 [shape = 'u8[2048]{0}', space=smem, size = 0x800, scoped, tag = 'input window, operand 0, single buffered']
    #allocation5 [shape = 's32[2]{0}', space=sflag, size = 0x8, scoped, tag = 'scoped memory for pixel_attention.1']
    #allocation6 [shape = 's32[2]{0}', space=sflag, size = 0x8, scoped, tag = 'scoped memory for pixel_attention.1']
    #allocation7 [shape = 's32[2]{0}', space=sflag, size = 0x8, scoped, tag = 'scoped memory for pixel_attention.1']
    #allocation8 [shape = 'u8[512]{0}', space=smem, size = 0x200, scoped, tag = 'input window, operand 1, single buffered']
    #allocation9 [shape = 's32[1]{0}', space=sflag, size = 0x4, scoped, tag = 'scoped memory for pixel_attention.1']
    #allocation10 [shape = 'u8[16384]{0}', space=vmem, size = 0x4000, scoped, tag = 'input window, operand 3']
    #allocation11 [shape = 'u8[16384]{0}', space=vmem, size = 0x4000, scoped, tag = 'output window, operand 0']
    %9 = vsyncpa [#allocation7], 0
    %10 = vsyncpa [#allocation9], 0
    %11 = vsyncpa [#allocation5], 0
    %s12 = scalar_lea.sflag [#allocation5], 1
    %13 = vsyncpa %s12, 0
    %14 = vsyncpa [#allocation6], 0
    %s15 = scalar_lea.sflag [#allocation6], 1
    %16 = vsyncpa %s15, 0
    loop: start=0, step=1, limit=10
    $region2: #{pixel_attention.1} parent=1 // loop_pre_header
      _
    $region3: #{pixel_attention.1} parent=1 // loop_header
      %s18 = sphi 0, %s22
      %p19 = scmp.ge.s32.totalorder %s18, 10
      %s25 = sphi 0, %s37
      %s26 = sphi 0, %s33
      %s27 = sphi 0, %s25
      %s28 = sphi 0, %s26
      %s29 = sphi 0, %s27
      %s30 = sphi 0, %s28
      %s38 = sphi 0, %s38
      %s40 = sphi 0, %s38
      %s41 = sphi 0, %s40
      %s55 = sphi 0, %s41
      %s59 = sphi 0, %s59
      %s61 = sphi 0, %s59
      %s62 = sphi 0, %s61
      %s76 = sphi 0, %s62
      %s84 = sphi 0, %s86
      %s87 = sphi 0, %s84
      %s88 = sphi 0, %s87
      %s104 = sphi 0, %s88
      %s112 = sphi 0, %s114
      %s115 = sphi 0, %s112
      %s116 = sphi 0, %s115
      %s132 = sphi 0, %s116
      %s140 = sphi 0, %s142
      %s143 = sphi 0, %s140
      %s144 = sphi 0, %s143
      %s160 = sphi 0, %s144
    $region4: #{pixel_attention.1} parent=1 // loop_header_branch
      %21 = sbr.rel (%p19) target = $region8
    $region5: #{pixel_attention.1} parent=1 // loop_body
      %s23 = ssub.s32 %s18, 1
      %s24 = ssub.s32 %s18, 2
      %s31 = sadd.s32 1, %s26
      %p32 = scmp.ge.s32.totalorder %s31, 4
      %s33 = scalar_select %p32, 0, %s31
      %s34 = sadd.s32 1, %s25
      %s35 = scalar_select %p32, %s34, %s25
      %p36 = scmp.ge.s32.totalorder %s35, 2
      %s37 = scalar_select %p36, 0, %s35
      %s39 = sadd.s32 %s38, 1
      %p42 = scmp.eq.s32.totalorder %s18, 7
      %p43 = scmp.ne.s32.totalorder %s38, %s40
      %p44 = scmp.eq.s32.totalorder %s18, 0
      %p45 = por %p43, %p44
      %p46 = scmp.ne.s32.totalorder %s38, %s40
      %p47 = scmp.eq.s32.totalorder %s23, 7
      %p48 = por %p46, %p47
      %p49 = scmp.ne.s32.totalorder %s40, %s41
      %p50 = scmp.eq.s32.totalorder %s23, 0
      %p51 = por %p49, %p50
      %p52 = scmp.ne.s32.totalorder %s40, %s41
      %p53 = scmp.eq.s32.totalorder %s24, 7
      %p54 = por %p52, %p53
      %p56 = scmp.ne.s32.totalorder %s41, %s55
      %p57 = scmp.eq.s32.totalorder %s24, 0
      %p58 = por %p56, %p57
      %s60 = sadd.s32 %s59, 1
      %p63 = scmp.eq.s32.totalorder %s18, 7
      %p64 = scmp.ne.s32.totalorder %s59, %s61
      %p65 = scmp.eq.s32.totalorder %s18, 0
      %p66 = por %p64, %p65
      %p67 = scmp.ne.s32.totalorder %s59, %s61
      %p68 = scmp.eq.s32.totalorder %s23, 7
      %p69 = por %p67, %p68
      %p70 = scmp.ne.s32.totalorder %s61, %s62
      %p71 = scmp.eq.s32.totalorder %s23, 0
      %p72 = por %p70, %p71
      %p73 = scmp.ne.s32.totalorder %s61, %s62
      %p74 = scmp.eq.s32.totalorder %s24, 7
      %p75 = por %p73, %p74
      %p77 = scmp.ne.s32.totalorder %s62, %s76
      %p78 = scmp.eq.s32.totalorder %s24, 0
      %p79 = por %p77, %p78
      %s80 = ssub.s32 %s25, %s37
      %s81 = ssub.s32 %s26, %s33
      %s82 = sor.u32 %s80, %s81
      %p83 = scmp.eq.s32.totalorder %s82, 0
      %s85 = sadd.s32 %s84, 1
      %s86 = scalar_select %p83, %s84, %s85
      %p89 = pneg %p83
      %p90 = scmp.eq.s32.totalorder %s18, 7
      %p91 = por %p89, %p90
      %p92 = scmp.ne.s32.totalorder %s84, %s87
      %p93 = scmp.eq.s32.totalorder %s18, 0
      %p94 = por %p92, %p93
      %p95 = scmp.ne.s32.totalorder %s84, %s87
      %p96 = scmp.eq.s32.totalorder %s23, 7
      %p97 = por %p95, %p96
      %p98 = scmp.ne.s32.totalorder %s87, %s88
      %p99 = scmp.eq.s32.totalorder %s23, 0
      %p100 = por %p98, %p99
      %p101 = scmp.ne.s32.totalorder %s87, %s88
      %p102 = scmp.eq.s32.totalorder %s24, 7
      %p103 = por %p101, %p102
      %p105 = scmp.ne.s32.totalorder %s88, %s104
      %p106 = scmp.eq.s32.totalorder %s24, 0
      %p107 = por %p105, %p106
      %s108 = ssub.s32 %s25, %s37
      %s109 = ssub.s32 %s26, %s33
      %s110 = sor.u32 %s108, %s109
      %p111 = scmp.eq.s32.totalorder %s110, 0
      %s113 = sadd.s32 %s112, 1
      %s114 = scalar_select %p111, %s112, %s113
      %p117 = pneg %p111
      %p118 = scmp.eq.s32.totalorder %s18, 7
      %p119 = por %p117, %p118
      %p120 = scmp.ne.s32.totalorder %s112, %s115
      %p121 = scmp.eq.s32.totalorder %s18, 0
      %p122 = por %p120, %p121
      %p123 = scmp.ne.s32.totalorder %s112, %s115
      %p124 = scmp.eq.s32.totalorder %s23, 7
      %p125 = por %p123, %p124
      %p126 = scmp.ne.s32.totalorder %s115, %s116
      %p127 = scmp.eq.s32.totalorder %s23, 0
      %p128 = por %p126, %p127
      %p129 = scmp.ne.s32.totalorder %s115, %s116
      %p130 = scmp.eq.s32.totalorder %s24, 7
      %p131 = por %p129, %p130
      %p133 = scmp.ne.s32.totalorder %s116, %s132
      %p134 = scmp.eq.s32.totalorder %s24, 0
      %p135 = por %p133, %p134
      %s136 = ssub.s32 %s25, %s37
      %s137 = ssub.s32 %s26, %s33
      %s138 = sor.u32 %s136, %s137
      %p139 = scmp.eq.s32.totalorder %s138, 0
      %s141 = sadd.s32 %s140, 1
      %s142 = scalar_select %p139, %s140, %s141
      %p145 = pneg %p139
      %p146 = scmp.eq.s32.totalorder %s18, 7
      %p147 = por %p145, %p146
      %p148 = scmp.ne.s32.totalorder %s140, %s143
      %p149 = scmp.eq.s32.totalorder %s18, 0
      %p150 = por %p148, %p149
      %p151 = scmp.ne.s32.totalorder %s140, %s143
      %p152 = scmp.eq.s32.totalorder %s23, 7
      %p153 = por %p151, %p152
      %p154 = scmp.ne.s32.totalorder %s143, %s144
      %p155 = scmp.eq.s32.totalorder %s23, 0
      %p156 = por %p154, %p155
      %p157 = scmp.ne.s32.totalorder %s143, %s144
      %p158 = scmp.eq.s32.totalorder %s24, 7
      %p159 = por %p157, %p158
      %p161 = scmp.ne.s32.totalorder %s144, %s160
      %p162 = scmp.eq.s32.totalorder %s24, 0
      %p163 = por %p161, %p162
      %p164 = scmp.le.s32.totalorder 1, %s18
      %p165 = scmp.lt.s32.totalorder %s18, 9
      %p166 = pnand %p164, %p165
      %p167 = pneg %p166
      // Predicated region
      $region9: #{pixel_attention.1} parent=5 // pred_check
        _
      $region10: #{pixel_attention.1} parent=5 // pred_check_branch
        %169 = sbr.rel (%p166) target = $region12
      $region11: #{pixel_attention.1} parent=5 // pred_region
        %s170 = ssub.s32 %s18, 1
        // Predicated region
        $region13: #{pixel_attention.1} parent=11 // pred_check
          %p171 = pneg %p51
        $region14: #{pixel_attention.1} parent=11 // pred_check_branch
          %173 = sbr.rel (%p171) target = $region16
        $region15: #{pixel_attention.1} parent=11 // pred_region
          %s175 = ssub.s32 64, 64
          %176 = vsyncadd [#allocation7], %s175
          %s178 = sshll.u32 %s0, 4
          %s179 = int_to_ptr.vmem [resolvable:$true] %s178
          %181 = dma.vmem_to_smem %s179, 64, [#allocation4], [#allocation7]
        $region16: #{pixel_attention.1} parent=11 // pred_fallthru
          _
        // Predicated region
        $region17: #{pixel_attention.1} parent=11 // pred_check
          %p182 = pneg %p72
        $region18: #{pixel_attention.1} parent=11 // pred_check_branch
          %184 = sbr.rel (%p182) target = $region20
        $region19: #{pixel_attention.1} parent=11 // pred_region
          %s186 = ssub.s32 16, 16
          %187 = vsyncadd [#allocation9], %s186
          %s189 = sshll.u32 %s1, 4
          %s190 = int_to_ptr.vmem [resolvable:$true] %s189
          %192 = dma.vmem_to_smem %s190, 16, [#allocation8], [#allocation9]
        $region20: #{pixel_attention.1} parent=11 // pred_fallthru
          _
      $region12: #{pixel_attention.1} parent=5 // pred_fallthru
        _
      %p193 = scmp.lt.s32.totalorder %s18, 8
      // Predicated region
      $region21: #{pixel_attention.1} parent=5 // pred_check
        %p194 = pneg %p193
      $region22: #{pixel_attention.1} parent=5 // pred_check_branch
        %196 = sbr.rel (%p194) target = $region24
      $region23: #{pixel_attention.1} parent=5 // pred_region
        // Predicated region
        $region25: #{pixel_attention.1} parent=23 // pred_check
          %p197 = pneg %p94
        $region26: #{pixel_attention.1} parent=23 // pred_check_branch
          %199 = sbr.rel (%p197) target = $region28
        $region27: #{pixel_attention.1} parent=23 // pred_region
          %p200 = scmp.lt.s32.totalorder %s25, 1
          %s201 = scalar_select %p200, %s25, 1
          %p202 = scmp.lt.s32.totalorder %s26, 3
          %s203 = scalar_select %p202, %s26, 3
          %s204 = smul.addr %s203, 2
          %s205 = smul.addr %s201, 8
          %s206 = sadd.s32 %s204, %s205
          %s207 = smul.addr %s206, 8
          %s208 = scalar_lea.vmem %s2, %s207
        $region28: #{pixel_attention.1} parent=23 // pred_fallthru
          _
        // Predicated region
        $region29: #{pixel_attention.1} parent=23 // pred_check
          %p209 = pneg %p122
        $region30: #{pixel_attention.1} parent=23 // pred_check_branch
          %211 = sbr.rel (%p209) target = $region32
        $region31: #{pixel_attention.1} parent=23 // pred_region
          %s212 = sand.u32 %s112, 1
          %s213 = scalar_lea.sflag [#allocation5], %s212
          %s214 = sand.u32 %s112, 1
          %s215 = smul.addr %s214, 16
          %s216 = scalar_lea.vmem [#allocation10], %s215
          %s218 = ssub.s32 256, 256
          %219 = vsyncadd %s213, %s218
          %s220 = smul.addr %s26, 2
          %s221 = smul.addr %s25, 8
          %s222 = sadd.s32 %s220, %s221
          %s223 = smul.addr %s222, 128
          %s224 = scalar_lea.hbm %s3, %s223
          %s225 = sshll.u32 %s216, 4
          %s226 = int_to_ptr.vmem [resolvable:$true] %s225
          %231 = dma.hbm_to_vmem [thread:$0]  %s224, 256, %s226, %s213, 128, 128, 8
        $region32: #{pixel_attention.1} parent=23 // pred_fallthru
          _
      $region24: #{pixel_attention.1} parent=5 // pred_fallthru
        _
      %p232 = scmp.le.s32.totalorder 1, %s18
      %p233 = scmp.lt.s32.totalorder %s18, 9
      %p234 = pnand %p232, %p233
      %p235 = pneg %p234
      // Predicated region
      $region33: #{pixel_attention.1} parent=5 // pred_check
        _
      $region34: #{pixel_attention.1} parent=5 // pred_check_branch
        %237 = sbr.rel (%p234) target = $region36
      $region35: #{pixel_attention.1} parent=5 // pred_region
        %s238 = ssub.s32 %s18, 1
        // Predicated region
        $region37: #{pixel_attention.1} parent=35 // pred_check
          %p239 = pneg %p51
        $region38: #{pixel_attention.1} parent=35 // pred_check_branch
          %241 = sbr.rel (%p239) target = $region40
        $region39: #{pixel_attention.1} parent=35 // pred_region
          %242 = dma.done [#allocation7], 64
        $region40: #{pixel_attention.1} parent=35 // pred_fallthru
          _
        // Predicated region
        $region41: #{pixel_attention.1} parent=35 // pred_check
          %p243 = pneg %p72
        $region42: #{pixel_attention.1} parent=35 // pred_check_branch
          %245 = sbr.rel (%p243) target = $region44
        $region43: #{pixel_attention.1} parent=35 // pred_region
          %246 = dma.done [#allocation9], 16
        $region44: #{pixel_attention.1} parent=35 // pred_fallthru
          _
        %s247 = sand.u32 %s115, 1
        %s248 = scalar_lea.sflag [#allocation5], %s247
        %s249 = sand.u32 %s115, 1
        %s250 = smul.addr %s249, 16
        %s251 = scalar_lea.vmem [#allocation10], %s250
        // Predicated region
        $region45: #{pixel_attention.1} parent=35 // pred_check
          %p252 = pneg %p128
        $region46: #{pixel_attention.1} parent=35 // pred_check_branch
          %254 = sbr.rel (%p252) target = $region48
        $region47: #{pixel_attention.1} parent=35 // pred_region
          %255 = dma.done %s248, 256
        $region48: #{pixel_attention.1} parent=35 // pred_fallthru
          _
        %256 = sfence
        %p257 = pneg %p51
        %p258 = pneg %p48
        %p259 = pneg %p72
        %p260 = pneg %p69
        %p261 = scmp.lt.s32.totalorder %s27, 1
        %s262 = scalar_select %p261, %s27, 1
        %p263 = scmp.lt.s32.totalorder %s28, 3
        %s264 = scalar_select %p263, %s28, 3
        %s265 = smul.addr %s264, 2
        %s266 = smul.addr %s262, 8
        %s267 = sadd.s32 %s265, %s266
        %s268 = smul.addr %s267, 8
        %s269 = scalar_lea.vmem %s2, %s268
        %p270 = pneg %p100
        %p271 = pneg %p97
        %s272 = sand.u32 %s115, 1
        %s273 = scalar_lea.sflag [#allocation5], %s272
        %s274 = sand.u32 %s115, 1
        %s275 = smul.addr %s274, 16
        %s276 = scalar_lea.vmem [#allocation10], %s275
        %p277 = pneg %p128
        %p278 = pneg %p125
        %p279 = pneg %p156
        %p280 = pneg %p153
        %s281 = sand.u32 %s143, 1
        %s282 = scalar_lea.sflag [#allocation6], %s281
        %s283 = sand.u32 %s143, 1
        %s284 = smul.addr %s283, 16
        %s285 = scalar_lea.vmem [#allocation11], %s284
        %p286 = scmp.lt.s32.totalorder %s27, 1
        %s287 = scalar_select %p286, %s27, 1
        %p288 = scmp.lt.s32.totalorder %s28, 3
        %s289 = scalar_select %p288, %s28, 3
        %s290 = smul.addr %s289, 2
        %s291 = smul.addr %s287, 8
        %s292 = sadd.s32 %s290, %s291
        %s293 = smul.addr %s292, 8
        %s294 = scalar_lea.vmem %s2, %s293
        %v295 = vld [vmem:[%s294] sm:$0xff]
        %v296 = vld [vmem:[%s294 + $0x8] sm:$0xff]
        %299 = vrot.lane.b32.xlu0 %v295, 3
        %v300 = vpop.permute.xlu0 %299
        %301 = vrot.lane.b32.xlu0 %v296, 3
        %v302 = vpop.permute.xlu0 %301
        %vm305 = vcmask 154648
        %306 = vst.msk [vmem:[#allocation2 + $0x3] sm:$0xff] %vm305, %v300
        %307 = vst.msk [vmem:[#allocation2 + $0xb] sm:$0xff] %vm305, %v302
        %v308 = vld [vmem:[%s294] sm:$0xff]
        %v309 = vld [vmem:[%s294 + $0x8] sm:$0xff]
        %312 = vrot.lane.b32.xlu0 %v308, 125
        %v313 = vpop.permute.xlu0 %312
        %314 = vrot.lane.b32.xlu0 %v309, 125
        %v315 = vpop.permute.xlu0 %314
        %vm318 = vcmask 7168
        %319 = vst.msk [vmem:[#allocation2 + $0x3] sm:$0xff] %vm318, %v313
        %320 = vst.msk [vmem:[#allocation2 + $0xb] sm:$0xff] %vm318, %v315
        %v321 = vld [vmem:[%s294] sm:$0xff]
        %v322 = vld [vmem:[%s294 + $0x8] sm:$0xff]
        %325 = vrot.lane.b32.xlu0 %v321, 5
        %v326 = vpop.permute.xlu0 %325
        %327 = vrot.lane.b32.xlu0 %v322, 5
        %v328 = vpop.permute.xlu0 %327
        %vm331 = vcmask 162968
        %332 = vst.msk [vmem:[#allocation2 + $0x3] sm:$0xff] %vm331, %v326
        %333 = vst.msk [vmem:[#allocation2 + $0xb] sm:$0xff] %vm331, %v328
        %v334 = vld [vmem:[%s294] sm:$0xff]
        %v335 = vld [vmem:[%s294 + $0x8] sm:$0xff]
        %338 = vrot.lane.b32.xlu0 %v334, 127
        %v339 = vpop.permute.xlu0 %338
        %340 = vrot.lane.b32.xlu0 %v335, 127
        %v341 = vpop.permute.xlu0 %340
        %vm344 = vcmask 15368
        %345 = vst.msk [vmem:[#allocation2 + $0x3] sm:$0xff] %vm344, %v339
        %346 = vst.msk [vmem:[#allocation2 + $0xb] sm:$0xff] %vm344, %v341
        %v347 = vld [vmem:[%s294] sm:$0xff]
        %v348 = vld [vmem:[%s294 + $0x8] sm:$0xff]
        %351 = vrot.lane.b32.xlu0 %v347, 7
        %v352 = vpop.permute.xlu0 %351
        %353 = vrot.lane.b32.xlu0 %v348, 7
        %v354 = vpop.permute.xlu0 %353
        %vm357 = vcmask 171168
        %358 = vst.msk [vmem:[#allocation2 + $0x3] sm:$0xff] %vm357, %v352
        %359 = vst.msk [vmem:[#allocation2 + $0xb] sm:$0xff] %vm357, %v354
        %v360 = vld [vmem:[%s294] sm:$0xff]
        %v361 = vld [vmem:[%s294 + $0x8] sm:$0xff]
        %364 = vrot.lane.b32.xlu0 %v360, 1
        %v365 = vpop.permute.xlu0 %364
        %366 = vrot.lane.b32.xlu0 %v361, 1
        %v367 = vpop.permute.xlu0 %366
        %vm370 = vcmask 23568
        %371 = vst.msk [vmem:[#allocation2 + $0x3] sm:$0xff] %vm370, %v365
        %372 = vst.msk [vmem:[#allocation2 + $0xb] sm:$0xff] %vm370, %v367
        %v373 = vld [vmem:[%s294] sm:$0xff]
        %v374 = vld [vmem:[%s294 + $0x8] sm:$0xff]
        %377 = vrot.lane.b32.xlu0 %v373, 9
        %v378 = vpop.permute.xlu0 %377
        %379 = vrot.lane.b32.xlu0 %v374, 9
        %v380 = vpop.permute.xlu0 %379
        %vm383 = vcmask 179368
        %384 = vst.msk [vmem:[#allocation2 + $0x3] sm:$0xff] %vm383, %v378
        %385 = vst.msk [vmem:[#allocation2 + $0xb] sm:$0xff] %vm383, %v380
        %v386 = vld [vmem:[#allocation2 + $0x6] sm:$0x1]
        %vm387 = vcmask 172032
        %388 = vst.msk [vmem:[#allocation2] sm:$0x1] %vm387, %v386
        %v389 = vld [vmem:[#allocation2 + $0x11] sm:$0x1]
        %390 = vst.msk [vmem:[#allocation2 + $0x13] sm:$0x1] %vm387, %v389
        %v391 = vld [vmem:[#allocation2 + $0x5] sm:$0x1]
        %392 = vst.msk [vmem:[#allocation2 + $0x1] sm:$0x1] %vm387, %v391
        %v393 = vld [vmem:[#allocation2 + $0x10] sm:$0x1]
        %394 = vst.msk [vmem:[#allocation2 + $0x14] sm:$0x1] %vm387, %v393
        %v395 = vld [vmem:[#allocation2 + $0x4] sm:$0x1]
        %396 = vst.msk [vmem:[#allocation2 + $0x2] sm:$0x1] %vm387, %v395
        %v397 = vld [vmem:[#allocation2 + $0xf] sm:$0x1]
        %398 = vst.msk [vmem:[#allocation2 + $0x15] sm:$0x1] %vm387, %v397
        %v399 = vld [vmem:[#allocation2] sm:$0xff]
        %v400 = vld [vmem:[#allocation2 + $0x8] sm:$0xff]
        %v401 = vld [vmem:[#allocation2 + $0x10] sm:$0x3f]
        %vm402 = vcmask 130048
        %403 = vst.msk [vmem:[#allocation3] sm:$0xff] %vm402, %v399
        %404 = vst.msk [vmem:[#allocation3 + $0x8] sm:$0xff] %vm402, %v400
        %vm405 = vcmask 128000
        %406 = vst.msk [vmem:[#allocation3 + $0x10] sm:$0x3f] %vm405, %v401
        %v407 = vld [vmem:[#allocation2] sm:$0xff]
        %v408 = vld [vmem:[#allocation2 + $0x8] sm:$0xff]
        %v409 = vld [vmem:[#allocation2 + $0x10] sm:$0x3f]
        %413 = vrot.lane.b32.xlu0 %v407, 127
        %v414 = vpop.permute.xlu0 %413
        %415 = vrot.lane.b32.xlu0 %v408, 127
        %v416 = vpop.permute.xlu0 %415
        %417 = vrot.lane.b32.xlu0 %v409, 127
        %v418 = vpop.permute.xlu0 %417
        %s422 = scalar_lea.vmem [#allocation3], 24
        %423 = vst.msk [vmem:[%s422] sm:$0xff] %vm402, %v414
        %424 = vst.msk [vmem:[%s422 + $0x8] sm:$0xff] %vm402, %v416
        %425 = vst.msk [vmem:[%s422 + $0x10] sm:$0x3f] %vm405, %v418
        %v426 = vld [vmem:[#allocation2] sm:$0xff]
        %v427 = vld [vmem:[#allocation2 + $0x8] sm:$0xff]
        %v428 = vld [vmem:[#allocation2 + $0x10] sm:$0x3f]
        %432 = vrot.lane.b32.xlu0 %v426, 126
        %v433 = vpop.permute.xlu0 %432
        %434 = vrot.lane.b32.xlu0 %v427, 126
        %v435 = vpop.permute.xlu0 %434
        %436 = vrot.lane.b32.xlu0 %v428, 126
        %v437 = vpop.permute.xlu0 %436
        %s441 = scalar_lea.vmem [#allocation3], 48
        %442 = vst.msk [vmem:[%s441] sm:$0xff] %vm402, %v433
        %443 = vst.msk [vmem:[%s441 + $0x8] sm:$0xff] %vm402, %v435
        %444 = vst.msk [vmem:[%s441 + $0x10] sm:$0x3f] %vm405, %v437
        %v445 = vld [vmem:[#allocation2] sm:$0xff]
        %v446 = vld [vmem:[#allocation2 + $0x8] sm:$0xff]
        %v447 = vld [vmem:[#allocation2 + $0x10] sm:$0x3f]
        %451 = vrot.lane.b32.xlu0 %v445, 125
        %v452 = vpop.permute.xlu0 %451
        %453 = vrot.lane.b32.xlu0 %v446, 125
        %v454 = vpop.permute.xlu0 %453
        %455 = vrot.lane.b32.xlu0 %v447, 125
        %v456 = vpop.permute.xlu0 %455
        %s460 = scalar_lea.vmem [#allocation3], 72
        %461 = vst.msk [vmem:[%s460] sm:$0xff] %vm402, %v452
        %462 = vst.msk [vmem:[%s460 + $0x8] sm:$0xff] %vm402, %v454
        %463 = vst.msk [vmem:[%s460 + $0x10] sm:$0x3f] %vm405, %v456
        %v464 = vld [vmem:[#allocation2] sm:$0xff]
        %v465 = vld [vmem:[#allocation2 + $0x8] sm:$0xff]
        %v466 = vld [vmem:[#allocation2 + $0x10] sm:$0x3f]
        %470 = vrot.lane.b32.xlu0 %v464, 124
        %v471 = vpop.permute.xlu0 %470
        %472 = vrot.lane.b32.xlu0 %v465, 124
        %v473 = vpop.permute.xlu0 %472
        %474 = vrot.lane.b32.xlu0 %v466, 124
        %v475 = vpop.permute.xlu0 %474
        %s479 = scalar_lea.vmem [#allocation3], 96
        %480 = vst.msk [vmem:[%s479] sm:$0xff] %vm402, %v471
        %481 = vst.msk [vmem:[%s479 + $0x8] sm:$0xff] %vm402, %v473
        %482 = vst.msk [vmem:[%s479 + $0x10] sm:$0x3f] %vm405, %v475
        %v483 = vld [vmem:[#allocation2] sm:$0xff]
        %v484 = vld [vmem:[#allocation2 + $0x8] sm:$0xff]
        %v485 = vld [vmem:[#allocation2 + $0x10] sm:$0x3f]
        %489 = vrot.lane.b32.xlu0 %v483, 123
        %v490 = vpop.permute.xlu0 %489
        %491 = vrot.lane.b32.xlu0 %v484, 123
        %v492 = vpop.permute.xlu0 %491
        %493 = vrot.lane.b32.xlu0 %v485, 123
        %v494 = vpop.permute.xlu0 %493
        %s498 = scalar_lea.vmem [#allocation3], 120
        %499 = vst.msk [vmem:[%s498] sm:$0xff] %vm402, %v490
        %500 = vst.msk [vmem:[%s498 + $0x8] sm:$0xff] %vm402, %v492
        %501 = vst.msk [vmem:[%s498 + $0x10] sm:$0x3f] %vm405, %v494
        %v502 = vld [vmem:[#allocation2] sm:$0xff]
        %v503 = vld [vmem:[#allocation2 + $0x8] sm:$0xff]
        %v504 = vld [vmem:[#allocation2 + $0x10] sm:$0x3f]
        %508 = vrot.lane.b32.xlu0 %v502, 122
        %v509 = vpop.permute.xlu0 %508
        %510 = vrot.lane.b32.xlu0 %v503, 122
        %v511 = vpop.permute.xlu0 %510
        %512 = vrot.lane.b32.xlu0 %v504, 122
        %v513 = vpop.permute.xlu0 %512
        %s517 = scalar_lea.vmem [#allocation3], 144
        %518 = vst.msk [vmem:[%s517] sm:$0xff] %vm402, %v509
        %519 = vst.msk [vmem:[%s517 + $0x8] sm:$0xff] %vm402, %v511
        %520 = vst.msk [vmem:[%s517 + $0x10] sm:$0x3f] %vm405, %v513
        %v521 = vld [vmem:[%s251] sm:$0xff]
        %v522 = vld [vmem:[%s251 + $0x8] sm:$0xff]
        %525 = vrot.lane.b32.xlu0 %v521, 3
        %v526 = vpop.permute.xlu0 %525
        %527 = vrot.lane.b32.xlu0 %v522, 3
        %v528 = vpop.permute.xlu0 %527
        %531 = vst.msk [vmem:[#allocation2 + $0x3] sm:$0xff] %vm305, %v526
        %532 = vst.msk [vmem:[#allocation2 + $0xb] sm:$0xff] %vm305, %v528
        %v533 = vld [vmem:[%s251] sm:$0xff]
        %v534 = vld [vmem:[%s251 + $0x8] sm:$0xff]
        %537 = vrot.lane.b32.xlu0 %v533, 125
        %v538 = vpop.permute.xlu0 %537
        %539 = vrot.lane.b32.xlu0 %v534, 125
        %v540 = vpop.permute.xlu0 %539
        %543 = vst.msk [vmem:[#allocation2 + $0x3] sm:$0xff] %vm318, %v538
        %544 = vst.msk [vmem:[#allocation2 + $0xb] sm:$0xff] %vm318, %v540
        %v545 = vld [vmem:[%s251] sm:$0xff]
        %v546 = vld [vmem:[%s251 + $0x8] sm:$0xff]
        %549 = vrot.lane.b32.xlu0 %v545, 5
        %v550 = vpop.permute.xlu0 %549
        %551 = vrot.lane.b32.xlu0 %v546, 5
        %v552 = vpop.permute.xlu0 %551
        %555 = vst.msk [vmem:[#allocation2 + $0x3] sm:$0xff] %vm331, %v550
        %556 = vst.msk [vmem:[#allocation2 + $0xb] sm:$0xff] %vm331, %v552
        %v557 = vld [vmem:[%s251] sm:$0xff]
        %v558 = vld [vmem:[%s251 + $0x8] sm:$0xff]
        %561 = vrot.lane.b32.xlu0 %v557, 127
        %v562 = vpop.permute.xlu0 %561
        %563 = vrot.lane.b32.xlu0 %v558, 127
        %v564 = vpop.permute.xlu0 %563
        %567 = vst.msk [vmem:[#allocation2 + $0x3] sm:$0xff] %vm344, %v562
        %568 = vst.msk [vmem:[#allocation2 + $0xb] sm:$0xff] %vm344, %v564
        %v569 = vld [vmem:[%s251] sm:$0xff]
        %v570 = vld [vmem:[%s251 + $0x8] sm:$0xff]
        %573 = vrot.lane.b32.xlu0 %v569, 7
        %v574 = vpop.permute.xlu0 %573
        %575 = vrot.lane.b32.xlu0 %v570, 7
        %v576 = vpop.permute.xlu0 %575
        %579 = vst.msk [vmem:[#allocation2 + $0x3] sm:$0xff] %vm357, %v574
        %580 = vst.msk [vmem:[#allocation2 + $0xb] sm:$0xff] %vm357, %v576
        %v581 = vld [vmem:[%s251] sm:$0xff]
        %v582 = vld [vmem:[%s251 + $0x8] sm:$0xff]
        %585 = vrot.lane.b32.xlu0 %v581, 1
        %v586 = vpop.permute.xlu0 %585
        %587 = vrot.lane.b32.xlu0 %v582, 1
        %v588 = vpop.permute.xlu0 %587
        %591 = vst.msk [vmem:[#allocation2 + $0x3] sm:$0xff] %vm370, %v586
        %592 = vst.msk [vmem:[#allocation2 + $0xb] sm:$0xff] %vm370, %v588
        %v593 = vld [vmem:[%s251] sm:$0xff]
        %v594 = vld [vmem:[%s251 + $0x8] sm:$0xff]
        %597 = vrot.lane.b32.xlu0 %v593, 9
        %v598 = vpop.permute.xlu0 %597
        %599 = vrot.lane.b32.xlu0 %v594, 9
        %v600 = vpop.permute.xlu0 %599
        %603 = vst.msk [vmem:[#allocation2 + $0x3] sm:$0xff] %vm383, %v598
        %604 = vst.msk [vmem:[#allocation2 + $0xb] sm:$0xff] %vm383, %v600
        %v605 = vld [vmem:[#allocation2 + $0x6] sm:$0x1]
        %606 = vst.msk [vmem:[#allocation2] sm:$0x1] %vm387, %v605
        %v607 = vld [vmem:[#allocation2 + $0x11] sm:$0x1]
        %608 = vst.msk [vmem:[#allocation2 + $0x13] sm:$0x1] %vm387, %v607
        %v609 = vld [vmem:[#allocation2 + $0x5] sm:$0x1]
        %610 = vst.msk [vmem:[#allocation2 + $0x1] sm:$0x1] %vm387, %v609
        %v611 = vld [vmem:[#allocation2 + $0x10] sm:$0x1]
        %612 = vst.msk [vmem:[#allocation2 + $0x14] sm:$0x1] %vm387, %v611
        %v613 = vld [vmem:[#allocation2 + $0x4] sm:$0x1]
        %614 = vst.msk [vmem:[#allocation2 + $0x2] sm:$0x1] %vm387, %v613
        %v615 = vld [vmem:[#allocation2 + $0xf] sm:$0x1]
        %616 = vst.msk [vmem:[#allocation2 + $0x15] sm:$0x1] %vm387, %v615
        %v617 = vld [vmem:[#allocation2] sm:$0xff]
        %v618 = vld [vmem:[#allocation2 + $0x8] sm:$0xff]
        %v619 = vld [vmem:[#allocation2 + $0x10] sm:$0x3f]
        %s620 = scalar_lea.vmem [#allocation3], 168
        %621 = vst.msk [vmem:[%s620] sm:$0xff] %vm402, %v617
        %622 = vst.msk [vmem:[%s620 + $0x8] sm:$0xff] %vm402, %v618
        %623 = vst.msk [vmem:[%s620 + $0x10] sm:$0x3f] %vm405, %v619
        %v624 = vld [vmem:[#allocation2] sm:$0xff]
        %v625 = vld [vmem:[#allocation2 + $0x8] sm:$0xff]
        %v626 = vld [vmem:[#allocation2 + $0x10] sm:$0x3f]
        %630 = vrot.lane.b32.xlu0 %v624, 127
        %v631 = vpop.permute.xlu0 %630
        %632 = vrot.lane.b32.xlu0 %v625, 127
        %v633 = vpop.permute.xlu0 %632
        %634 = vrot.lane.b32.xlu0 %v626, 127
        %v635 = vpop.permute.xlu0 %634
        %s639 = scalar_lea.vmem [#allocation3], 192
        %640 = vst.msk [vmem:[%s639] sm:$0xff] %vm402, %v631
        %641 = vst.msk [vmem:[%s639 + $0x8] sm:$0xff] %vm402, %v633
        %642 = vst.msk [vmem:[%s639 + $0x10] sm:$0x3f] %vm405, %v635
        %v643 = vld [vmem:[#allocation2] sm:$0xff]
        %v644 = vld [vmem:[#allocation2 + $0x8] sm:$0xff]
        %v645 = vld [vmem:[#allocation2 + $0x10] sm:$0x3f]
        %649 = vrot.lane.b32.xlu0 %v643, 126
        %v650 = vpop.permute.xlu0 %649
        %651 = vrot.lane.b32.xlu0 %v644, 126
        %v652 = vpop.permute.xlu0 %651
        %653 = vrot.lane.b32.xlu0 %v645, 126
        %v654 = vpop.permute.xlu0 %653
        %s658 = scalar_lea.vmem [#allocation3], 216
        %659 = vst.msk [vmem:[%s658] sm:$0xff] %vm402, %v650
        %660 = vst.msk [vmem:[%s658 + $0x8] sm:$0xff] %vm402, %v652
        %661 = vst.msk [vmem:[%s658 + $0x10] sm:$0x3f] %vm405, %v654
        %v662 = vld [vmem:[#allocation2] sm:$0xff]
        %v663 = vld [vmem:[#allocation2 + $0x8] sm:$0xff]
        %v664 = vld [vmem:[#allocation2 + $0x10] sm:$0x3f]
        %668 = vrot.lane.b32.xlu0 %v662, 125
        %v669 = vpop.permute.xlu0 %668
        %670 = vrot.lane.b32.xlu0 %v663, 125
        %v671 = vpop.permute.xlu0 %670
        %672 = vrot.lane.b32.xlu0 %v664, 125
        %v673 = vpop.permute.xlu0 %672
        %s677 = scalar_lea.vmem [#allocation3], 240
        %678 = vst.msk [vmem:[%s677] sm:$0xff] %vm402, %v669
        %679 = vst.msk [vmem:[%s677 + $0x8] sm:$0xff] %vm402, %v671
        %680 = vst.msk [vmem:[%s677 + $0x10] sm:$0x3f] %vm405, %v673
        %v681 = vld [vmem:[#allocation2] sm:$0xff]
        %v682 = vld [vmem:[#allocation2 + $0x8] sm:$0xff]
        %v683 = vld [vmem:[#allocation2 + $0x10] sm:$0x3f]
        %687 = vrot.lane.b32.xlu0 %v681, 124
        %v688 = vpop.permute.xlu0 %687
        %689 = vrot.lane.b32.xlu0 %v682, 124
        %v690 = vpop.permute.xlu0 %689
        %691 = vrot.lane.b32.xlu0 %v683, 124
        %v692 = vpop.permute.xlu0 %691
        %s696 = scalar_lea.vmem [#allocation3], 264
        %697 = vst.msk [vmem:[%s696] sm:$0xff] %vm402, %v688
        %698 = vst.msk [vmem:[%s696 + $0x8] sm:$0xff] %vm402, %v690
        %699 = vst.msk [vmem:[%s696 + $0x10] sm:$0x3f] %vm405, %v692
        %v700 = vld [vmem:[#allocation2] sm:$0xff]
        %v701 = vld [vmem:[#allocation2 + $0x8] sm:$0xff]
        %v702 = vld [vmem:[#allocation2 + $0x10] sm:$0x3f]
        %706 = vrot.lane.b32.xlu0 %v700, 123
        %v707 = vpop.permute.xlu0 %706
        %708 = vrot.lane.b32.xlu0 %v701, 123
        %v709 = vpop.permute.xlu0 %708
        %710 = vrot.lane.b32.xlu0 %v702, 123
        %v711 = vpop.permute.xlu0 %710
        %s715 = scalar_lea.vmem [#allocation3], 288
        %716 = vst.msk [vmem:[%s715] sm:$0xff] %vm402, %v707
        %717 = vst.msk [vmem:[%s715 + $0x8] sm:$0xff] %vm402, %v709
        %718 = vst.msk [vmem:[%s715 + $0x10] sm:$0x3f] %vm405, %v711
        %v719 = vld [vmem:[#allocation2] sm:$0xff]
        %v720 = vld [vmem:[#allocation2 + $0x8] sm:$0xff]
        %v721 = vld [vmem:[#allocation2 + $0x10] sm:$0x3f]
        %725 = vrot.lane.b32.xlu0 %v719, 122
        %v726 = vpop.permute.xlu0 %725
        %727 = vrot.lane.b32.xlu0 %v720, 122
        %v728 = vpop.permute.xlu0 %727
        %729 = vrot.lane.b32.xlu0 %v721, 122
        %v730 = vpop.permute.xlu0 %729
        %s734 = scalar_lea.vmem [#allocation3], 312
        %735 = vst.msk [vmem:[%s734] sm:$0xff] %vm402, %v726
        %736 = vst.msk [vmem:[%s734 + $0x8] sm:$0xff] %vm402, %v728
        %737 = vst.msk [vmem:[%s734 + $0x10] sm:$0x3f] %vm405, %v730
        %s738 = smul.u32 %s28, 98
        %s739 = sld [smem:[#allocation4 + %s738]]
        %s740 = sadd.s32 %s738, 1
        %s741 = sld [smem:[#allocation4 + %s740]]
        %s742 = sadd.s32 %s738, 2
        %s743 = sld [smem:[#allocation4 + %s742]]
        %s744 = sadd.s32 %s738, 3
        %s745 = sld [smem:[#allocation4 + %s744]]
        %s746 = sadd.s32 %s738, 4
        %s747 = sld [smem:[#allocation4 + %s746]]
        %s748 = sadd.s32 %s738, 5
        %s749 = sld [smem:[#allocation4 + %s748]]
        %s750 = sadd.s32 %s738, 6
        %s751 = sld [smem:[#allocation4 + %s750]]
        %s752 = sadd.s32 %s738, 7
        %s753 = sld [smem:[#allocation4 + %s752]]
        %s754 = sadd.s32 %s738, 8
        %s755 = sld [smem:[#allocation4 + %s754]]
        %s756 = sadd.s32 %s738, 9
        %s757 = sld [smem:[#allocation4 + %s756]]
        %s758 = sadd.s32 %s738, 10
        %s759 = sld [smem:[#allocation4 + %s758]]
        %s760 = sadd.s32 %s738, 11
        %s761 = sld [smem:[#allocation4 + %s760]]
        %s762 = sadd.s32 %s738, 12
        %s763 = sld [smem:[#allocation4 + %s762]]
        %s764 = sadd.s32 %s738, 13
        %s765 = sld [smem:[#allocation4 + %s764]]
        %s766 = sadd.s32 %s738, 14
        %s767 = sld [smem:[#allocation4 + %s766]]
        %s768 = sadd.s32 %s738, 15
        %s769 = sld [smem:[#allocation4 + %s768]]
        %s770 = sadd.s32 %s738, 16
        %s771 = sld [smem:[#allocation4 + %s770]]
        %s772 = sadd.s32 %s738, 17
        %s773 = sld [smem:[#allocation4 + %s772]]
        %s774 = sadd.s32 %s738, 18
        %s775 = sld [smem:[#allocation4 + %s774]]
        %s776 = sadd.s32 %s738, 19
        %s777 = sld [smem:[#allocation4 + %s776]]
        %s778 = sadd.s32 %s738, 20
        %s779 = sld [smem:[#allocation4 + %s778]]
        %s780 = sadd.s32 %s738, 21
        %s781 = sld [smem:[#allocation4 + %s780]]
        %s782 = sadd.s32 %s738, 22
        %s783 = sld [smem:[#allocation4 + %s782]]
        %s784 = sadd.s32 %s738, 23
        %s785 = sld [smem:[#allocation4 + %s784]]
        %s786 = sadd.s32 %s738, 24
        %s787 = sld [smem:[#allocation4 + %s786]]
        %s788 = sadd.s32 %s738, 25
        %s789 = sld [smem:[#allocation4 + %s788]]
        %s790 = sadd.s32 %s738, 26
        %s791 = sld [smem:[#allocation4 + %s790]]
        %s792 = sadd.s32 %s738, 27
        %s793 = sld [smem:[#allocation4 + %s792]]
        %s794 = sadd.s32 %s738, 28
        %s795 = sld [smem:[#allocation4 + %s794]]
        %s796 = sadd.s32 %s738, 29
        %s797 = sld [smem:[#allocation4 + %s796]]
        %s798 = sadd.s32 %s738, 30
        %s799 = sld [smem:[#allocation4 + %s798]]
        %s800 = sadd.s32 %s738, 31
        %s801 = sld [smem:[#allocation4 + %s800]]
        %s802 = sadd.s32 %s738, 32
        %s803 = sld [smem:[#allocation4 + %s802]]
        %s804 = sadd.s32 %s738, 33
        %s805 = sld [smem:[#allocation4 + %s804]]
        %s806 = sadd.s32 %s738, 34
        %s807 = sld [smem:[#allocation4 + %s806]]
        %s808 = sadd.s32 %s738, 35
        %s809 = sld [smem:[#allocation4 + %s808]]
        %s810 = sadd.s32 %s738, 36
        %s811 = sld [smem:[#allocation4 + %s810]]
        %s812 = sadd.s32 %s738, 37
        %s813 = sld [smem:[#allocation4 + %s812]]
        %s814 = sadd.s32 %s738, 38
        %s815 = sld [smem:[#allocation4 + %s814]]
        %s816 = sadd.s32 %s738, 39
        %s817 = sld [smem:[#allocation4 + %s816]]
        %s818 = sadd.s32 %s738, 40
        %s819 = sld [smem:[#allocation4 + %s818]]
        %s820 = sadd.s32 %s738, 41
        %s821 = sld [smem:[#allocation4 + %s820]]
        %s822 = sadd.s32 %s738, 42
        %s823 = sld [smem:[#allocation4 + %s822]]
        %s824 = sadd.s32 %s738, 43
        %s825 = sld [smem:[#allocation4 + %s824]]
        %s826 = sadd.s32 %s738, 44
        %s827 = sld [smem:[#allocation4 + %s826]]
        %s828 = sadd.s32 %s738, 45
        %s829 = sld [smem:[#allocation4 + %s828]]
        %s830 = sadd.s32 %s738, 46
        %s831 = sld [smem:[#allocation4 + %s830]]
        %s832 = sadd.s32 %s738, 47
        %s833 = sld [smem:[#allocation4 + %s832]]
        %s834 = sadd.s32 %s738, 48
        %s835 = sld [smem:[#allocation4 + %s834]]
        %s836 = sadd.s32 %s738, 49
        %s837 = sld [smem:[#allocation4 + %s836]]
        %s838 = sadd.s32 %s738, 50
        %s839 = sld [smem:[#allocation4 + %s838]]
        %s840 = sadd.s32 %s738, 51
        %s841 = sld [smem:[#allocation4 + %s840]]
        %s842 = sadd.s32 %s738, 52
        %s843 = sld [smem:[#allocation4 + %s842]]
        %s844 = sadd.s32 %s738, 53
        %s845 = sld [smem:[#allocation4 + %s844]]
        %s846 = sadd.s32 %s738, 54
        %s847 = sld [smem:[#allocation4 + %s846]]
        %s848 = sadd.s32 %s738, 55
        %s849 = sld [smem:[#allocation4 + %s848]]
        %s850 = sadd.s32 %s738, 56
        %s851 = sld [smem:[#allocation4 + %s850]]
        %s852 = sadd.s32 %s738, 57
        %s853 = sld [smem:[#allocation4 + %s852]]
        %s854 = sadd.s32 %s738, 58
        %s855 = sld [smem:[#allocation4 + %s854]]
        %s856 = sadd.s32 %s738, 59
        %s857 = sld [smem:[#allocation4 + %s856]]
        %s858 = sadd.s32 %s738, 60
        %s859 = sld [smem:[#allocation4 + %s858]]
        %s860 = sadd.s32 %s738, 61
        %s861 = sld [smem:[#allocation4 + %s860]]
        %s862 = sadd.s32 %s738, 62
        %s863 = sld [smem:[#allocation4 + %s862]]
        %s864 = sadd.s32 %s738, 63
        %s865 = sld [smem:[#allocation4 + %s864]]
        %s866 = sadd.s32 %s738, 64
        %s867 = sld [smem:[#allocation4 + %s866]]
        %s868 = sadd.s32 %s738, 65
        %s869 = sld [smem:[#allocation4 + %s868]]
        %s870 = sadd.s32 %s738, 66
        %s871 = sld [smem:[#allocation4 + %s870]]
        %s872 = sadd.s32 %s738, 67
        %s873 = sld [smem:[#allocation4 + %s872]]
        %s874 = sadd.s32 %s738, 68
        %s875 = sld [smem:[#allocation4 + %s874]]
        %s876 = sadd.s32 %s738, 69
        %s877 = sld [smem:[#allocation4 + %s876]]
        %s878 = sadd.s32 %s738, 70
        %s879 = sld [smem:[#allocation4 + %s878]]
        %s880 = sadd.s32 %s738, 71
        %s881 = sld [smem:[#allocation4 + %s880]]
        %s882 = sadd.s32 %s738, 72
        %s883 = sld [smem:[#allocation4 + %s882]]
        %s884 = sadd.s32 %s738, 73
        %s885 = sld [smem:[#allocation4 + %s884]]
        %s886 = sadd.s32 %s738, 74
        %s887 = sld [smem:[#allocation4 + %s886]]
        %s888 = sadd.s32 %s738, 75
        %s889 = sld [smem:[#allocation4 + %s888]]
        %s890 = sadd.s32 %s738, 76
        %s891 = sld [smem:[#allocation4 + %s890]]
        %s892 = sadd.s32 %s738, 77
        %s893 = sld [smem:[#allocation4 + %s892]]
        %s894 = sadd.s32 %s738, 78
        %s895 = sld [smem:[#allocation4 + %s894]]
        %s896 = sadd.s32 %s738, 79
        %s897 = sld [smem:[#allocation4 + %s896]]
        %s898 = sadd.s32 %s738, 80
        %s899 = sld [smem:[#allocation4 + %s898]]
        %s900 = sadd.s32 %s738, 81
        %s901 = sld [smem:[#allocation4 + %s900]]
        %s902 = sadd.s32 %s738, 82
        %s903 = sld [smem:[#allocation4 + %s902]]
        %s904 = sadd.s32 %s738, 83
        %s905 = sld [smem:[#allocation4 + %s904]]
        %s906 = sadd.s32 %s738, 84
        %s907 = sld [smem:[#allocation4 + %s906]]
        %s908 = sadd.s32 %s738, 85
        %s909 = sld [smem:[#allocation4 + %s908]]
        %s910 = sadd.s32 %s738, 86
        %s911 = sld [smem:[#allocation4 + %s910]]
        %s912 = sadd.s32 %s738, 87
        %s913 = sld [smem:[#allocation4 + %s912]]
        %s914 = sadd.s32 %s738, 88
        %s915 = sld [smem:[#allocation4 + %s914]]
        %s916 = sadd.s32 %s738, 89
        %s917 = sld [smem:[#allocation4 + %s916]]
        %s918 = sadd.s32 %s738, 90
        %s919 = sld [smem:[#allocation4 + %s918]]
        %s920 = sadd.s32 %s738, 91
        %s921 = sld [smem:[#allocation4 + %s920]]
        %s922 = sadd.s32 %s738, 92
        %s923 = sld [smem:[#allocation4 + %s922]]
        %s924 = sadd.s32 %s738, 93
        %s925 = sld [smem:[#allocation4 + %s924]]
        %s926 = sadd.s32 %s738, 94
        %s927 = sld [smem:[#allocation4 + %s926]]
        %s928 = sadd.s32 %s738, 95
        %s929 = sld [smem:[#allocation4 + %s928]]
        %s930 = sadd.s32 %s738, 96
        %s931 = sld [smem:[#allocation4 + %s930]]
        %s932 = sadd.s32 %s738, 97
        %s933 = sld [smem:[#allocation4 + %s932]]
        %s934 = sld [smem:[#allocation8 + %s28]]
        %v935 = vld [vmem:[#allocation3] sm:$0xff]
        %v936 = vld [vmem:[#allocation3 + $0x8] sm:$0xff]
        %v937 = vstv %s739
        %v938 = vmul.f32 %v935, %v937
        %v939 = vmul.f32 %v936, %v937
        %v940 = vadd.f32 %v938, 0.0
        %v941 = vadd.f32 %v939, 0.0
        %v942 = vld [vmem:[%s422] sm:$0xff]
        %v943 = vld [vmem:[%s422 + $0x8] sm:$0xff]
        %v944 = vstv %s741
        %v945 = vmul.f32 %v942, %v944
        %v946 = vmul.f32 %v943, %v944
        %v947 = vadd.f32 %v945, 0.0
        %v948 = vadd.f32 %v946, 0.0
        %v949 = vld [vmem:[%s441] sm:$0xff]
        %v950 = vld [vmem:[%s441 + $0x8] sm:$0xff]
        %v951 = vstv %s743
        %v952 = vmul.f32 %v949, %v951
        %v953 = vmul.f32 %v950, %v951
        %v954 = vadd.f32 %v952, 0.0
        %v955 = vadd.f32 %v953, 0.0
        %v956 = vld [vmem:[%s460] sm:$0xff]
        %v957 = vld [vmem:[%s460 + $0x8] sm:$0xff]
        %v958 = vstv %s745
        %v959 = vmul.f32 %v956, %v958
        %v960 = vmul.f32 %v957, %v958
        %v961 = vadd.f32 %v959, 0.0
        %v962 = vadd.f32 %v960, 0.0
        %v963 = vld [vmem:[%s479] sm:$0xff]
        %v964 = vld [vmem:[%s479 + $0x8] sm:$0xff]
        %v965 = vstv %s747
        %v966 = vmul.f32 %v963, %v965
        %v967 = vmul.f32 %v964, %v965
        %v968 = vadd.f32 %v940, %v966
        %v969 = vadd.f32 %v941, %v967
        %v970 = vld [vmem:[%s498] sm:$0xff]
        %v971 = vld [vmem:[%s498 + $0x8] sm:$0xff]
        %v972 = vstv %s749
        %v973 = vmul.f32 %v970, %v972
        %v974 = vmul.f32 %v971, %v972
        %v975 = vadd.f32 %v947, %v973
        %v976 = vadd.f32 %v948, %v974
        %v977 = vld [vmem:[%s517] sm:$0xff]
        %v978 = vld [vmem:[%s517 + $0x8] sm:$0xff]
        %v979 = vstv %s751
        %v980 = vmul.f32 %v977, %v979
        %v981 = vmul.f32 %v978, %v979
        %v982 = vadd.f32 %v954, %v980
        %v983 = vadd.f32 %v955, %v981
        %v984 = vld [vmem:[#allocation3 + $0x1] sm:$0xff]
        %v985 = vld [vmem:[#allocation3 + $0x9] sm:$0xff]
        %v986 = vstv %s753
        %v987 = vmul.f32 %v984, %v986
        %v988 = vmul.f32 %v985, %v986
        %v989 = vadd.f32 %v961, %v987
        %v990 = vadd.f32 %v962, %v988
        %v991 = vld [vmem:[%s422 + $0x1] sm:$0xff]
        %v992 = vld [vmem:[%s422 + $0x9] sm:$0xff]
        %v993 = vstv %s755
        %v994 = vmul.f32 %v991, %v993
        %v995 = vmul.f32 %v992, %v993
        %v996 = vadd.f32 %v968, %v994
        %v997 = vadd.f32 %v969, %v995
        %v998 = vld [vmem:[%s441 + $0x1] sm:$0xff]
        %v999 = vld [vmem:[%s441 + $0x9] sm:$0xff]
        %v1000 = vstv %s757
        %v1001 = vmul.f32 %v998, %v1000
        %v1002 = vmul.f32 %v999, %v1000
        %v1003 = vadd.f32 %v975, %v1001
        %v1004 = vadd.f32 %v976, %v1002
        %v1005 = vld [vmem:[%s460 + $0x1] sm:$0xff]
        %v1006 = vld [vmem:[%s460 + $0x9] sm:$0xff]
        %v1007 = vstv %s759
        %v1008 = vmul.f32 %v1005, %v1007
        %v1009 = vmul.f32 %v1006, %v1007
        %v1010 = vadd.f32 %v982, %v1008
        %v1011 = vadd.f32 %v983, %v1009
        %v1012 = vld [vmem:[%s479 + $0x1] sm:$0xff]
        %v1013 = vld [vmem:[%s479 + $0x9] sm:$0xff]
        %v1014 = vstv %s761
        %v1015 = vmul.f32 %v1012, %v1014
        %v1016 = vmul.f32 %v1013, %v1014
        %v1017 = vadd.f32 %v989, %v1015
        %v1018 = vadd.f32 %v990, %v1016
        %v1019 = vld [vmem:[%s498 + $0x1] sm:$0xff]
        %v1020 = vld [vmem:[%s498 + $0x9] sm:$0xff]
        %v1021 = vstv %s763
        %v1022 = vmul.f32 %v1019, %v1021
        %v1023 = vmul.f32 %v1020, %v1021
        %v1024 = vadd.f32 %v996, %v1022
        %v1025 = vadd.f32 %v997, %v1023
        %v1026 = vld [vmem:[%s517 + $0x1] sm:$0xff]
        %v1027 = vld [vmem:[%s517 + $0x9] sm:$0xff]
        %v1028 = vstv %s765
        %v1029 = vmul.f32 %v1026, %v1028
        %v1030 = vmul.f32 %v1027, %v1028
        %v1031 = vadd.f32 %v1003, %v1029
        %v1032 = vadd.f32 %v1004, %v1030
        %v1033 = vld [vmem:[#allocation3 + $0x2] sm:$0xff]
        %v1034 = vld [vmem:[#allocation3 + $0xa] sm:$0xff]
        %v1035 = vstv %s767
        %v1036 = vmul.f32 %v1033, %v1035
        %v1037 = vmul.f32 %v1034, %v1035
        %v1038 = vadd.f32 %v1010, %v1036
        %v1039 = vadd.f32 %v1011, %v1037
        %v1040 = vld [vmem:[%s422 + $0x2] sm:$0xff]
        %v1041 = vld [vmem:[%s422 + $0xa] sm:$0xff]
        %v1042 = vstv %s769
        %v1043 = vmul.f32 %v1040, %v1042
        %v1044 = vmul.f32 %v1041, %v1042
        %v1045 = vadd.f32 %v1017, %v1043
        %v1046 = vadd.f32 %v1018, %v1044
        %v1047 = vld [vmem:[%s441 + $0x2] sm:$0xff]
        %v1048 = vld [vmem:[%s441 + $0xa] sm:$0xff]
        %v1049 = vstv %s771
        %v1050 = vmul.f32 %v1047, %v1049
        %v1051 = vmul.f32 %v1048, %v1049
        %v1052 = vadd.f32 %v1024, %v1050
        %v1053 = vadd.f32 %v1025, %v1051
        %v1054 = vld [vmem:[%s460 + $0x2] sm:$0xff]
        %v1055 = vld [vmem:[%s460 + $0xa] sm:$0xff]
        %v1056 = vstv %s773
        %v1057 = vmul.f32 %v1054, %v1056
        %v1058 = vmul.f32 %v1055, %v1056
        %v1059 = vadd.f32 %v1031, %v1057
        %v1060 = vadd.f32 %v1032, %v1058
        %v1061 = vld [vmem:[%s479 + $0x2] sm:$0xff]
        %v1062 = vld [vmem:[%s479 + $0xa] sm:$0xff]
        %v1063 = vstv %s775
        %v1064 = vmul.f32 %v1061, %v1063
        %v1065 = vmul.f32 %v1062, %v1063
        %v1066 = vadd.f32 %v1038, %v1064
        %v1067 = vadd.f32 %v1039, %v1065
        %v1068 = vld [vmem:[%s498 + $0x2] sm:$0xff]
        %v1069 = vld [vmem:[%s498 + $0xa] sm:$0xff]
        %v1070 = vstv %s777
        %v1071 = vmul.f32 %v1068, %v1070
        %v1072 = vmul.f32 %v1069, %v1070
        %v1073 = vadd.f32 %v1045, %v1071
        %v1074 = vadd.f32 %v1046, %v1072
        %v1075 = vld [vmem:[%s517 + $0x2] sm:$0xff]
        %v1076 = vld [vmem:[%s517 + $0xa] sm:$0xff]
        %v1077 = vstv %s779
        %v1078 = vmul.f32 %v1075, %v1077
        %v1079 = vmul.f32 %v1076, %v1077
        %v1080 = vadd.f32 %v1052, %v1078
        %v1081 = vadd.f32 %v1053, %v1079
        %v1082 = vld [vmem:[#allocation3 + $0x3] sm:$0xff]
        %v1083 = vld [vmem:[#allocation3 + $0xb] sm:$0xff]
        %v1084 = vstv %s781
        %v1085 = vmul.f32 %v1082, %v1084
        %v1086 = vmul.f32 %v1083, %v1084
        %v1087 = vadd.f32 %v1059, %v1085
        %v1088 = vadd.f32 %v1060, %v1086
        %v1089 = vld [vmem:[%s422 + $0x3] sm:$0xff]
        %v1090 = vld [vmem:[%s422 + $0xb] sm:$0xff]
        %v1091 = vstv %s783
        %v1092 = vmul.f32 %v1089, %v1091
        %v1093 = vmul.f32 %v1090, %v1091
        %v1094 = vadd.f32 %v1066, %v1092
        %v1095 = vadd.f32 %v1067, %v1093
        %v1096 = vld [vmem:[%s441 + $0x3] sm:$0xff]
        %v1097 = vld [vmem:[%s441 + $0xb] sm:$0xff]
        %v1098 = vstv %s785
        %v1099 = vmul.f32 %v1096, %v1098
        %v1100 = vmul.f32 %v1097, %v1098
        %v1101 = vadd.f32 %v1073, %v1099
        %v1102 = vadd.f32 %v1074, %v1100
        %v1103 = vld [vmem:[%s460 + $0x3] sm:$0xff]
        %v1104 = vld [vmem:[%s460 + $0xb] sm:$0xff]
        %v1105 = vstv %s787
        %v1106 = vmul.f32 %v1103, %v1105
        %v1107 = vmul.f32 %v1104, %v1105
        %v1108 = vadd.f32 %v1080, %v1106
        %v1109 = vadd.f32 %v1081, %v1107
        %v1110 = vld [vmem:[%s479 + $0x3] sm:$0xff]
        %v1111 = vld [vmem:[%s479 + $0xb] sm:$0xff]
        %v1112 = vstv %s789
        %v1113 = vmul.f32 %v1110, %v1112
        %v1114 = vmul.f32 %v1111, %v1112
        %v1115 = vadd.f32 %v1087, %v1113
        %v1116 = vadd.f32 %v1088, %v1114
        %v1117 = vld [vmem:[%s498 + $0x3] sm:$0xff]
        %v1118 = vld [vmem:[%s498 + $0xb] sm:$0xff]
        %v1119 = vstv %s791
        %v1120 = vmul.f32 %v1117, %v1119
        %v1121 = vmul.f32 %v1118, %v1119
        %v1122 = vadd.f32 %v1094, %v1120
        %v1123 = vadd.f32 %v1095, %v1121
        %v1124 = vld [vmem:[%s517 + $0x3] sm:$0xff]
        %v1125 = vld [vmem:[%s517 + $0xb] sm:$0xff]
        %v1126 = vstv %s793
        %v1127 = vmul.f32 %v1124, %v1126
        %v1128 = vmul.f32 %v1125, %v1126
        %v1129 = vadd.f32 %v1101, %v1127
        %v1130 = vadd.f32 %v1102, %v1128
        %v1131 = vld [vmem:[#allocation3 + $0x4] sm:$0xff]
        %v1132 = vld [vmem:[#allocation3 + $0xc] sm:$0xff]
        %v1133 = vstv %s795
        %v1134 = vmul.f32 %v1131, %v1133
        %v1135 = vmul.f32 %v1132, %v1133
        %v1136 = vadd.f32 %v1108, %v1134
        %v1137 = vadd.f32 %v1109, %v1135
        %v1138 = vld [vmem:[%s422 + $0x4] sm:$0xff]
        %v1139 = vld [vmem:[%s422 + $0xc] sm:$0xff]
        %v1140 = vstv %s797
        %v1141 = vmul.f32 %v1138, %v1140
        %v1142 = vmul.f32 %v1139, %v1140
        %v1143 = vadd.f32 %v1115, %v1141
        %v1144 = vadd.f32 %v1116, %v1142
        %v1145 = vld [vmem:[%s441 + $0x4] sm:$0xff]
        %v1146 = vld [vmem:[%s441 + $0xc] sm:$0xff]
        %v1147 = vstv %s799
        %v1148 = vmul.f32 %v1145, %v1147
        %v1149 = vmul.f32 %v1146, %v1147
        %v1150 = vadd.f32 %v1122, %v1148
        %v1151 = vadd.f32 %v1123, %v1149
        %v1152 = vld [vmem:[%s460 + $0x4] sm:$0xff]
        %v1153 = vld [vmem:[%s460 + $0xc] sm:$0xff]
        %v1154 = vstv %s801
        %v1155 = vmul.f32 %v1152, %v1154
        %v1156 = vmul.f32 %v1153, %v1154
        %v1157 = vadd.f32 %v1129, %v1155
        %v1158 = vadd.f32 %v1130, %v1156
        %v1159 = vld [vmem:[%s479 + $0x4] sm:$0xff]
        %v1160 = vld [vmem:[%s479 + $0xc] sm:$0xff]
        %v1161 = vstv %s803
        %v1162 = vmul.f32 %v1159, %v1161
        %v1163 = vmul.f32 %v1160, %v1161
        %v1164 = vadd.f32 %v1136, %v1162
        %v1165 = vadd.f32 %v1137, %v1163
        %v1166 = vld [vmem:[%s498 + $0x4] sm:$0xff]
        %v1167 = vld [vmem:[%s498 + $0xc] sm:$0xff]
        %v1168 = vstv %s805
        %v1169 = vmul.f32 %v1166, %v1168
        %v1170 = vmul.f32 %v1167, %v1168
        %v1171 = vadd.f32 %v1143, %v1169
        %v1172 = vadd.f32 %v1144, %v1170
        %v1173 = vld [vmem:[%s517 + $0x4] sm:$0xff]
        %v1174 = vld [vmem:[%s517 + $0xc] sm:$0xff]
        %v1175 = vstv %s807
        %v1176 = vmul.f32 %v1173, %v1175
        %v1177 = vmul.f32 %v1174, %v1175
        %v1178 = vadd.f32 %v1150, %v1176
        %v1179 = vadd.f32 %v1151, %v1177
        %v1180 = vld [vmem:[#allocation3 + $0x5] sm:$0xff]
        %v1181 = vld [vmem:[#allocation3 + $0xd] sm:$0xff]
        %v1182 = vstv %s809
        %v1183 = vmul.f32 %v1180, %v1182
        %v1184 = vmul.f32 %v1181, %v1182
        %v1185 = vadd.f32 %v1157, %v1183
        %v1186 = vadd.f32 %v1158, %v1184
        %v1187 = vld [vmem:[%s422 + $0x5] sm:$0xff]
        %v1188 = vld [vmem:[%s422 + $0xd] sm:$0xff]
        %v1189 = vstv %s811
        %v1190 = vmul.f32 %v1187, %v1189
        %v1191 = vmul.f32 %v1188, %v1189
        %v1192 = vadd.f32 %v1164, %v1190
        %v1193 = vadd.f32 %v1165, %v1191
        %v1194 = vld [vmem:[%s441 + $0x5] sm:$0xff]
        %v1195 = vld [vmem:[%s441 + $0xd] sm:$0xff]
        %v1196 = vstv %s813
        %v1197 = vmul.f32 %v1194, %v1196
        %v1198 = vmul.f32 %v1195, %v1196
        %v1199 = vadd.f32 %v1171, %v1197
        %v1200 = vadd.f32 %v1172, %v1198
        %v1201 = vld [vmem:[%s460 + $0x5] sm:$0xff]
        %v1202 = vld [vmem:[%s460 + $0xd] sm:$0xff]
        %v1203 = vstv %s815
        %v1204 = vmul.f32 %v1201, %v1203
        %v1205 = vmul.f32 %v1202, %v1203
        %v1206 = vadd.f32 %v1178, %v1204
        %v1207 = vadd.f32 %v1179, %v1205
        %v1208 = vld [vmem:[%s479 + $0x5] sm:$0xff]
        %v1209 = vld [vmem:[%s479 + $0xd] sm:$0xff]
        %v1210 = vstv %s817
        %v1211 = vmul.f32 %v1208, %v1210
        %v1212 = vmul.f32 %v1209, %v1210
        %v1213 = vadd.f32 %v1185, %v1211
        %v1214 = vadd.f32 %v1186, %v1212
        %v1215 = vld [vmem:[%s498 + $0x5] sm:$0xff]
        %v1216 = vld [vmem:[%s498 + $0xd] sm:$0xff]
        %v1217 = vstv %s819
        %v1218 = vmul.f32 %v1215, %v1217
        %v1219 = vmul.f32 %v1216, %v1217
        %v1220 = vadd.f32 %v1192, %v1218
        %v1221 = vadd.f32 %v1193, %v1219
        %v1222 = vld [vmem:[%s517 + $0x5] sm:$0xff]
        %v1223 = vld [vmem:[%s517 + $0xd] sm:$0xff]
        %v1224 = vstv %s821
        %v1225 = vmul.f32 %v1222, %v1224
        %v1226 = vmul.f32 %v1223, %v1224
        %v1227 = vadd.f32 %v1199, %v1225
        %v1228 = vadd.f32 %v1200, %v1226
        %v1229 = vld [vmem:[#allocation3 + $0x6] sm:$0xff]
        %v1230 = vld [vmem:[#allocation3 + $0xe] sm:$0xff]
        %v1231 = vstv %s823
        %v1232 = vmul.f32 %v1229, %v1231
        %v1233 = vmul.f32 %v1230, %v1231
        %v1234 = vadd.f32 %v1206, %v1232
        %v1235 = vadd.f32 %v1207, %v1233
        %v1236 = vld [vmem:[%s422 + $0x6] sm:$0xff]
        %v1237 = vld [vmem:[%s422 + $0xe] sm:$0xff]
        %v1238 = vstv %s825
        %v1239 = vmul.f32 %v1236, %v1238
        %v1240 = vmul.f32 %v1237, %v1238
        %v1241 = vadd.f32 %v1213, %v1239
        %v1242 = vadd.f32 %v1214, %v1240
        %v1243 = vld [vmem:[%s441 + $0x6] sm:$0xff]
        %v1244 = vld [vmem:[%s441 + $0xe] sm:$0xff]
        %v1245 = vstv %s827
        %v1246 = vmul.f32 %v1243, %v1245
        %v1247 = vmul.f32 %v1244, %v1245
        %v1248 = vadd.f32 %v1220, %v1246
        %v1249 = vadd.f32 %v1221, %v1247
        %v1250 = vld [vmem:[%s460 + $0x6] sm:$0xff]
        %v1251 = vld [vmem:[%s460 + $0xe] sm:$0xff]
        %v1252 = vstv %s829
        %v1253 = vmul.f32 %v1250, %v1252
        %v1254 = vmul.f32 %v1251, %v1252
        %v1255 = vadd.f32 %v1227, %v1253
        %v1256 = vadd.f32 %v1228, %v1254
        %v1257 = vld [vmem:[%s479 + $0x6] sm:$0xff]
        %v1258 = vld [vmem:[%s479 + $0xe] sm:$0xff]
        %v1259 = vstv %s831
        %v1260 = vmul.f32 %v1257, %v1259
        %v1261 = vmul.f32 %v1258, %v1259
        %v1262 = vadd.f32 %v1234, %v1260
        %v1263 = vadd.f32 %v1235, %v1261
        %v1264 = vld [vmem:[%s498 + $0x6] sm:$0xff]
        %v1265 = vld [vmem:[%s498 + $0xe] sm:$0xff]
        %v1266 = vstv %s833
        %v1267 = vmul.f32 %v1264, %v1266
        %v1268 = vmul.f32 %v1265, %v1266
        %v1269 = vadd.f32 %v1241, %v1267
        %v1270 = vadd.f32 %v1242, %v1268
        %v1271 = vld [vmem:[%s517 + $0x6] sm:$0xff]
        %v1272 = vld [vmem:[%s517 + $0xe] sm:$0xff]
        %v1273 = vstv %s835
        %v1274 = vmul.f32 %v1271, %v1273
        %v1275 = vmul.f32 %v1272, %v1273
        %v1276 = vadd.f32 %v1248, %v1274
        %v1277 = vadd.f32 %v1249, %v1275
        %v1278 = vld [vmem:[%s620] sm:$0xff]
        %v1279 = vld [vmem:[%s620 + $0x8] sm:$0xff]
        %v1280 = vstv %s837
        %v1281 = vmul.f32 %v1278, %v1280
        %v1282 = vmul.f32 %v1279, %v1280
        %v1283 = vadd.f32 %v1255, %v1281
        %v1284 = vadd.f32 %v1256, %v1282
        %v1285 = vld [vmem:[%s639] sm:$0xff]
        %v1286 = vld [vmem:[%s639 + $0x8] sm:$0xff]
        %v1287 = vstv %s839
        %v1288 = vmul.f32 %v1285, %v1287
        %v1289 = vmul.f32 %v1286, %v1287
        %v1290 = vadd.f32 %v1262, %v1288
        %v1291 = vadd.f32 %v1263, %v1289
        %v1292 = vld [vmem:[%s658] sm:$0xff]
        %v1293 = vld [vmem:[%s658 + $0x8] sm:$0xff]
        %v1294 = vstv %s841
        %v1295 = vmul.f32 %v1292, %v1294
        %v1296 = vmul.f32 %v1293, %v1294
        %v1297 = vadd.f32 %v1269, %v1295
        %v1298 = vadd.f32 %v1270, %v1296
        %v1299 = vld [vmem:[%s677] sm:$0xff]
        %v1300 = vld [vmem:[%s677 + $0x8] sm:$0xff]
        %v1301 = vstv %s843
        %v1302 = vmul.f32 %v1299, %v1301
        %v1303 = vmul.f32 %v1300, %v1301
        %v1304 = vadd.f32 %v1276, %v1302
        %v1305 = vadd.f32 %v1277, %v1303
        %v1306 = vld [vmem:[%s696] sm:$0xff]
        %v1307 = vld [vmem:[%s696 + $0x8] sm:$0xff]
        %v1308 = vstv %s845
        %v1309 = vmul.f32 %v1306, %v1308
        %v1310 = vmul.f32 %v1307, %v1308
        %v1311 = vadd.f32 %v1283, %v1309
        %v1312 = vadd.f32 %v1284, %v1310
        %v1313 = vld [vmem:[%s715] sm:$0xff]
        %v1314 = vld [vmem:[%s715 + $0x8] sm:$0xff]
        %v1315 = vstv %s847
        %v1316 = vmul.f32 %v1313, %v1315
        %v1317 = vmul.f32 %v1314, %v1315
        %v1318 = vadd.f32 %v1290, %v1316
        %v1319 = vadd.f32 %v1291, %v1317
        %v1320 = vld [vmem:[%s734] sm:$0xff]
        %v1321 = vld [vmem:[%s734 + $0x8] sm:$0xff]
        %v1322 = vstv %s849
        %v1323 = vmul.f32 %v1320, %v1322
        %v1324 = vmul.f32 %v1321, %v1322
        %v1325 = vadd.f32 %v1297, %v1323
        %v1326 = vadd.f32 %v1298, %v1324
        %v1327 = vld [vmem:[%s620 + $0x1] sm:$0xff]
        %v1328 = vld [vmem:[%s620 + $0x9] sm:$0xff]
        %v1329 = vstv %s851
        %v1330 = vmul.f32 %v1327, %v1329
        %v1331 = vmul.f32 %v1328, %v1329
        %v1332 = vadd.f32 %v1304, %v1330
        %v1333 = vadd.f32 %v1305, %v1331
        %v1334 = vld [vmem:[%s639 + $0x1] sm:$0xff]
        %v1335 = vld [vmem:[%s639 + $0x9] sm:$0xff]
        %v1336 = vstv %s853
        %v1337 = vmul.f32 %v1334, %v1336
        %v1338 = vmul.f32 %v1335, %v1336
        %v1339 = vadd.f32 %v1311, %v1337
        %v1340 = vadd.f32 %v1312, %v1338
        %v1341 = vld [vmem:[%s658 + $0x1] sm:$0xff]
        %v1342 = vld [vmem:[%s658 + $0x9] sm:$0xff]
        %v1343 = vstv %s855
        %v1344 = vmul.f32 %v1341, %v1343
        %v1345 = vmul.f32 %v1342, %v1343
        %v1346 = vadd.f32 %v1318, %v1344
        %v1347 = vadd.f32 %v1319, %v1345
        %v1348 = vld [vmem:[%s677 + $0x1] sm:$0xff]
        %v1349 = vld [vmem:[%s677 + $0x9] sm:$0xff]
        %v1350 = vstv %s857
        %v1351 = vmul.f32 %v1348, %v1350
        %v1352 = vmul.f32 %v1349, %v1350
        %v1353 = vadd.f32 %v1325, %v1351
        %v1354 = vadd.f32 %v1326, %v1352
        %v1355 = vld [vmem:[%s696 + $0x1] sm:$0xff]
        %v1356 = vld [vmem:[%s696 + $0x9] sm:$0xff]
        %v1357 = vstv %s859
        %v1358 = vmul.f32 %v1355, %v1357
        %v1359 = vmul.f32 %v1356, %v1357
        %v1360 = vadd.f32 %v1332, %v1358
        %v1361 = vadd.f32 %v1333, %v1359
        %v1362 = vld [vmem:[%s715 + $0x1] sm:$0xff]
        %v1363 = vld [vmem:[%s715 + $0x9] sm:$0xff]
        %v1364 = vstv %s861
        %v1365 = vmul.f32 %v1362, %v1364
        %v1366 = vmul.f32 %v1363, %v1364
        %v1367 = vadd.f32 %v1339, %v1365
        %v1368 = vadd.f32 %v1340, %v1366
        %v1369 = vld [vmem:[%s734 + $0x1] sm:$0xff]
        %v1370 = vld [vmem:[%s734 + $0x9] sm:$0xff]
        %v1371 = vstv %s863
        %v1372 = vmul.f32 %v1369, %v1371
        %v1373 = vmul.f32 %v1370, %v1371
        %v1374 = vadd.f32 %v1346, %v1372
        %v1375 = vadd.f32 %v1347, %v1373
        %v1376 = vld [vmem:[%s620 + $0x2] sm:$0xff]
        %v1377 = vld [vmem:[%s620 + $0xa] sm:$0xff]
        %v1378 = vstv %s865
        %v1379 = vmul.f32 %v1376, %v1378
        %v1380 = vmul.f32 %v1377, %v1378
        %v1381 = vadd.f32 %v1353, %v1379
        %v1382 = vadd.f32 %v1354, %v1380
        %v1383 = vld [vmem:[%s639 + $0x2] sm:$0xff]
        %v1384 = vld [vmem:[%s639 + $0xa] sm:$0xff]
        %v1385 = vstv %s867
        %v1386 = vmul.f32 %v1383, %v1385
        %v1387 = vmul.f32 %v1384, %v1385
        %v1388 = vadd.f32 %v1360, %v1386
        %v1389 = vadd.f32 %v1361, %v1387
        %v1390 = vld [vmem:[%s658 + $0x2] sm:$0xff]
        %v1391 = vld [vmem:[%s658 + $0xa] sm:$0xff]
        %v1392 = vstv %s869
        %v1393 = vmul.f32 %v1390, %v1392
        %v1394 = vmul.f32 %v1391, %v1392
        %v1395 = vadd.f32 %v1367, %v1393
        %v1396 = vadd.f32 %v1368, %v1394
        %v1397 = vld [vmem:[%s677 + $0x2] sm:$0xff]
        %v1398 = vld [vmem:[%s677 + $0xa] sm:$0xff]
        %v1399 = vstv %s871
        %v1400 = vmul.f32 %v1397, %v1399
        %v1401 = vmul.f32 %v1398, %v1399
        %v1402 = vadd.f32 %v1374, %v1400
        %v1403 = vadd.f32 %v1375, %v1401
        %v1404 = vld [vmem:[%s696 + $0x2] sm:$0xff]
        %v1405 = vld [vmem:[%s696 + $0xa] sm:$0xff]
        %v1406 = vstv %s873
        %v1407 = vmul.f32 %v1404, %v1406
        %v1408 = vmul.f32 %v1405, %v1406
        %v1409 = vadd.f32 %v1381, %v1407
        %v1410 = vadd.f32 %v1382, %v1408
        %v1411 = vld [vmem:[%s715 + $0x2] sm:$0xff]
        %v1412 = vld [vmem:[%s715 + $0xa] sm:$0xff]
        %v1413 = vstv %s875
        %v1414 = vmul.f32 %v1411, %v1413
        %v1415 = vmul.f32 %v1412, %v1413
        %v1416 = vadd.f32 %v1388, %v1414
        %v1417 = vadd.f32 %v1389, %v1415
        %v1418 = vld [vmem:[%s734 + $0x2] sm:$0xff]
        %v1419 = vld [vmem:[%s734 + $0xa] sm:$0xff]
        %v1420 = vstv %s877
        %v1421 = vmul.f32 %v1418, %v1420
        %v1422 = vmul.f32 %v1419, %v1420
        %v1423 = vadd.f32 %v1395, %v1421
        %v1424 = vadd.f32 %v1396, %v1422
        %v1425 = vld [vmem:[%s620 + $0x3] sm:$0xff]
        %v1426 = vld [vmem:[%s620 + $0xb] sm:$0xff]
        %v1427 = vstv %s879
        %v1428 = vmul.f32 %v1425, %v1427
        %v1429 = vmul.f32 %v1426, %v1427
        %v1430 = vadd.f32 %v1402, %v1428
        %v1431 = vadd.f32 %v1403, %v1429
        %v1432 = vld [vmem:[%s639 + $0x3] sm:$0xff]
        %v1433 = vld [vmem:[%s639 + $0xb] sm:$0xff]
        %v1434 = vstv %s881
        %v1435 = vmul.f32 %v1432, %v1434
        %v1436 = vmul.f32 %v1433, %v1434
        %v1437 = vadd.f32 %v1409, %v1435
        %v1438 = vadd.f32 %v1410, %v1436
        %v1439 = vld [vmem:[%s658 + $0x3] sm:$0xff]
        %v1440 = vld [vmem:[%s658 + $0xb] sm:$0xff]
        %v1441 = vstv %s883
        %v1442 = vmul.f32 %v1439, %v1441
        %v1443 = vmul.f32 %v1440, %v1441
        %v1444 = vadd.f32 %v1416, %v1442
        %v1445 = vadd.f32 %v1417, %v1443
        %v1446 = vld [vmem:[%s677 + $0x3] sm:$0xff]
        %v1447 = vld [vmem:[%s677 + $0xb] sm:$0xff]
        %v1448 = vstv %s885
        %v1449 = vmul.f32 %v1446, %v1448
        %v1450 = vmul.f32 %v1447, %v1448
        %v1451 = vadd.f32 %v1423, %v1449
        %v1452 = vadd.f32 %v1424, %v1450
        %v1453 = vld [vmem:[%s696 + $0x3] sm:$0xff]
        %v1454 = vld [vmem:[%s696 + $0xb] sm:$0xff]
        %v1455 = vstv %s887
        %v1456 = vmul.f32 %v1453, %v1455
        %v1457 = vmul.f32 %v1454, %v1455
        %v1458 = vadd.f32 %v1430, %v1456
        %v1459 = vadd.f32 %v1431, %v1457
        %v1460 = vld [vmem:[%s715 + $0x3] sm:$0xff]
        %v1461 = vld [vmem:[%s715 + $0xb] sm:$0xff]
        %v1462 = vstv %s889
        %v1463 = vmul.f32 %v1460, %v1462
        %v1464 = vmul.f32 %v1461, %v1462
        %v1465 = vadd.f32 %v1437, %v1463
        %v1466 = vadd.f32 %v1438, %v1464
        %v1467 = vld [vmem:[%s734 + $0x3] sm:$0xff]
        %v1468 = vld [vmem:[%s734 + $0xb] sm:$0xff]
        %v1469 = vstv %s891
        %v1470 = vmul.f32 %v1467, %v1469
        %v1471 = vmul.f32 %v1468, %v1469
        %v1472 = vadd.f32 %v1444, %v1470
        %v1473 = vadd.f32 %v1445, %v1471
        %v1474 = vld [vmem:[%s620 + $0x4] sm:$0xff]
        %v1475 = vld [vmem:[%s620 + $0xc] sm:$0xff]
        %v1476 = vstv %s893
        %v1477 = vmul.f32 %v1474, %v1476
        %v1478 = vmul.f32 %v1475, %v1476
        %v1479 = vadd.f32 %v1451, %v1477
        %v1480 = vadd.f32 %v1452, %v1478
        %v1481 = vld [vmem:[%s639 + $0x4] sm:$0xff]
        %v1482 = vld [vmem:[%s639 + $0xc] sm:$0xff]
        %v1483 = vstv %s895
        %v1484 = vmul.f32 %v1481, %v1483
        %v1485 = vmul.f32 %v1482, %v1483
        %v1486 = vadd.f32 %v1458, %v1484
        %v1487 = vadd.f32 %v1459, %v1485
        %v1488 = vld [vmem:[%s658 + $0x4] sm:$0xff]
        %v1489 = vld [vmem:[%s658 + $0xc] sm:$0xff]
        %v1490 = vstv %s897
        %v1491 = vmul.f32 %v1488, %v1490
        %v1492 = vmul.f32 %v1489, %v1490
        %v1493 = vadd.f32 %v1465, %v1491
        %v1494 = vadd.f32 %v1466, %v1492
        %v1495 = vld [vmem:[%s677 + $0x4] sm:$0xff]
        %v1496 = vld [vmem:[%s677 + $0xc] sm:$0xff]
        %v1497 = vstv %s899
        %v1498 = vmul.f32 %v1495, %v1497
        %v1499 = vmul.f32 %v1496, %v1497
        %v1500 = vadd.f32 %v1472, %v1498
        %v1501 = vadd.f32 %v1473, %v1499
        %v1502 = vld [vmem:[%s696 + $0x4] sm:$0xff]
        %v1503 = vld [vmem:[%s696 + $0xc] sm:$0xff]
        %v1504 = vstv %s901
        %v1505 = vmul.f32 %v1502, %v1504
        %v1506 = vmul.f32 %v1503, %v1504
        %v1507 = vadd.f32 %v1479, %v1505
        %v1508 = vadd.f32 %v1480, %v1506
        %v1509 = vld [vmem:[%s715 + $0x4] sm:$0xff]
        %v1510 = vld [vmem:[%s715 + $0xc] sm:$0xff]
        %v1511 = vstv %s903
        %v1512 = vmul.f32 %v1509, %v1511
        %v1513 = vmul.f32 %v1510, %v1511
        %v1514 = vadd.f32 %v1486, %v1512
        %v1515 = vadd.f32 %v1487, %v1513
        %v1516 = vld [vmem:[%s734 + $0x4] sm:$0xff]
        %v1517 = vld [vmem:[%s734 + $0xc] sm:$0xff]
        %v1518 = vstv %s905
        %v1519 = vmul.f32 %v1516, %v1518
        %v1520 = vmul.f32 %v1517, %v1518
        %v1521 = vadd.f32 %v1493, %v1519
        %v1522 = vadd.f32 %v1494, %v1520
        %v1523 = vld [vmem:[%s620 + $0x5] sm:$0xff]
        %v1524 = vld [vmem:[%s620 + $0xd] sm:$0xff]
        %v1525 = vstv %s907
        %v1526 = vmul.f32 %v1523, %v1525
        %v1527 = vmul.f32 %v1524, %v1525
        %v1528 = vadd.f32 %v1500, %v1526
        %v1529 = vadd.f32 %v1501, %v1527
        %v1530 = vld [vmem:[%s639 + $0x5] sm:$0xff]
        %v1531 = vld [vmem:[%s639 + $0xd] sm:$0xff]
        %v1532 = vstv %s909
        %v1533 = vmul.f32 %v1530, %v1532
        %v1534 = vmul.f32 %v1531, %v1532
        %v1535 = vadd.f32 %v1507, %v1533
        %v1536 = vadd.f32 %v1508, %v1534
        %v1537 = vld [vmem:[%s658 + $0x5] sm:$0xff]
        %v1538 = vld [vmem:[%s658 + $0xd] sm:$0xff]
        %v1539 = vstv %s911
        %v1540 = vmul.f32 %v1537, %v1539
        %v1541 = vmul.f32 %v1538, %v1539
        %v1542 = vadd.f32 %v1514, %v1540
        %v1543 = vadd.f32 %v1515, %v1541
        %v1544 = vld [vmem:[%s677 + $0x5] sm:$0xff]
        %v1545 = vld [vmem:[%s677 + $0xd] sm:$0xff]
        %v1546 = vstv %s913
        %v1547 = vmul.f32 %v1544, %v1546
        %v1548 = vmul.f32 %v1545, %v1546
        %v1549 = vadd.f32 %v1521, %v1547
        %v1550 = vadd.f32 %v1522, %v1548
        %v1551 = vld [vmem:[%s696 + $0x5] sm:$0xff]
        %v1552 = vld [vmem:[%s696 + $0xd] sm:$0xff]
        %v1553 = vstv %s915
        %v1554 = vmul.f32 %v1551, %v1553
        %v1555 = vmul.f32 %v1552, %v1553
        %v1556 = vadd.f32 %v1528, %v1554
        %v1557 = vadd.f32 %v1529, %v1555
        %v1558 = vld [vmem:[%s715 + $0x5] sm:$0xff]
        %v1559 = vld [vmem:[%s715 + $0xd] sm:$0xff]
        %v1560 = vstv %s917
        %v1561 = vmul.f32 %v1558, %v1560
        %v1562 = vmul.f32 %v1559, %v1560
        %v1563 = vadd.f32 %v1535, %v1561
        %v1564 = vadd.f32 %v1536, %v1562
        %v1565 = vld [vmem:[%s734 + $0x5] sm:$0xff]
        %v1566 = vld [vmem:[%s734 + $0xd] sm:$0xff]
        %v1567 = vstv %s919
        %v1568 = vmul.f32 %v1565, %v1567
        %v1569 = vmul.f32 %v1566, %v1567
        %v1570 = vadd.f32 %v1542, %v1568
        %v1571 = vadd.f32 %v1543, %v1569
        %v1572 = vld [vmem:[%s620 + $0x6] sm:$0xff]
        %v1573 = vld [vmem:[%s620 + $0xe] sm:$0xff]
        %v1574 = vstv %s921
        %v1575 = vmul.f32 %v1572, %v1574
        %v1576 = vmul.f32 %v1573, %v1574
        %v1577 = vadd.f32 %v1549, %v1575
        %v1578 = vadd.f32 %v1550, %v1576
        %v1579 = vld [vmem:[%s639 + $0x6] sm:$0xff]
        %v1580 = vld [vmem:[%s639 + $0xe] sm:$0xff]
        %v1581 = vstv %s923
        %v1582 = vmul.f32 %v1579, %v1581
        %v1583 = vmul.f32 %v1580, %v1581
        %v1584 = vadd.f32 %v1556, %v1582
        %v1585 = vadd.f32 %v1557, %v1583
        %v1586 = vld [vmem:[%s658 + $0x6] sm:$0xff]
        %v1587 = vld [vmem:[%s658 + $0xe] sm:$0xff]
        %v1588 = vstv %s925
        %v1589 = vmul.f32 %v1586, %v1588
        %v1590 = vmul.f32 %v1587, %v1588
        %v1591 = vadd.f32 %v1563, %v1589
        %v1592 = vadd.f32 %v1564, %v1590
        %v1593 = vld [vmem:[%s677 + $0x6] sm:$0xff]
        %v1594 = vld [vmem:[%s677 + $0xe] sm:$0xff]
        %v1595 = vstv %s927
        %v1596 = vmul.f32 %v1593, %v1595
        %v1597 = vmul.f32 %v1594, %v1595
        %v1598 = vadd.f32 %v1570, %v1596
        %v1599 = vadd.f32 %v1571, %v1597
        %v1600 = vld [vmem:[%s696 + $0x6] sm:$0xff]
        %v1601 = vld [vmem:[%s696 + $0xe] sm:$0xff]
        %v1602 = vstv %s929
        %v1603 = vmul.f32 %v1600, %v1602
        %v1604 = vmul.f32 %v1601, %v1602
        %v1605 = vadd.f32 %v1577, %v1603
        %v1606 = vadd.f32 %v1578, %v1604
        %v1607 = vld [vmem:[%s715 + $0x6] sm:$0xff]
        %v1608 = vld [vmem:[%s715 + $0xe] sm:$0xff]
        %v1609 = vstv %s931
        %v1610 = vmul.f32 %v1607, %v1609
        %v1611 = vmul.f32 %v1608, %v1609
        %v1612 = vadd.f32 %v1584, %v1610
        %v1613 = vadd.f32 %v1585, %v1611
        %v1614 = vld [vmem:[%s734 + $0x6] sm:$0xff]
        %v1615 = vld [vmem:[%s734 + $0xe] sm:$0xff]
        %v1616 = vstv %s933
        %v1617 = vmul.f32 %v1614, %v1616
        %v1618 = vmul.f32 %v1615, %v1616
        %v1619 = vadd.f32 %v1591, %v1617
        %v1620 = vadd.f32 %v1592, %v1618
        %v1621 = vadd.f32 %v1612, %v1619
        %v1622 = vadd.f32 %v1613, %v1620
        %v1623 = vadd.f32 %v1598, %v1605
        %v1624 = vadd.f32 %v1599, %v1606
        %v1625 = vadd.f32 %v1621, %v1623
        %v1626 = vadd.f32 %v1622, %v1624
        %v1627 = vstv %s934
        %v1628 = vadd.f32 %v1625, %v1627
        %v1629 = vadd.f32 %v1626, %v1627
        %v1630 = vsub.f32 0.0, %v1628
        %v1631 = vsub.f32 0.0, %v1629
        %v1632 = vmul.f32 %v1630, 1.442695
        %v1633 = vpow.pop %v1632
        %v1634 = vmul.f32 %v1631, 1.442695
        %v1635 = vpow.pop %v1634
        %v1636 = vadd.f32 %v1633, 1.0
        %v1637 = vadd.f32 %v1635, 1.0
        %v1638 = vrcp.pop %v1636
        %v1639 = vmul.f32 1.0, %v1638
        %v1640 = vrcp.pop %v1637
        %v1641 = vmul.f32 1.0, %v1640
        %1642 = vst.msk [vmem:[%s285] sm:$0xff] %vm402, %v1639
        %1643 = vst.msk [vmem:[%s285 + $0x8] sm:$0xff] %vm402, %v1641
        %s1644 = sand.u32 %s143, 1
        %s1645 = scalar_lea.sflag [#allocation6], %s1644
        %s1646 = sand.u32 %s143, 1
        %s1647 = smul.addr %s1646, 16
        %s1648 = scalar_lea.vmem [#allocation11], %s1647
        // Predicated region
        $region49: #{pixel_attention.1} parent=35 // pred_check
          %p1649 = pneg %p153
        $region50: #{pixel_attention.1} parent=35 // pred_check_branch
          %1651 = sbr.rel (%p1649) target = $region52
        $region51: #{pixel_attention.1} parent=35 // pred_region
          %s1653 = ssub.s32 256, 256
          %1654 = vsyncadd %s1645, %s1653
          %s1655 = smul.addr %s28, 2
          %s1656 = smul.addr %s27, 8
          %s1657 = sadd.s32 %s1655, %s1656
          %s1658 = smul.addr %s1657, 128
          %s1659 = scalar_lea.hbm %s4, %s1658
          %s1660 = sshll.u32 %s1648, 4
          %s1661 = int_to_ptr.vmem [resolvable:$true] %s1660
          %1666 = dma.vmem_to_hbm [thread:$0]  %s1661, 256, %s1659, %s1645, 128, 128, 8
        $region52: #{pixel_attention.1} parent=35 // pred_fallthru
          _
      $region36: #{pixel_attention.1} parent=5 // pred_fallthru
        _
      %p1667 = scmp.le.s32.totalorder 2, %s18
      // Predicated region
      $region53: #{pixel_attention.1} parent=5 // pred_check
        %p1668 = pneg %p1667
      $region54: #{pixel_attention.1} parent=5 // pred_check_branch
        %1670 = sbr.rel (%p1668) target = $region56
      $region55: #{pixel_attention.1} parent=5 // pred_region
        %s1671 = ssub.s32 %s18, 2
        // Predicated region
        $region57: #{pixel_attention.1} parent=55 // pred_check
          %p1672 = pneg %p159
        $region58: #{pixel_attention.1} parent=55 // pred_check_branch
          %1674 = sbr.rel (%p1672) target = $region60
        $region59: #{pixel_attention.1} parent=55 // pred_region
          %s1675 = sand.u32 %s144, 1
          %s1676 = scalar_lea.sflag [#allocation6], %s1675
          %s1677 = sand.u32 %s144, 1
          %s1678 = smul.addr %s1677, 16
          %s1679 = scalar_lea.vmem [#allocation11], %s1678
          %1680 = dma.done %s1676, 256
        $region60: #{pixel_attention.1} parent=55 // pred_fallthru
          _
      $region56: #{pixel_attention.1} parent=5 // pred_fallthru
        _
    $region6: #{pixel_attention.1} parent=1 // loop_footer
      %s22 = sadd.s32 1, %s18
    $region7: #{pixel_attention.1} parent=1 // loop_footer_branch
      %17 = sbr.rel target = $region3
    $region8: #{pixel_attention.1} parent=1 // loop_exit
      _
    %1681 = vsyncpa [#allocation5], 1
    %s1682 = scalar_lea.sflag [#allocation5], 1
    %1683 = vsyncpa %s1682, 1
    %1684 = vsyncpa [#allocation6], 1
    %s1685 = scalar_lea.sflag [#allocation6], 1
    %1686 = vsyncpa %s1685, 1
    %1687 = vsyncpa [#allocation7], 1
    %s1688 = scalar_lea.sflag [#allocation7], 1
    %1689 = vsyncpa %s1688, 1
    %1690 = vsyncpa [#allocation9], 1

</llo_original>
